<compile_context>
chip_gen: v5e
topology: v5e:2x2
jax: 0.10.0
libtpu: 0.0.40
codegen_flags: <defaults>
</compile_context>

<pallas_src>
import functools
import math

import jax
import jax.numpy as jnp
from jax import lax
from jax.experimental import pallas as pl
from jax.experimental.pallas import tpu as pltpu


# ---------------------------------------------------------------------------
# helpers
# ---------------------------------------------------------------------------
def _round_up(x, m):
    return (x + m - 1) // m * m


def _choose_wpad(H, W):
    """Smallest W_pad >= W + 2 such that H * W_pad is a multiple of 128."""
    wp = W + 2
    while (H * wp) % 128 != 0:
        wp += 1
    return wp


def _choose_tile(l_out, max_tile, want_two_steps):
    """Largest multiple-of-128 divisor of l_out <= max_tile; optionally keep >=2 tiles."""
    divs = [d for d in range(128, l_out + 1, 128) if l_out % d == 0]
    tile = max(d for d in divs if d <= max_tile) if any(d <= max_tile for d in divs) else min(divs)
    if want_two_steps and l_out // tile < 2:
        smaller = [d for d in divs if l_out // d >= 2]
        if smaller:
            tile = max(smaller)
    return tile


def _const_index_map(ndim):
    def index_map(n, t):
        return (0,) * ndim
    return index_map


# ---------------------------------------------------------------------------
# Fused-heads Pallas kernel
# ---------------------------------------------------------------------------
def _make_fused_heads_kernel(head_layout, tap_shifts, n_layer_arrays, tile):
    """head_layout: tuple of (c1_off, c1, n_inter, z_off, c_last, cls_off, classes)."""

    def kernel(x_ref, halo_ref, w3_ref, b3_ref, *rest):
        layer_refs = rest[:n_layer_arrays]
        wf_ref, bf_ref, out_ref = rest[n_layer_arrays:]

        # (Cin, tile + halo) window; zero padding (SAME conv) is baked in on the host.
        window = jnp.concatenate([x_ref[...], halo_ref[...]], axis=-1)

        # Fused first 3x3 conv of ALL heads: 9 accumulated MXU matmuls over
        # statically shifted slices of the flattened padded image (no im2col in HBM).
        acc = None
        for tap, s in enumerate(tap_shifts):
            rhs = window[:, s:s + tile]                                # (Cin, tile) bf16
            part = jnp.dot(w3_ref[tap], rhs, preferred_element_type=jnp.float32)
            acc = part if acc is None else acc + part
        # shared activation, cast to bf16 ONCE (halves spill; MXU consumes bf16 anyway)
        y_all = jnp.maximum(acc + b3_ref[...], 0.0).astype(jnp.bfloat16)

        # Per-head intermediate 1x1 (+ReLU) chains (often empty), then gather every
        # head's last activation for a single block-diagonal final matmul.
        parts = []
        wi = 0
        for (c1_off, c1, n_inter, _, _, _, _) in head_layout:
            y = y_all[c1_off:c1_off + c1, :]                           # static sublane slice
            for _ in range(n_inter):
                w_ref = layer_refs[wi]
                b_ref = layer_refs[wi + 1]
                wi += 2
                z = jnp.dot(w_ref[...], y, preferred_element_type=jnp.float32) + b_ref[...]
                y = jnp.maximum(z, 0.0).astype(jnp.bfloat16)
            parts.append(y)
        z_all = parts[0] if len(parts) == 1 else jnp.concatenate(parts, axis=0)

        # One block-diagonal matmul for all output 1x1 convs -> one packed, lane-dense store.
        out = jnp.dot(wf_ref[...], z_all, preferred_element_type=jnp.float32) + bf_ref[...]
        out_ref[...] = out.astype(out_ref.dtype)

    return kernel


@functools.partial(jax.jit, static_argnames=("head_names",))
def fused_heads_forward(x_nchw, head_params, head_names):
    """Run all heads on a NCHW feature map with one fused Pallas kernel.

    head_params[head] = [(w3 (C1,Cin,3,3) bf16, b3 (C1,) f32),
                         *((w (Cout,Cin) bf16, b (Cout,) f32) for intermediate 1x1 layers),
                         (wout (classes,Clast) bf16, bout (classes,) f32)]
    Returns dict head -> (N, classes, H, W) f32.
    """
    N, Cin, H, W = x_nchw.shape

    # ---- static layout bookkeeping ----------------------------------------
    head_layout = []
    c1_off = 0
    z_off = 0
    cls_off = 0
    layer_shapes = []
    for head in head_names:
        layers = head_params[head]
        c1 = layers[0][0].shape[0]
        n_inter = len(layers) - 2
        c_last = layers[-1][0].shape[1]
        classes = layers[-1][0].shape[0]
        head_layout.append((c1_off, c1, n_inter, z_off, c_last, cls_off, classes))
        c1_off = _round_up(c1_off + c1, 8)
        z_off += c_last
        cls_off += classes
        for (w, _) in layers[1:-1]:
            layer_shapes.append(w.shape)
    sum_c1_pad = max(_round_up(c1_off, 8), 8)
    sum_clast = z_off
    sum_cls_pad = max(_round_up(cls_off, 8), 8)

    # ---- spatial padding: every tile is a lane-dense multiple of 128 -------
    W_pad = _choose_wpad(H, W)                 # >= W+2, zero-padded columns handle SAME conv
    L_out = H * W_pad
    tap_shifts = tuple(ky * W_pad + kx for ky in range(3) for kx in range(3))
    halo = _round_up(2 * W_pad + 2, 128)       # covers the largest tap shift

    # ---- tile choice + explicit VMEM budget (v7x: 64 MiB physical) ---------
    tile = _choose_tile(L_out, max_tile=1024, want_two_steps=(N == 1))

    def vmem_est(t):
        b = 0
        b += 2 * Cin * t * 2                                    # x tile, double-buffered
        b += 2 * Cin * halo * 2                                 # halo tile
        b += 2 * 9 * sum_c1_pad * max(Cin, 128) * 2             # packed 3x3 weights
        b += 2 * sum_c1_pad * 128 * 4                           # b3 (lane-padded)
        for (o, i) in layer_shapes:
            b += 2 * o * max(i, 128) * 2 + 2 * o * 128 * 4
        b += 2 * sum_cls_pad * max(sum_clast, 128) * 2 + 2 * sum_cls_pad * 128 * 4
        b += 2 * sum_cls_pad * t * 4                            # packed output tile
        # in-kernel temporaries: window, f32 acc, bf16 y_all, tap slices, z, out
        b += Cin * (t + halo) * 2
        b += sum_c1_pad * t * (4 + 2)
        b += 3 * Cin * t * 2
        b += sum_clast * t * 2 + sum_cls_pad * t * 4
        return b

    while vmem_est(tile) > 40 * 2**20:
        smaller = [d for d in range(128, tile, 128) if L_out % d == 0]
        if not smaller:
            break
        tile = max(smaller)
    n_tiles = L_out // tile
    vmem_limit = int(min(48 * 2**20, max(32 * 2**20, 2 * vmem_est(tile))))

    # ---- host-side padding / flattening (bf16, ~1.1x of x; no 9x im2col) ---
    xb = x_nchw.astype(jnp.bfloat16)
    x_p = jnp.pad(xb, ((0, 0), (0, 0), (1, 1), (1, W_pad - W - 1)))   # (N,Cin,H+2,W_pad)
    flat = x_p.reshape(N, Cin, (H + 2) * W_pad)
    l_flat = L_out + halo
    flat_ext = jnp.pad(flat, ((0, 0), (0, 0), (0, l_flat - (H + 2) * W_pad)))
    halo_arr = jnp.stack(
        [lax.slice_in_dim(flat_ext, (t + 1) * tile, (t + 1) * tile + halo, axis=2)
         for t in range(n_tiles)], axis=1)                            # (N,n_tiles,Cin,halo)

    # ---- pack weights -------------------------------------------------------
    w3_all = jnp.zeros((9, sum_c1_pad, Cin), jnp.bfloat16)
    b3_all = jnp.zeros((sum_c1_pad, 1), jnp.float32)
    wf_all = jnp.zeros((sum_cls_pad, sum_clast), jnp.bfloat16)
    bf_all = jnp.zeros((sum_cls_pad, 1), jnp.float32)
    layer_arrays = []
    for (c1o, c1, n_inter, zo, c_last, co, classes), head in zip(head_layout, head_names):
        layers = head_params[head]
        w3, b3 = layers[0]
        # (C1, Cin, 3, 3) -> (9, C1, Cin), tap index = ky*3 + kx (matches tap_shifts)
        w3_taps = jnp.transpose(w3.astype(jnp.bfloat16), (2, 3, 0, 1)).reshape(9, c1, Cin)
        w3_all = w3_all.at[:, c1o:c1o + c1, :].set(w3_taps)
        b3_all = b3_all.at[c1o:c1o + c1, 0].set(b3.astype(jnp.float32))
        for (w, b) in layers[1:-1]:
            layer_arrays.append(w.astype(jnp.bfloat16))                  # (Cout, Cin)
            layer_arrays.append(b.astype(jnp.float32).reshape(-1, 1))    # (Cout, 1)
        wout, bout = layers[-1]
        wf_all = wf_all.at[co:co + classes, zo:zo + c_last].set(wout.astype(jnp.bfloat16))
        bf_all = bf_all.at[co:co + classes, 0].set(bout.astype(jnp.float32))

    # ---- specs --------------------------------------------------------------
    in_specs = [
        pl.BlockSpec((None, Cin, tile), lambda n, t: (n, 0, t)),
        pl.BlockSpec((None, None, Cin, halo), lambda n, t: (n, t, 0, 0)),
        pl.BlockSpec(w3_all.shape, _const_index_map(3)),
        pl.BlockSpec(b3_all.shape, _const_index_map(2)),
    ]
    in_specs += [pl.BlockSpec(a.shape, _const_index_map(a.ndim)) for a in layer_arrays]
    in_specs += [pl.BlockSpec(wf_all.shape, _const_index_map(2)),
                 pl.BlockSpec(bf_all.shape, _const_index_map(2))]
    out_spec = pl.BlockSpec((None, sum_cls_pad, tile), lambda n, t: (n, 0, t))
    out_shape = jax.ShapeDtypeStruct((N, sum_cls_pad, L_out), jnp.float32)

    # ---- cost estimate for the XLA scheduler --------------------------------
    flops = 2 * N * L_out * 9 * Cin * sum_c1_pad
    for (o, i) in layer_shapes:
        flops += 2 * N * L_out * o * i
    flops += 2 * N * L_out * sum_cls_pad * sum_clast
    bytes_accessed = (flat_ext.size * 2 + halo_arr.size * 2
                      + w3_all.size * 2 + b3_all.size * 4
                      + sum(a.size * a.dtype.itemsize for a in layer_arrays)
                      + wf_all.size * 2 + bf_all.size * 4
                      + N * sum_cls_pad * L_out * 4)

    kernel = _make_fused_heads_kernel(tuple(head_layout), tap_shifts,
                                      len(layer_arrays), tile)

    out = pl.pallas_call(
        kernel,
        out_shape=out_shape,
        grid=(N, n_tiles),
        in_specs=in_specs,
        out_specs=out_spec,
        compiler_params=pltpu.CompilerParams(
            dimension_semantics=("parallel", "parallel"),
            vmem_limit_bytes=vmem_limit),
        cost_estimate=pl.CostEstimate(flops=int(flops), transcendentals=0,
                                      bytes_accessed=int(bytes_accessed)),
    )(flat_ext, halo_arr, w3_all, b3_all, *layer_arrays, wf_all, bf_all)

    # ---- unpack: crop padded width + split the packed class axis per head ---
    out_img = out.reshape(N, sum_cls_pad, H, W_pad)[:, :, :, :W]
    return {head: out_img[:, co:co + classes]
            for (c1o, c1, n_inter, zo, c_last, co, classes), head
            in zip(head_layout, head_names)}


# ---------------------------------------------------------------------------
# BaseModel equivalent (parameter construction + forward over stacks/heads)
# ---------------------------------------------------------------------------
class BaseModelPallas:
    def __init__(self, heads, head_convs, num_stacks, last_channel,
                 prior_bias=-4.6, head_kernel=3, seed=0):
        assert head_kernel == 3                      # default opt.head_kernel == 3
        self.heads = dict(heads)
        self.head_names = tuple(heads.keys())
        self.num_stacks = num_stacks
        self.last_channel = last_channel
        self.params = {}
        key = jax.random.PRNGKey(seed)

        for head in heads:
            classes = heads[head]
            head_conv = head_convs[head]
            # TODO(synk): len(head_conv)==0 (single 1x1 head) branch not implemented here.
            assert len(head_conv) > 0
            layers = []
            # first 3x3 conv: last_channel -> head_conv[0]   (PyTorch OIHW layout)
            key, kw, kb = jax.random.split(key, 3)
            w3 = (0.05 * jax.random.normal(
                kw, (head_conv[0], last_channel, 3, 3), jnp.float32)).astype(jnp.bfloat16)
            if 'hm' in head:
                b3 = 0.01 * jax.random.normal(kb, (head_conv[0],), jnp.float32)
            else:
                b3 = jnp.zeros((head_conv[0],), jnp.float32)   # fill_fc_weights -> bias 0
            layers.append((w3, b3))
            # intermediate 1x1 convs
            for k in range(1, len(head_conv)):
                key, kw, kb = jax.random.split(key, 3)
                wk = (0.05 * jax.random.normal(
                    kw, (head_conv[k], head_conv[k - 1]), jnp.float32)).astype(jnp.bfloat16)
                if 'hm' in head:
                    bk = 0.01 * jax.random.normal(kb, (head_conv[k],), jnp.float32)
                else:
                    bk = jnp.zeros((head_conv[k],), jnp.float32)
                layers.append((wk, bk))
            # output 1x1 conv
            key, kw = jax.random.split(key)
            wout = (0.05 * jax.random.normal(
                kw, (classes, head_conv[-1]), jnp.float32)).astype(jnp.bfloat16)
            if 'hm' in head:
                bout = jnp.full((classes,), prior_bias, jnp.float32)
            else:
                bout = jnp.zeros((classes,), jnp.float32)
            layers.append((wout, bout))
            self.params[head] = layers

    def img2feats(self, x):
        # TODO(synk): abstract in the PyTorch base class; identity backbone used here.
        return [x]

    def forward(self, x, pre_img=None, pre_hm=None):
        assert pre_img is None and pre_hm is None    # imgpre2feats is abstract too
        assert x.shape[1] == self.last_channel, \
            "identity backbone requires x channels == last_channel"
        feats = self.img2feats(x)
        out = []
        for s in range(self.num_stacks):
            z = fused_heads_forward(feats[s], self.params, self.head_names)
            out.append(z)
        return out


# ---------------------------------------------------------------------------
# Pure-JAX reference with the SAME precision policy as the kernel:
#   bf16 operands, f32 accumulation, activations re-rounded to bf16 between layers.
# ---------------------------------------------------------------------------
def _head_reference(x_nchw, layers):
    x = x_nchw.astype(jnp.bfloat16)
    w3, b3 = layers[0]
    dn = lax.conv_dimension_numbers(x.shape, w3.shape, ("NCHW", "OIHW", "NCHW"))
    y = lax.conv_general_dilated(x, w3.astype(jnp.bfloat16), (1, 1), "SAME",
                                 dimension_numbers=dn,
                                 preferred_element_type=jnp.float32)
    y = jnp.maximum(y + b3.reshape(1, -1, 1, 1), 0.0).astype(jnp.bfloat16)
    for (w, b) in layers[1:-1]:
        y = jnp.einsum("oc,nchw->nohw", w.astype(jnp.bfloat16), y,
                       preferred_element_type=jnp.float32) + b.reshape(1, -1, 1, 1)
        y = jnp.maximum(y, 0.0).astype(jnp.bfloat16)
    w, b = layers[-1]
    y = jnp.einsum("oc,nchw->nohw", w.astype(jnp.bfloat16), y,
                   preferred_element_type=jnp.float32) + b.reshape(1, -1, 1, 1)
    return y


if __name__ == "__main__":
    # small shapes consistent with the module
    N, last_channel, H, W = 2, 32, 16, 16
    heads = {"hm": 3, "reg": 2, "wh": 2}
    head_convs = {"hm": [32], "reg": [32], "wh": [32, 32]}   # 1- and 2-conv branches
    num_stacks = 1

    model = BaseModelPallas(heads, head_convs, num_stacks, last_channel,
                            prior_bias=-4.6, head_kernel=3, seed=0)

    x = jax.random.normal(jax.random.PRNGKey(0), (N, last_channel, H, W), jnp.float32)

    out = model.forward(x)
    jax.block_until_ready(out)

    # verify against pure-JAX reference (same bf16-operand / f32-accumulate policy)
    for s in range(num_stacks):
        for head in heads:
            ref = _head_reference(x, model.params[head])
            got = out[s][head]
            assert got.shape == (N, heads[head], H, W), (head, got.shape)
            err = float(jnp.max(jnp.abs(got - ref)))
            assert jnp.allclose(got, ref, rtol=1e-2, atol=1e-2), (head, err)

    print("KERNEL_OK")
</pallas_src>

<mosaic_0001>
module attributes {stable_mosaic.version = 11 : i64} {
  func.func @kernel(%arg0: i32, %arg1: i32, %arg2: memref<1x32x384xbf16, #tpu.memory_space<vmem>>, %arg3: memref<1x1x32x128xbf16, #tpu.memory_space<vmem>>, %arg4: memref<9x96x32xbf16, #tpu.memory_space<vmem>>, %arg5: memref<96x1xf32, #tpu.memory_space<vmem>>, %arg6: memref<32x32xbf16, #tpu.memory_space<vmem>>, %arg7: memref<32x1xf32, #tpu.memory_space<vmem>>, %arg8: memref<8x96xbf16, #tpu.memory_space<vmem>>, %arg9: memref<8x1xf32, #tpu.memory_space<vmem>>, %arg10: memref<1x8x384xf32, #tpu.memory_space<vmem>>) attributes {dimension_semantics = [#tpu.dimension_semantics<parallel>, #tpu.dimension_semantics<parallel>], iteration_bounds = array<i64: 2, 1>, scalar_prefetch = 0 : i64, scratch_operands = 0 : i64, tpu.core_type = #tpu.core_type<tc>, window_params = [{transform_indices = @transform_0, window_bounds = array<i64: 1, 32, 384>}, {transform_indices = @transform_1, window_bounds = array<i64: 1, 1, 32, 128>}, {pipeline_mode = #tpu.pipeline_mode<synchronous>, transform_indices = @transform_2, window_bounds = array<i64: 9, 96, 32>}, {pipeline_mode = #tpu.pipeline_mode<synchronous>, transform_indices = @transform_3, window_bounds = array<i64: 96, 1>}, {pipeline_mode = #tpu.pipeline_mode<synchronous>, transform_indices = @transform_4, window_bounds = array<i64: 32, 32>}, {pipeline_mode = #tpu.pipeline_mode<synchronous>, transform_indices = @transform_5, window_bounds = array<i64: 32, 1>}, {pipeline_mode = #tpu.pipeline_mode<synchronous>, transform_indices = @transform_6, window_bounds = array<i64: 8, 96>}, {pipeline_mode = #tpu.pipeline_mode<synchronous>, transform_indices = @transform_7, window_bounds = array<i64: 8, 1>}, {transform_indices = @transform_8, window_bounds = array<i64: 1, 8, 384>}]} {
    %c0 = arith.constant 0 : index
    %c0_0 = arith.constant 0 : index
    %c0_1 = arith.constant 0 : index
    %0 = vector.load %arg2[%c0, %c0_0, %c0_1] : memref<1x32x384xbf16, #tpu.memory_space<vmem>>, vector<1x32x384xbf16>
    %1 = vector.shape_cast %0 : vector<1x32x384xbf16> to vector<32x384xbf16>
    %c0_2 = arith.constant 0 : index
    %c0_3 = arith.constant 0 : index
    %c0_4 = arith.constant 0 : index
    %c0_5 = arith.constant 0 : index
    %2 = vector.load %arg3[%c0_2, %c0_3, %c0_4, %c0_5] : memref<1x1x32x128xbf16, #tpu.memory_space<vmem>>, vector<1x1x32x128xbf16>
    %3 = vector.shape_cast %2 : vector<1x1x32x128xbf16> to vector<32x128xbf16>
    %4 = tpu.concatenate %1, %3 in 1 : vector<32x384xbf16>, vector<32x128xbf16> -> vector<32x512xbf16>
    %5 = vector.extract_strided_slice %4 {offsets = [0, 0], sizes = [32, 384], strides = [1, 1]} : vector<32x512xbf16> to vector<32x384xbf16>
    %c0_6 = arith.constant 0 : index
    %c0_7 = arith.constant 0 : index
    %c0_8 = arith.constant 0 : index
    %6 = vector.load %arg4[%c0_6, %c0_7, %c0_8] : memref<9x96x32xbf16, #tpu.memory_space<vmem>>, vector<1x96x32xbf16>
    %7 = vector.shape_cast %6 : vector<1x96x32xbf16> to vector<96x32xbf16>
    %cst = arith.constant dense<0.000000e+00> : vector<96x384xf32>
    %8 = tpu.matmul %7, %5, %cst {dimension_numbers = #tpu.dot_dimension_numbers<[1], [0], [0], [1], [0, 0, 1, 1], [], []>} : vector<96x32xbf16>, vector<32x384xbf16>, vector<96x384xf32> -> vector<96x384xf32>
    %9 = vector.extract_strided_slice %4 {offsets = [0, 1], sizes = [32, 384], strides = [1, 1]} : vector<32x512xbf16> to vector<32x384xbf16>
    %c1 = arith.constant 1 : index
    %c0_9 = arith.constant 0 : index
    %c0_10 = arith.constant 0 : index
    %10 = vector.load %arg4[%c1, %c0_9, %c0_10] : memref<9x96x32xbf16, #tpu.memory_space<vmem>>, vector<1x96x32xbf16>
    %11 = vector.shape_cast %10 : vector<1x96x32xbf16> to vector<96x32xbf16>
    %cst_11 = arith.constant dense<0.000000e+00> : vector<96x384xf32>
    %12 = tpu.matmul %11, %9, %cst_11 {dimension_numbers = #tpu.dot_dimension_numbers<[1], [0], [0], [1], [0, 0, 1, 1], [], []>} : vector<96x32xbf16>, vector<32x384xbf16>, vector<96x384xf32> -> vector<96x384xf32>
    %13 = arith.addf %8, %12 : vector<96x384xf32>
    %14 = vector.extract_strided_slice %4 {offsets = [0, 2], sizes = [32, 384], strides = [1, 1]} : vector<32x512xbf16> to vector<32x384xbf16>
    %c2 = arith.constant 2 : index
    %c0_12 = arith.constant 0 : index
    %c0_13 = arith.constant 0 : index
    %15 = vector.load %arg4[%c2, %c0_12, %c0_13] : memref<9x96x32xbf16, #tpu.memory_space<vmem>>, vector<1x96x32xbf16>
    %16 = vector.shape_cast %15 : vector<1x96x32xbf16> to vector<96x32xbf16>
    %cst_14 = arith.constant dense<0.000000e+00> : vector<96x384xf32>
    %17 = tpu.matmul %16, %14, %cst_14 {dimension_numbers = #tpu.dot_dimension_numbers<[1], [0], [0], [1], [0, 0, 1, 1], [], []>} : vector<96x32xbf16>, vector<32x384xbf16>, vector<96x384xf32> -> vector<96x384xf32>
    %18 = arith.addf %13, %17 : vector<96x384xf32>
    %19 = vector.extract_strided_slice %4 {offsets = [0, 24], sizes = [32, 384], strides = [1, 1]} : vector<32x512xbf16> to vector<32x384xbf16>
    %c3 = arith.constant 3 : index
    %c0_15 = arith.constant 0 : index
    %c0_16 = arith.constant 0 : index
    %20 = vector.load %arg4[%c3, %c0_15, %c0_16] : memref<9x96x32xbf16, #tpu.memory_space<vmem>>, vector<1x96x32xbf16>
    %21 = vector.shape_cast %20 : vector<1x96x32xbf16> to vector<96x32xbf16>
    %cst_17 = arith.constant dense<0.000000e+00> : vector<96x384xf32>
    %22 = tpu.matmul %21, %19, %cst_17 {dimension_numbers = #tpu.dot_dimension_numbers<[1], [0], [0], [1], [0, 0, 1, 1], [], []>} : vector<96x32xbf16>, vector<32x384xbf16>, vector<96x384xf32> -> vector<96x384xf32>
    %23 = arith.addf %18, %22 : vector<96x384xf32>
    %24 = vector.extract_strided_slice %4 {offsets = [0, 25], sizes = [32, 384], strides = [1, 1]} : vector<32x512xbf16> to vector<32x384xbf16>
    %c4 = arith.constant 4 : index
    %c0_18 = arith.constant 0 : index
    %c0_19 = arith.constant 0 : index
    %25 = vector.load %arg4[%c4, %c0_18, %c0_19] : memref<9x96x32xbf16, #tpu.memory_space<vmem>>, vector<1x96x32xbf16>
    %26 = vector.shape_cast %25 : vector<1x96x32xbf16> to vector<96x32xbf16>
    %cst_20 = arith.constant dense<0.000000e+00> : vector<96x384xf32>
    %27 = tpu.matmul %26, %24, %cst_20 {dimension_numbers = #tpu.dot_dimension_numbers<[1], [0], [0], [1], [0, 0, 1, 1], [], []>} : vector<96x32xbf16>, vector<32x384xbf16>, vector<96x384xf32> -> vector<96x384xf32>
    %28 = arith.addf %23, %27 : vector<96x384xf32>
    %29 = vector.extract_strided_slice %4 {offsets = [0, 26], sizes = [32, 384], strides = [1, 1]} : vector<32x512xbf16> to vector<32x384xbf16>
    %c5 = arith.constant 5 : index
    %c0_21 = arith.constant 0 : index
    %c0_22 = arith.constant 0 : index
    %30 = vector.load %arg4[%c5, %c0_21, %c0_22] : memref<9x96x32xbf16, #tpu.memory_space<vmem>>, vector<1x96x32xbf16>
    %31 = vector.shape_cast %30 : vector<1x96x32xbf16> to vector<96x32xbf16>
    %cst_23 = arith.constant dense<0.000000e+00> : vector<96x384xf32>
    %32 = tpu.matmul %31, %29, %cst_23 {dimension_numbers = #tpu.dot_dimension_numbers<[1], [0], [0], [1], [0, 0, 1, 1], [], []>} : vector<96x32xbf16>, vector<32x384xbf16>, vector<96x384xf32> -> vector<96x384xf32>
    %33 = arith.addf %28, %32 : vector<96x384xf32>
    %34 = vector.extract_strided_slice %4 {offsets = [0, 48], sizes = [32, 384], strides = [1, 1]} : vector<32x512xbf16> to vector<32x384xbf16>
    %c6 = arith.constant 6 : index
    %c0_24 = arith.constant 0 : index
    %c0_25 = arith.constant 0 : index
    %35 = vector.load %arg4[%c6, %c0_24, %c0_25] : memref<9x96x32xbf16, #tpu.memory_space<vmem>>, vector<1x96x32xbf16>
    %36 = vector.shape_cast %35 : vector<1x96x32xbf16> to vector<96x32xbf16>
    %cst_26 = arith.constant dense<0.000000e+00> : vector<96x384xf32>
    %37 = tpu.matmul %36, %34, %cst_26 {dimension_numbers = #tpu.dot_dimension_numbers<[1], [0], [0], [1], [0, 0, 1, 1], [], []>} : vector<96x32xbf16>, vector<32x384xbf16>, vector<96x384xf32> -> vector<96x384xf32>
    %38 = arith.addf %33, %37 : vector<96x384xf32>
    %39 = vector.extract_strided_slice %4 {offsets = [0, 49], sizes = [32, 384], strides = [1, 1]} : vector<32x512xbf16> to vector<32x384xbf16>
    %c7 = arith.constant 7 : index
    %c0_27 = arith.constant 0 : index
    %c0_28 = arith.constant 0 : index
    %40 = vector.load %arg4[%c7, %c0_27, %c0_28] : memref<9x96x32xbf16, #tpu.memory_space<vmem>>, vector<1x96x32xbf16>
    %41 = vector.shape_cast %40 : vector<1x96x32xbf16> to vector<96x32xbf16>
    %cst_29 = arith.constant dense<0.000000e+00> : vector<96x384xf32>
    %42 = tpu.matmul %41, %39, %cst_29 {dimension_numbers = #tpu.dot_dimension_numbers<[1], [0], [0], [1], [0, 0, 1, 1], [], []>} : vector<96x32xbf16>, vector<32x384xbf16>, vector<96x384xf32> -> vector<96x384xf32>
    %43 = arith.addf %38, %42 : vector<96x384xf32>
    %44 = vector.extract_strided_slice %4 {offsets = [0, 50], sizes = [32, 384], strides = [1, 1]} : vector<32x512xbf16> to vector<32x384xbf16>
    %c8 = arith.constant 8 : index
    %c0_30 = arith.constant 0 : index
    %c0_31 = arith.constant 0 : index
    %45 = vector.load %arg4[%c8, %c0_30, %c0_31] : memref<9x96x32xbf16, #tpu.memory_space<vmem>>, vector<1x96x32xbf16>
    %46 = vector.shape_cast %45 : vector<1x96x32xbf16> to vector<96x32xbf16>
    %cst_32 = arith.constant dense<0.000000e+00> : vector<96x384xf32>
    %47 = tpu.matmul %46, %44, %cst_32 {dimension_numbers = #tpu.dot_dimension_numbers<[1], [0], [0], [1], [0, 0, 1, 1], [], []>} : vector<96x32xbf16>, vector<32x384xbf16>, vector<96x384xf32> -> vector<96x384xf32>
    %48 = arith.addf %43, %47 : vector<96x384xf32>
    %c0_33 = arith.constant 0 : index
    %c0_34 = arith.constant 0 : index
    %49 = vector.load %arg5[%c0_33, %c0_34] : memref<96x1xf32, #tpu.memory_space<vmem>>, vector<96x1xf32>
    %50 = vector.broadcast %49 : vector<96x1xf32> to vector<96x384xf32>
    %51 = arith.addf %48, %50 : vector<96x384xf32>
    %cst_35 = arith.constant 0.000000e+00 : f32
    %52 = vector.broadcast %cst_35 : f32 to vector<96x384xf32>
    %53 = arith.maximumf %51, %52 : vector<96x384xf32>
    %54 = arith.truncf %53 : vector<96x384xf32> to vector<96x384xbf16>
    %55 = vector.extract_strided_slice %54 {offsets = [0, 0], sizes = [32, 384], strides = [1, 1]} : vector<96x384xbf16> to vector<32x384xbf16>
    %56 = vector.extract_strided_slice %54 {offsets = [32, 0], sizes = [32, 384], strides = [1, 1]} : vector<96x384xbf16> to vector<32x384xbf16>
    %57 = vector.extract_strided_slice %54 {offsets = [64, 0], sizes = [32, 384], strides = [1, 1]} : vector<96x384xbf16> to vector<32x384xbf16>
    %c0_36 = arith.constant 0 : index
    %c0_37 = arith.constant 0 : index
    %58 = vector.load %arg6[%c0_36, %c0_37] : memref<32x32xbf16, #tpu.memory_space<vmem>>, vector<32x32xbf16>
    %cst_38 = arith.constant dense<0.000000e+00> : vector<32x384xf32>
    %59 = tpu.matmul %58, %57, %cst_38 {dimension_numbers = #tpu.dot_dimension_numbers<[1], [0], [0], [1], [0, 0, 1, 1], [], []>} : vector<32x32xbf16>, vector<32x384xbf16>, vector<32x384xf32> -> vector<32x384xf32>
    %c0_39 = arith.constant 0 : index
    %c0_40 = arith.constant 0 : index
    %60 = vector.load %arg7[%c0_39, %c0_40] : memref<32x1xf32, #tpu.memory_space<vmem>>, vector<32x1xf32>
    %61 = vector.broadcast %60 : vector<32x1xf32> to vector<32x384xf32>
    %62 = arith.addf %59, %61 : vector<32x384xf32>
    %cst_41 = arith.constant 0.000000e+00 : f32
    %63 = vector.broadcast %cst_41 : f32 to vector<32x384xf32>
    %64 = arith.maximumf %62, %63 : vector<32x384xf32>
    %65 = arith.truncf %64 : vector<32x384xf32> to vector<32x384xbf16>
    %66 = tpu.concatenate %55, %56, %65 in 0 : vector<32x384xbf16>, vector<32x384xbf16>, vector<32x384xbf16> -> vector<96x384xbf16>
    %c0_42 = arith.constant 0 : index
    %c0_43 = arith.constant 0 : index
    %67 = vector.load %arg8[%c0_42, %c0_43] : memref<8x96xbf16, #tpu.memory_space<vmem>>, vector<8x96xbf16>
    %cst_44 = arith.constant dense<0.000000e+00> : vector<8x384xf32>
    %68 = tpu.matmul %67, %66, %cst_44 {dimension_numbers = #tpu.dot_dimension_numbers<[1], [0], [0], [1], [0, 0, 1, 1], [], []>} : vector<8x96xbf16>, vector<96x384xbf16>, vector<8x384xf32> -> vector<8x384xf32>
    %c0_45 = arith.constant 0 : index
    %c0_46 = arith.constant 0 : index
    %69 = vector.load %arg9[%c0_45, %c0_46] : memref<8x1xf32, #tpu.memory_space<vmem>>, vector<8x1xf32>
    %70 = vector.broadcast %69 : vector<8x1xf32> to vector<8x384xf32>
    %71 = arith.addf %68, %70 : vector<8x384xf32>
    %c0_47 = arith.constant 0 : index
    %c0_48 = arith.constant 0 : index
    %c0_49 = arith.constant 0 : index
    %72 = vector.load %arg10[%c0_47, %c0_48, %c0_49] : memref<1x8x384xf32, #tpu.memory_space<vmem>>, vector<1x8x384xf32>
    %73 = vector.shape_cast %72 : vector<1x8x384xf32> to vector<8x384xf32>
    %74 = vector.shape_cast %71 : vector<8x384xf32> to vector<1x8x384xf32>
    tpu.vector_store %arg10[%c0_47, %c0_48, %c0_49], %74 {strides = array<i32>} : memref<1x8x384xf32, #tpu.memory_space<vmem>>, vector<1x8x384xf32>,
    return
  }
  func.func @transform_0(%arg0: i32, %arg1: i32) -> (i32, i32, i32) {
    %c0_i32 = arith.constant 0 : i32
    %c0_i32_0 = arith.constant 0 : i32
    return %arg0, %c0_i32, %arg1 : i32, i32, i32
  }
  func.func @transform_1(%arg0: i32, %arg1: i32) -> (i32, i32, i32, i32) {
    %c0_i32 = arith.constant 0 : i32
    %c0_i32_0 = arith.constant 0 : i32
    %c0_i32_1 = arith.constant 0 : i32
    return %arg0, %arg1, %c0_i32, %c0_i32_0 : i32, i32, i32, i32
  }
  func.func @transform_2(%arg0: i32, %arg1: i32) -> (i32, i32, i32) {
    %c0_i32 = arith.constant 0 : i32
    %c0_i32_0 = arith.constant 0 : i32
    %c0_i32_1 = arith.constant 0 : i32
    %c0_i32_2 = arith.constant 0 : i32
    return %c0_i32, %c0_i32_0, %c0_i32_1 : i32, i32, i32
  }
  func.func @transform_3(%arg0: i32, %arg1: i32) -> (i32, i32) {
    %c0_i32 = arith.constant 0 : i32
    %c0_i32_0 = arith.constant 0 : i32
    %c0_i32_1 = arith.constant 0 : i32
    return %c0_i32, %c0_i32_0 : i32, i32
  }
  func.func @transform_4(%arg0: i32, %arg1: i32) -> (i32, i32) {
    %c0_i32 = arith.constant 0 : i32
    %c0_i32_0 = arith.constant 0 : i32
    %c0_i32_1 = arith.constant 0 : i32
    return %c0_i32, %c0_i32_0 : i32, i32
  }
  func.func @transform_5(%arg0: i32, %arg1: i32) -> (i32, i32) {
    %c0_i32 = arith.constant 0 : i32
    %c0_i32_0 = arith.constant 0 : i32
    %c0_i32_1 = arith.constant 0 : i32
    return %c0_i32, %c0_i32_0 : i32, i32
  }
  func.func @transform_6(%arg0: i32, %arg1: i32) -> (i32, i32) {
    %c0_i32 = arith.constant 0 : i32
    %c0_i32_0 = arith.constant 0 : i32
    %c0_i32_1 = arith.constant 0 : i32
    return %c0_i32, %c0_i32_0 : i32, i32
  }
  func.func @transform_7(%arg0: i32, %arg1: i32) -> (i32, i32) {
    %c0_i32 = arith.constant 0 : i32
    %c0_i32_0 = arith.constant 0 : i32
    %c0_i32_1 = arith.constant 0 : i32
    return %c0_i32, %c0_i32_0 : i32, i32
  }
  func.func @transform_8(%arg0: i32, %arg1: i32) -> (i32, i32, i32) {
    %c0_i32 = arith.constant 0 : i32
    %c0_i32_0 = arith.constant 0 : i32
    return %arg0, %c0_i32, %arg1 : i32, i32, i32
  }
}

</mosaic_0001>

<llo_original>
// kernel: fused_heads_forward.1
$region0: #{fused_heads_forward.1}
  #allocation0 [shape = 'u32[]', space=smem, size = 0x4, offset = 0x4, fixed_abs, tag = 'smem constant byte address 0x4 - core index']
  #allocation1 [shape = 'u32[72,128]{1,0:T(1,128)}', space=vmem, size = 0x9000, scoped, tag = 'internal scratch']
  %s0 = inlined_call_operand.vmem [shape: bf16[2,32,512], index: 0, kind: input, shape index: {}]
  %s1 = inlined_call_operand.vmem [shape: bf16[2,1,32,128], index: 1, kind: input, shape index: {}]
  %s2 = inlined_call_operand.vmem [shape: bf16[9,96,32], index: 2, kind: input, shape index: {}]
  %s3 = inlined_call_operand.vmem [shape: f32[96,1], index: 3, kind: input, shape index: {}]
  %s4 = inlined_call_operand.vmem [shape: bf16[32,32], index: 4, kind: input, shape index: {}]
  %s5 = inlined_call_operand.vmem [shape: f32[32,1], index: 5, kind: input, shape index: {}]
  %s6 = inlined_call_operand.vmem [shape: bf16[8,96], index: 6, kind: input, shape index: {}]
  %s7 = inlined_call_operand.vmem [shape: f32[8,1], index: 7, kind: input, shape index: {}]
  %s8 = inlined_call_operand.vmem [shape: f32[2,8,384], index: 8, kind: output, shape index: {}]
  %s9 = sld [smem:[#allocation0]]
  $region131: #{fused_heads_forward.1} parent=0
    _
  %s11 = ssub.s32 1, %s9
  %s12 = scalar_select 0, %s11, %s9
  $region1: #{fused_heads_forward.1} parent=0
    #allocation2 [shape = 'u8[49152]{0}', space=vmem, size = 0xc000, scoped, tag = 'input window, operand 0']
    loop: start=0, step=1, limit=4
    $region2: #{fused_heads_forward.1} parent=1 // loop_pre_header
      _
    $region3: #{fused_heads_forward.1} parent=1 // loop_header
      %s14 = sphi 0, %s18
      %p15 = scmp.ge.s32.totalorder %s14, 4
      %s21 = sphi 0, %s33
      %s22 = sphi 0, %s29
      %s23 = sphi 0, %s21
      %s24 = sphi 0, %s22
      %s25 = sphi 0, %s23
      %s26 = sphi 0, %s24
      %s38 = sphi 0, %s40
      %s41 = sphi 0, %s38
      %s42 = sphi 0, %s41
      %s58 = sphi 0, %s42
      %s66 = sphi 0, %s68
      %s69 = sphi 0, %s66
      %s70 = sphi 0, %s69
      %s86 = sphi 0, %s70
      %s90 = sphi 0, %s90
      %s92 = sphi 0, %s90
      %s93 = sphi 0, %s92
      %s107 = sphi 0, %s93
      %s111 = sphi 0, %s111
      %s113 = sphi 0, %s111
      %s114 = sphi 0, %s113
      %s128 = sphi 0, %s114
      %s132 = sphi 0, %s132
      %s134 = sphi 0, %s132
      %s135 = sphi 0, %s134
      %s149 = sphi 0, %s135
      %s153 = sphi 0, %s153
      %s155 = sphi 0, %s153
      %s156 = sphi 0, %s155
      %s170 = sphi 0, %s156
      %s174 = sphi 0, %s174
      %s176 = sphi 0, %s174
      %s177 = sphi 0, %s176
      %s191 = sphi 0, %s177
      %s195 = sphi 0, %s195
      %s197 = sphi 0, %s195
      %s198 = sphi 0, %s197
      %s212 = sphi 0, %s198
      %s220 = sphi 0, %s222
      %s223 = sphi 0, %s220
      %s224 = sphi 0, %s223
      %s240 = sphi 0, %s224
    $region4: #{fused_heads_forward.1} parent=1 // loop_header_branch
      %17 = sbr.rel (%p15) target = $region8
    $region5: #{fused_heads_forward.1} parent=1 // loop_body
      %s19 = ssub.s32 %s14, 1
      %s20 = ssub.s32 %s14, 2
      %s27 = sadd.s32 1, %s22
      %p28 = scmp.ge.s32.totalorder %s27, 1
      %s29 = scalar_select %p28, 0, %s27
      %s30 = sadd.s32 1, %s21
      %s31 = scalar_select %p28, %s30, %s21
      %p32 = scmp.ge.s32.totalorder %s31, 2
      %s33 = scalar_select %p32, 0, %s31
      %s34 = ssub.s32 %s21, %s33
      %s35 = ssub.s32 %s22, %s29
      %s36 = sor.u32 %s34, %s35
      %p37 = scmp.eq.s32.totalorder %s36, 0
      %s39 = sadd.s32 %s38, 1
      %s40 = scalar_select %p37, %s38, %s39
      %p43 = pneg %p37
      %p44 = scmp.eq.s32.totalorder %s14, 1
      %p45 = por %p43, %p44
      %p46 = scmp.ne.s32.totalorder %s38, %s41
      %p47 = scmp.eq.s32.totalorder %s14, 0
      %p48 = por %p46, %p47
      %p49 = scmp.ne.s32.totalorder %s38, %s41
      %p50 = scmp.eq.s32.totalorder %s19, 1
      %p51 = por %p49, %p50
      %p52 = scmp.ne.s32.totalorder %s41, %s42
      %p53 = scmp.eq.s32.totalorder %s19, 0
      %p54 = por %p52, %p53
      %p55 = scmp.ne.s32.totalorder %s41, %s42
      %p56 = scmp.eq.s32.totalorder %s20, 1
      %p57 = por %p55, %p56
      %p59 = scmp.ne.s32.totalorder %s42, %s58
      %p60 = scmp.eq.s32.totalorder %s20, 0
      %p61 = por %p59, %p60
      %s62 = ssub.s32 %s21, %s33
      %s63 = ssub.s32 %s22, %s29
      %s64 = sor.u32 %s62, %s63
      %p65 = scmp.eq.s32.totalorder %s64, 0
      %s67 = sadd.s32 %s66, 1
      %s68 = scalar_select %p65, %s66, %s67
      %p71 = pneg %p65
      %p72 = scmp.eq.s32.totalorder %s14, 1
      %p73 = por %p71, %p72
      %p74 = scmp.ne.s32.totalorder %s66, %s69
      %p75 = scmp.eq.s32.totalorder %s14, 0
      %p76 = por %p74, %p75
      %p77 = scmp.ne.s32.totalorder %s66, %s69
      %p78 = scmp.eq.s32.totalorder %s19, 1
      %p79 = por %p77, %p78
      %p80 = scmp.ne.s32.totalorder %s69, %s70
      %p81 = scmp.eq.s32.totalorder %s19, 0
      %p82 = por %p80, %p81
      %p83 = scmp.ne.s32.totalorder %s69, %s70
      %p84 = scmp.eq.s32.totalorder %s20, 1
      %p85 = por %p83, %p84
      %p87 = scmp.ne.s32.totalorder %s70, %s86
      %p88 = scmp.eq.s32.totalorder %s20, 0
      %p89 = por %p87, %p88
      %s91 = sadd.s32 %s90, 1
      %p94 = scmp.eq.s32.totalorder %s14, 1
      %p95 = scmp.ne.s32.totalorder %s90, %s92
      %p96 = scmp.eq.s32.totalorder %s14, 0
      %p97 = por %p95, %p96
      %p98 = scmp.ne.s32.totalorder %s90, %s92
      %p99 = scmp.eq.s32.totalorder %s19, 1
      %p100 = por %p98, %p99
      %p101 = scmp.ne.s32.totalorder %s92, %s93
      %p102 = scmp.eq.s32.totalorder %s19, 0
      %p103 = por %p101, %p102
      %p104 = scmp.ne.s32.totalorder %s92, %s93
      %p105 = scmp.eq.s32.totalorder %s20, 1
      %p106 = por %p104, %p105
      %p108 = scmp.ne.s32.totalorder %s93, %s107
      %p109 = scmp.eq.s32.totalorder %s20, 0
      %p110 = por %p108, %p109
      %s112 = sadd.s32 %s111, 1
      %p115 = scmp.eq.s32.totalorder %s14, 1
      %p116 = scmp.ne.s32.totalorder %s111, %s113
      %p117 = scmp.eq.s32.totalorder %s14, 0
      %p118 = por %p116, %p117
      %p119 = scmp.ne.s32.totalorder %s111, %s113
      %p120 = scmp.eq.s32.totalorder %s19, 1
      %p121 = por %p119, %p120
      %p122 = scmp.ne.s32.totalorder %s113, %s114
      %p123 = scmp.eq.s32.totalorder %s19, 0
      %p124 = por %p122, %p123
      %p125 = scmp.ne.s32.totalorder %s113, %s114
      %p126 = scmp.eq.s32.totalorder %s20, 1
      %p127 = por %p125, %p126
      %p129 = scmp.ne.s32.totalorder %s114, %s128
      %p130 = scmp.eq.s32.totalorder %s20, 0
      %p131 = por %p129, %p130
      %s133 = sadd.s32 %s132, 1
      %p136 = scmp.eq.s32.totalorder %s14, 1
      %p137 = scmp.ne.s32.totalorder %s132, %s134
      %p138 = scmp.eq.s32.totalorder %s14, 0
      %p139 = por %p137, %p138
      %p140 = scmp.ne.s32.totalorder %s132, %s134
      %p141 = scmp.eq.s32.totalorder %s19, 1
      %p142 = por %p140, %p141
      %p143 = scmp.ne.s32.totalorder %s134, %s135
      %p144 = scmp.eq.s32.totalorder %s19, 0
      %p145 = por %p143, %p144
      %p146 = scmp.ne.s32.totalorder %s134, %s135
      %p147 = scmp.eq.s32.totalorder %s20, 1
      %p148 = por %p146, %p147
      %p150 = scmp.ne.s32.totalorder %s135, %s149
      %p151 = scmp.eq.s32.totalorder %s20, 0
      %p152 = por %p150, %p151
      %s154 = sadd.s32 %s153, 1
      %p157 = scmp.eq.s32.totalorder %s14, 1
      %p158 = scmp.ne.s32.totalorder %s153, %s155
      %p159 = scmp.eq.s32.totalorder %s14, 0
      %p160 = por %p158, %p159
      %p161 = scmp.ne.s32.totalorder %s153, %s155
      %p162 = scmp.eq.s32.totalorder %s19, 1
      %p163 = por %p161, %p162
      %p164 = scmp.ne.s32.totalorder %s155, %s156
      %p165 = scmp.eq.s32.totalorder %s19, 0
      %p166 = por %p164, %p165
      %p167 = scmp.ne.s32.totalorder %s155, %s156
      %p168 = scmp.eq.s32.totalorder %s20, 1
      %p169 = por %p167, %p168
      %p171 = scmp.ne.s32.totalorder %s156, %s170
      %p172 = scmp.eq.s32.totalorder %s20, 0
      %p173 = por %p171, %p172
      %s175 = sadd.s32 %s174, 1
      %p178 = scmp.eq.s32.totalorder %s14, 1
      %p179 = scmp.ne.s32.totalorder %s174, %s176
      %p180 = scmp.eq.s32.totalorder %s14, 0
      %p181 = por %p179, %p180
      %p182 = scmp.ne.s32.totalorder %s174, %s176
      %p183 = scmp.eq.s32.totalorder %s19, 1
      %p184 = por %p182, %p183
      %p185 = scmp.ne.s32.totalorder %s176, %s177
      %p186 = scmp.eq.s32.totalorder %s19, 0
      %p187 = por %p185, %p186
      %p188 = scmp.ne.s32.totalorder %s176, %s177
      %p189 = scmp.eq.s32.totalorder %s20, 1
      %p190 = por %p188, %p189
      %p192 = scmp.ne.s32.totalorder %s177, %s191
      %p193 = scmp.eq.s32.totalorder %s20, 0
      %p194 = por %p192, %p193
      %s196 = sadd.s32 %s195, 1
      %p199 = scmp.eq.s32.totalorder %s14, 1
      %p200 = scmp.ne.s32.totalorder %s195, %s197
      %p201 = scmp.eq.s32.totalorder %s14, 0
      %p202 = por %p200, %p201
      %p203 = scmp.ne.s32.totalorder %s195, %s197
      %p204 = scmp.eq.s32.totalorder %s19, 1
      %p205 = por %p203, %p204
      %p206 = scmp.ne.s32.totalorder %s197, %s198
      %p207 = scmp.eq.s32.totalorder %s19, 0
      %p208 = por %p206, %p207
      %p209 = scmp.ne.s32.totalorder %s197, %s198
      %p210 = scmp.eq.s32.totalorder %s20, 1
      %p211 = por %p209, %p210
      %p213 = scmp.ne.s32.totalorder %s198, %s212
      %p214 = scmp.eq.s32.totalorder %s20, 0
      %p215 = por %p213, %p214
      %s216 = ssub.s32 %s21, %s33
      %s217 = ssub.s32 %s22, %s29
      %s218 = sor.u32 %s216, %s217
      %p219 = scmp.eq.s32.totalorder %s218, 0
      %s221 = sadd.s32 %s220, 1
      %s222 = scalar_select %p219, %s220, %s221
      %p225 = pneg %p219
      %p226 = scmp.eq.s32.totalorder %s14, 1
      %p227 = por %p225, %p226
      %p228 = scmp.ne.s32.totalorder %s220, %s223
      %p229 = scmp.eq.s32.totalorder %s14, 0
      %p230 = por %p228, %p229
      %p231 = scmp.ne.s32.totalorder %s220, %s223
      %p232 = scmp.eq.s32.totalorder %s19, 1
      %p233 = por %p231, %p232
      %p234 = scmp.ne.s32.totalorder %s223, %s224
      %p235 = scmp.eq.s32.totalorder %s19, 0
      %p236 = por %p234, %p235
      %p237 = scmp.ne.s32.totalorder %s223, %s224
      %p238 = scmp.eq.s32.totalorder %s20, 1
      %p239 = por %p237, %p238
      %p241 = scmp.ne.s32.totalorder %s224, %s240
      %p242 = scmp.eq.s32.totalorder %s20, 0
      %p243 = por %p241, %p242
      %p244 = scmp.le.s32.totalorder 1, %s14
      %p245 = scmp.lt.s32.totalorder %s14, 3
      %p246 = pnand %p244, %p245
      %p247 = pneg %p246
      // Predicated region
      $region9: #{fused_heads_forward.1} parent=5 // pred_check
        _
      $region10: #{fused_heads_forward.1} parent=5 // pred_check_branch
        %249 = sbr.rel (%p246) target = $region12
      $region11: #{fused_heads_forward.1} parent=5 // pred_region
        %s250 = ssub.s32 %s14, 1
        // Predicated region
        $region13: #{fused_heads_forward.1} parent=11 // pred_check
          %p251 = pneg %p103
        $region14: #{fused_heads_forward.1} parent=11 // pred_check_branch
          %253 = sbr.rel (%p251) target = $region16
        $region15: #{fused_heads_forward.1} parent=11 // pred_region
          _
        $region16: #{fused_heads_forward.1} parent=11 // pred_fallthru
          _
        // Predicated region
        $region17: #{fused_heads_forward.1} parent=11 // pred_check
          %p254 = pneg %p124
        $region18: #{fused_heads_forward.1} parent=11 // pred_check_branch
          %256 = sbr.rel (%p254) target = $region20
        $region19: #{fused_heads_forward.1} parent=11 // pred_region
          _
        $region20: #{fused_heads_forward.1} parent=11 // pred_fallthru
          _
        // Predicated region
        $region21: #{fused_heads_forward.1} parent=11 // pred_check
          %p257 = pneg %p145
        $region22: #{fused_heads_forward.1} parent=11 // pred_check_branch
          %259 = sbr.rel (%p257) target = $region24
        $region23: #{fused_heads_forward.1} parent=11 // pred_region
          _
        $region24: #{fused_heads_forward.1} parent=11 // pred_fallthru
          _
        // Predicated region
        $region25: #{fused_heads_forward.1} parent=11 // pred_check
          %p260 = pneg %p166
        $region26: #{fused_heads_forward.1} parent=11 // pred_check_branch
          %262 = sbr.rel (%p260) target = $region28
        $region27: #{fused_heads_forward.1} parent=11 // pred_region
          _
        $region28: #{fused_heads_forward.1} parent=11 // pred_fallthru
          _
        // Predicated region
        $region29: #{fused_heads_forward.1} parent=11 // pred_check
          %p263 = pneg %p187
        $region30: #{fused_heads_forward.1} parent=11 // pred_check_branch
          %265 = sbr.rel (%p263) target = $region32
        $region31: #{fused_heads_forward.1} parent=11 // pred_region
          _
        $region32: #{fused_heads_forward.1} parent=11 // pred_fallthru
          _
        // Predicated region
        $region33: #{fused_heads_forward.1} parent=11 // pred_check
          %p266 = pneg %p208
        $region34: #{fused_heads_forward.1} parent=11 // pred_check_branch
          %268 = sbr.rel (%p266) target = $region36
        $region35: #{fused_heads_forward.1} parent=11 // pred_region
          _
        $region36: #{fused_heads_forward.1} parent=11 // pred_fallthru
          _
      $region12: #{fused_heads_forward.1} parent=5 // pred_fallthru
        _
      %p269 = scmp.lt.s32.totalorder %s14, 2
      // Predicated region
      $region37: #{fused_heads_forward.1} parent=5 // pred_check
        %p270 = pneg %p269
      $region38: #{fused_heads_forward.1} parent=5 // pred_check_branch
        %272 = sbr.rel (%p270) target = $region40
      $region39: #{fused_heads_forward.1} parent=5 // pred_region
        // Predicated region
        $region41: #{fused_heads_forward.1} parent=39 // pred_check
          %p273 = pneg %p48
        $region42: #{fused_heads_forward.1} parent=39 // pred_check_branch
          %275 = sbr.rel (%p273) target = $region44
        $region43: #{fused_heads_forward.1} parent=39 // pred_region
          %s276 = sand.u32 %s38, 1
          %s277 = sand.u32 %s38, 1
          %s278 = smul.addr %s277, 48
          %s279 = scalar_lea.vmem [#allocation2], %s278
          %s280 = smul.u32 3, %s22
          %s281 = ssub.s32 4, %s280
          %p282 = scmp.lt.s32.totalorder %s281, 3
          %s283 = scalar_select %p282, %s281, 3
          %s284 = smul.u32 16, %s283
          %p285 = scmp.ne.s32.totalorder 0, %s284
          %s286 = smul.addr %s21, 16
          %s287 = sadd.s32 %s280, %s286
          %s288 = smul.addr %s287, 4
          %s289 = scalar_lea.vmem %s0, %s288
          %s290 = smul.u32 %s283, 4
          // Predicated region
          $region45: #{fused_heads_forward.1} parent=43 // pred_check
            %p291 = pneg %p285
          $region46: #{fused_heads_forward.1} parent=43 // pred_check_branch
            %293 = sbr.rel (%p291) target = $region48
          $region47: #{fused_heads_forward.1} parent=43 // pred_region
            %p294 = scmp.lt.u32.totalorder %s290, 8
            %p295 = pneg %p294
            // Predicated region
            $region49: #{fused_heads_forward.1} parent=47 // pred_check
              _
            $region50: #{fused_heads_forward.1} parent=47 // pred_check_branch
              %297 = sbr.rel (%p294) target = $region52
            $region51: #{fused_heads_forward.1} parent=47 // pred_region
              %s319 = sand.u32 %s290, 7
              %p320 = scmp.eq.s32.totalorder %s319, 0
              // Predicated region
              $region64: #{fused_heads_forward.1} parent=51 // pred_check
                %p321 = pneg %p320
              $region65: #{fused_heads_forward.1} parent=51 // pred_check_branch
                %323 = sbr.rel (%p321) target = $region67
              $region66: #{fused_heads_forward.1} parent=51 // pred_region
                %s324 = sshrl.u32 %s290, 3
                %s325 = sshrl.u32 %s324, 3
                // While loop
                $region68: #{fused_heads_forward.1} parent=66 // loop_pre_header
                  _
                $region69: #{fused_heads_forward.1} parent=66 // loop_header
                  %s327 = sphi 0, %s329
                  %p328 = scmp.ge.s32.totalorder %s327, %s325
                  %s332 = sphi 0, %s401
                  %s333 = sphi %s289, %s404
                  %s334 = sphi %s279, %s405
                $region70: #{fused_heads_forward.1} parent=66 // loop_header_branch
                  %331 = sbr.rel (%p328) target = $region74
                $region71: #{fused_heads_forward.1} parent=66 // loop_body
                  %v335 = vld [vmem:[%s333] sm:$0xff]
                  %336 = vst [vmem:[%s334] sm:$0xff] %v335
                  %v337 = vld [vmem:[%s333 + $0x8] sm:$0xff]
                  %338 = vst [vmem:[%s334 + $0x8] sm:$0xff] %v337
                  %v339 = vld [vmem:[%s333 + $0x10] sm:$0xff]
                  %340 = vst [vmem:[%s334 + $0x10] sm:$0xff] %v339
                  %v341 = vld [vmem:[%s333 + $0x18] sm:$0xff]
                  %342 = vst [vmem:[%s334 + $0x18] sm:$0xff] %v341
                  %v343 = vld [vmem:[%s333 + $0x20] sm:$0xff]
                  %344 = vst [vmem:[%s334 + $0x20] sm:$0xff] %v343
                  %v345 = vld [vmem:[%s333 + $0x28] sm:$0xff]
                  %346 = vst [vmem:[%s334 + $0x28] sm:$0xff] %v345
                  %v347 = vld [vmem:[%s333 + $0x30] sm:$0xff]
                  %348 = vst [vmem:[%s334 + $0x30] sm:$0xff] %v347
                  %v349 = vld [vmem:[%s333 + $0x38] sm:$0xff]
                  %350 = vst [vmem:[%s334 + $0x38] sm:$0xff] %v349
                  %v351 = vld [vmem:[%s333 + $0x10] sm:$0xff]
                  %352 = vst [vmem:[%s334 + $0xc] sm:$0xff] %v351
                  %v353 = vld [vmem:[%s333 + $0x18] sm:$0xff]
                  %354 = vst [vmem:[%s334 + $0x14] sm:$0xff] %v353
                  %v355 = vld [vmem:[%s333 + $0x20] sm:$0xff]
                  %356 = vst [vmem:[%s334 + $0x1c] sm:$0xff] %v355
                  %v357 = vld [vmem:[%s333 + $0x28] sm:$0xff]
                  %358 = vst [vmem:[%s334 + $0x24] sm:$0xff] %v357
                  %v359 = vld [vmem:[%s333 + $0x30] sm:$0xff]
                  %360 = vst [vmem:[%s334 + $0x2c] sm:$0xff] %v359
                  %v361 = vld [vmem:[%s333 + $0x38] sm:$0xff]
                  %362 = vst [vmem:[%s334 + $0x34] sm:$0xff] %v361
                  %v363 = vld [vmem:[%s333 + $0x40] sm:$0xff]
                  %364 = vst [vmem:[%s334 + $0x3c] sm:$0xff] %v363
                  %v365 = vld [vmem:[%s333 + $0x48] sm:$0xff]
                  %366 = vst [vmem:[%s334 + $0x44] sm:$0xff] %v365
                  %v367 = vld [vmem:[%s333 + $0x20] sm:$0xff]
                  %368 = vst [vmem:[%s334 + $0x18] sm:$0xff] %v367
                  %v369 = vld [vmem:[%s333 + $0x28] sm:$0xff]
                  %370 = vst [vmem:[%s334 + $0x20] sm:$0xff] %v369
                  %v371 = vld [vmem:[%s333 + $0x30] sm:$0xff]
                  %372 = vst [vmem:[%s334 + $0x28] sm:$0xff] %v371
                  %v373 = vld [vmem:[%s333 + $0x38] sm:$0xff]
                  %374 = vst [vmem:[%s334 + $0x30] sm:$0xff] %v373
                  %v375 = vld [vmem:[%s333 + $0x40] sm:$0xff]
                  %376 = vst [vmem:[%s334 + $0x38] sm:$0xff] %v375
                  %v377 = vld [vmem:[%s333 + $0x48] sm:$0xff]
                  %378 = vst [vmem:[%s334 + $0x40] sm:$0xff] %v377
                  %v379 = vld [vmem:[%s333 + $0x50] sm:$0xff]
                  %380 = vst [vmem:[%s334 + $0x48] sm:$0xff] %v379
                  %v381 = vld [vmem:[%s333 + $0x58] sm:$0xff]
                  %382 = vst [vmem:[%s334 + $0x50] sm:$0xff] %v381
                  %v383 = vld [vmem:[%s333 + $0x30] sm:$0xff]
                  %384 = vst [vmem:[%s334 + $0x24] sm:$0xff] %v383
                  %v385 = vld [vmem:[%s333 + $0x38] sm:$0xff]
                  %386 = vst [vmem:[%s334 + $0x2c] sm:$0xff] %v385
                  %v387 = vld [vmem:[%s333 + $0x40] sm:$0xff]
                  %388 = vst [vmem:[%s334 + $0x34] sm:$0xff] %v387
                  %v389 = vld [vmem:[%s333 + $0x48] sm:$0xff]
                  %390 = vst [vmem:[%s334 + $0x3c] sm:$0xff] %v389
                  %v391 = vld [vmem:[%s333 + $0x50] sm:$0xff]
                  %392 = vst [vmem:[%s334 + $0x44] sm:$0xff] %v391
                  %v393 = vld [vmem:[%s333 + $0x58] sm:$0xff]
                  %394 = vst [vmem:[%s334 + $0x4c] sm:$0xff] %v393
                  %v395 = vld [vmem:[%s333 + $0x60] sm:$0xff]
                  %396 = vst [vmem:[%s334 + $0x54] sm:$0xff] %v395
                  %v397 = vld [vmem:[%s333 + $0x68] sm:$0xff]
                  %398 = vst [vmem:[%s334 + $0x5c] sm:$0xff] %v397
                  %s399 = sadd.s32 1, %s332
                  %p400 = scmp.ge.s32.totalorder %s399, %s325
                  %s401 = scalar_select %p400, 0, %s399
                  %s402 = smul.u32 %s401, 64
                  %s403 = smul.u32 %s401, 64
                  %s404 = scalar_lea.vmem %s289, %s402
                  %s405 = scalar_lea.vmem %s279, %s403 [#allocation2]
                $region72: #{fused_heads_forward.1} parent=66 // loop_footer
                  %s329 = sadd.s32 %s327, 1
                $region73: #{fused_heads_forward.1} parent=66 // loop_footer_branch
                  %326 = sbr.rel target = $region69
                $region74: #{fused_heads_forward.1} parent=66 // loop_exit
                  _
                %s406 = sshrl.u32 %s324, 3
                %s407 = sand.u32 %s324, 7
                %s408 = smul.u32 %s406, 8
                %s409 = smul.u32 8, %s408
                %s410 = scalar_lea.vmem %s289, %s409
                %s411 = smul.u32 8, %s408
                %s412 = scalar_lea.vmem %s279, %s411 [#allocation2]
                // While loop
                $region75: #{fused_heads_forward.1} parent=66 // loop_pre_header
                  _
                $region76: #{fused_heads_forward.1} parent=66 // loop_header
                  %s414 = sphi 0, %s416
                  %p415 = scmp.ge.s32.totalorder %s414, %s407
                  %s419 = sphi 0, %s432
                  %s420 = sphi %s410, %s435
                  %s421 = sphi %s412, %s436
                $region77: #{fused_heads_forward.1} parent=66 // loop_header_branch
                  %418 = sbr.rel (%p415) target = $region81
                $region78: #{fused_heads_forward.1} parent=66 // loop_body
                  %v422 = vld [vmem:[%s420] sm:$0xff]
                  %423 = vst [vmem:[%s421] sm:$0xff] %v422
                  %v424 = vld [vmem:[%s420 + $0x10] sm:$0xff]
                  %425 = vst [vmem:[%s421 + $0xc] sm:$0xff] %v424
                  %v426 = vld [vmem:[%s420 + $0x20] sm:$0xff]
                  %427 = vst [vmem:[%s421 + $0x18] sm:$0xff] %v426
                  %v428 = vld [vmem:[%s420 + $0x30] sm:$0xff]
                  %429 = vst [vmem:[%s421 + $0x24] sm:$0xff] %v428
                  %s430 = sadd.s32 1, %s419
                  %p431 = scmp.ge.s32.totalorder %s430, %s407
                  %s432 = scalar_select %p431, 0, %s430
                  %s433 = smul.u32 %s432, 8
                  %s434 = smul.u32 %s432, 8
                  %s435 = scalar_lea.vmem %s410, %s433
                  %s436 = scalar_lea.vmem %s412, %s434 [#allocation2]
                $region79: #{fused_heads_forward.1} parent=66 // loop_footer
                  %s416 = sadd.s32 %s414, 1
                $region80: #{fused_heads_forward.1} parent=66 // loop_footer_branch
                  %413 = sbr.rel target = $region76
                $region81: #{fused_heads_forward.1} parent=66 // loop_exit
                  _
              $region67: #{fused_heads_forward.1} parent=51 // pred_fallthru
                _
              %p437 = pneg %p320
              // Predicated region
              $region82: #{fused_heads_forward.1} parent=51 // pred_check
                _
              $region83: #{fused_heads_forward.1} parent=51 // pred_check_branch
                %439 = sbr.rel (%p320) target = $region85
              $region84: #{fused_heads_forward.1} parent=51 // pred_region
                %s440 = sand.u32 %s290, 7
                %s441 = ssub.s32 %s290, %s440
                %s442 = scalar_lea.vmem %s289, %s441
                %s443 = ssub.s32 %s290, %s440
                %s444 = scalar_lea.vmem %s279, %s443 [#allocation2]
                %s445 = sshrl.u32 %s290, 3
                %s446 = sshrl.u32 %s445, 3
                // While loop
                $region86: #{fused_heads_forward.1} parent=84 // loop_pre_header
                  _
                $region87: #{fused_heads_forward.1} parent=84 // loop_header
                  %s448 = sphi 0, %s450
                  %p449 = scmp.ge.s32.totalorder %s448, %s446
                  %s453 = sphi 0, %s522
                  %s454 = sphi %s289, %s525
                  %s455 = sphi %s279, %s526
                $region88: #{fused_heads_forward.1} parent=84 // loop_header_branch
                  %452 = sbr.rel (%p449) target = $region92
                $region89: #{fused_heads_forward.1} parent=84 // loop_body
                  %v456 = vld [vmem:[%s454] sm:$0xff]
                  %457 = vst [vmem:[%s455] sm:$0xff] %v456
                  %v458 = vld [vmem:[%s454 + $0x8] sm:$0xff]
                  %459 = vst [vmem:[%s455 + $0x8] sm:$0xff] %v458
                  %v460 = vld [vmem:[%s454 + $0x10] sm:$0xff]
                  %461 = vst [vmem:[%s455 + $0x10] sm:$0xff] %v460
                  %v462 = vld [vmem:[%s454 + $0x18] sm:$0xff]
                  %463 = vst [vmem:[%s455 + $0x18] sm:$0xff] %v462
                  %v464 = vld [vmem:[%s454 + $0x20] sm:$0xff]
                  %465 = vst [vmem:[%s455 + $0x20] sm:$0xff] %v464
                  %v466 = vld [vmem:[%s454 + $0x28] sm:$0xff]
                  %467 = vst [vmem:[%s455 + $0x28] sm:$0xff] %v466
                  %v468 = vld [vmem:[%s454 + $0x30] sm:$0xff]
                  %469 = vst [vmem:[%s455 + $0x30] sm:$0xff] %v468
                  %v470 = vld [vmem:[%s454 + $0x38] sm:$0xff]
                  %471 = vst [vmem:[%s455 + $0x38] sm:$0xff] %v470
                  %v472 = vld [vmem:[%s454 + $0x10] sm:$0xff]
                  %473 = vst [vmem:[%s455 + $0xc] sm:$0xff] %v472
                  %v474 = vld [vmem:[%s454 + $0x18] sm:$0xff]
                  %475 = vst [vmem:[%s455 + $0x14] sm:$0xff] %v474
                  %v476 = vld [vmem:[%s454 + $0x20] sm:$0xff]
                  %477 = vst [vmem:[%s455 + $0x1c] sm:$0xff] %v476
                  %v478 = vld [vmem:[%s454 + $0x28] sm:$0xff]
                  %479 = vst [vmem:[%s455 + $0x24] sm:$0xff] %v478
                  %v480 = vld [vmem:[%s454 + $0x30] sm:$0xff]
                  %481 = vst [vmem:[%s455 + $0x2c] sm:$0xff] %v480
                  %v482 = vld [vmem:[%s454 + $0x38] sm:$0xff]
                  %483 = vst [vmem:[%s455 + $0x34] sm:$0xff] %v482
                  %v484 = vld [vmem:[%s454 + $0x40] sm:$0xff]
                  %485 = vst [vmem:[%s455 + $0x3c] sm:$0xff] %v484
                  %v486 = vld [vmem:[%s454 + $0x48] sm:$0xff]
                  %487 = vst [vmem:[%s455 + $0x44] sm:$0xff] %v486
                  %v488 = vld [vmem:[%s454 + $0x20] sm:$0xff]
                  %489 = vst [vmem:[%s455 + $0x18] sm:$0xff] %v488
                  %v490 = vld [vmem:[%s454 + $0x28] sm:$0xff]
                  %491 = vst [vmem:[%s455 + $0x20] sm:$0xff] %v490
                  %v492 = vld [vmem:[%s454 + $0x30] sm:$0xff]
                  %493 = vst [vmem:[%s455 + $0x28] sm:$0xff] %v492
                  %v494 = vld [vmem:[%s454 + $0x38] sm:$0xff]
                  %495 = vst [vmem:[%s455 + $0x30] sm:$0xff] %v494
                  %v496 = vld [vmem:[%s454 + $0x40] sm:$0xff]
                  %497 = vst [vmem:[%s455 + $0x38] sm:$0xff] %v496
                  %v498 = vld [vmem:[%s454 + $0x48] sm:$0xff]
                  %499 = vst [vmem:[%s455 + $0x40] sm:$0xff] %v498
                  %v500 = vld [vmem:[%s454 + $0x50] sm:$0xff]
                  %501 = vst [vmem:[%s455 + $0x48] sm:$0xff] %v500
                  %v502 = vld [vmem:[%s454 + $0x58] sm:$0xff]
                  %503 = vst [vmem:[%s455 + $0x50] sm:$0xff] %v502
                  %v504 = vld [vmem:[%s454 + $0x30] sm:$0xff]
                  %505 = vst [vmem:[%s455 + $0x24] sm:$0xff] %v504
                  %v506 = vld [vmem:[%s454 + $0x38] sm:$0xff]
                  %507 = vst [vmem:[%s455 + $0x2c] sm:$0xff] %v506
                  %v508 = vld [vmem:[%s454 + $0x40] sm:$0xff]
                  %509 = vst [vmem:[%s455 + $0x34] sm:$0xff] %v508
                  %v510 = vld [vmem:[%s454 + $0x48] sm:$0xff]
                  %511 = vst [vmem:[%s455 + $0x3c] sm:$0xff] %v510
                  %v512 = vld [vmem:[%s454 + $0x50] sm:$0xff]
                  %513 = vst [vmem:[%s455 + $0x44] sm:$0xff] %v512
                  %v514 = vld [vmem:[%s454 + $0x58] sm:$0xff]
                  %515 = vst [vmem:[%s455 + $0x4c] sm:$0xff] %v514
                  %v516 = vld [vmem:[%s454 + $0x60] sm:$0xff]
                  %517 = vst [vmem:[%s455 + $0x54] sm:$0xff] %v516
                  %v518 = vld [vmem:[%s454 + $0x68] sm:$0xff]
                  %519 = vst [vmem:[%s455 + $0x5c] sm:$0xff] %v518
                  %s520 = sadd.s32 1, %s453
                  %p521 = scmp.ge.s32.totalorder %s520, %s446
                  %s522 = scalar_select %p521, 0, %s520
                  %s523 = smul.u32 %s522, 64
                  %s524 = smul.u32 %s522, 64
                  %s525 = scalar_lea.vmem %s289, %s523
                  %s526 = scalar_lea.vmem %s279, %s524 [#allocation2]
                $region90: #{fused_heads_forward.1} parent=84 // loop_footer
                  %s450 = sadd.s32 %s448, 1
                $region91: #{fused_heads_forward.1} parent=84 // loop_footer_branch
                  %447 = sbr.rel target = $region87
                $region92: #{fused_heads_forward.1} parent=84 // loop_exit
                  _
                %s527 = sshrl.u32 %s445, 3
                %s528 = sand.u32 %s445, 7
                %s529 = smul.u32 %s527, 8
                %s530 = smul.u32 8, %s529
                %s531 = scalar_lea.vmem %s289, %s530
                %s532 = smul.u32 8, %s529
                %s533 = scalar_lea.vmem %s279, %s532 [#allocation2]
                // While loop
                $region93: #{fused_heads_forward.1} parent=84 // loop_pre_header
                  _
                $region94: #{fused_heads_forward.1} parent=84 // loop_header
                  %s535 = sphi 0, %s537
                  %p536 = scmp.ge.s32.totalorder %s535, %s528
                  %s540 = sphi 0, %s553
                  %s541 = sphi %s531, %s556
                  %s542 = sphi %s533, %s557
                $region95: #{fused_heads_forward.1} parent=84 // loop_header_branch
                  %539 = sbr.rel (%p536) target = $region99
                $region96: #{fused_heads_forward.1} parent=84 // loop_body
                  %v543 = vld [vmem:[%s541] sm:$0xff]
                  %544 = vst [vmem:[%s542] sm:$0xff] %v543
                  %v545 = vld [vmem:[%s541 + $0x10] sm:$0xff]
                  %546 = vst [vmem:[%s542 + $0xc] sm:$0xff] %v545
                  %v547 = vld [vmem:[%s541 + $0x20] sm:$0xff]
                  %548 = vst [vmem:[%s542 + $0x18] sm:$0xff] %v547
                  %v549 = vld [vmem:[%s541 + $0x30] sm:$0xff]
                  %550 = vst [vmem:[%s542 + $0x24] sm:$0xff] %v549
                  %s551 = sadd.s32 1, %s540
                  %p552 = scmp.ge.s32.totalorder %s551, %s528
                  %s553 = scalar_select %p552, 0, %s551
                  %s554 = smul.u32 %s553, 8
                  %s555 = smul.u32 %s553, 8
                  %s556 = scalar_lea.vmem %s531, %s554
                  %s557 = scalar_lea.vmem %s533, %s555 [#allocation2]
                $region97: #{fused_heads_forward.1} parent=84 // loop_footer
                  %s537 = sadd.s32 %s535, 1
                $region98: #{fused_heads_forward.1} parent=84 // loop_footer_branch
                  %534 = sbr.rel target = $region94
                $region99: #{fused_heads_forward.1} parent=84 // loop_exit
                  _
                %s558 = sshll.u32 1, %s440
                %s559 = ssub.s32 %s558, 1
                loop: start=0, step=1, limit=1
                $region100: #{fused_heads_forward.1} parent=84 // loop_pre_header
                  _
                $region101: #{fused_heads_forward.1} parent=84 // loop_header
                  %s561 = sphi 0, %s565
                  %p562 = scmp.ge.s32.totalorder %s561, 1
                  %s566 = sphi %s442, %s442
                  %s567 = sphi %s444, %s444
                $region102: #{fused_heads_forward.1} parent=84 // loop_header_branch
                  %564 = sbr.rel (%p562) target = $region106
                $region103: #{fused_heads_forward.1} parent=84 // loop_body
                  %v568 = vld [vmem:[%s566] sm:%s559]
                  %569 = vst [vmem:[%s567] sm:%s559] %v568
                  %v570 = vld [vmem:[%s566 + $0x10] sm:%s559]
                  %571 = vst [vmem:[%s567 + $0xc] sm:%s559] %v570
                  %v572 = vld [vmem:[%s566 + $0x20] sm:%s559]
                  %573 = vst [vmem:[%s567 + $0x18] sm:%s559] %v572
                  %v574 = vld [vmem:[%s566 + $0x30] sm:%s559]
                  %575 = vst [vmem:[%s567 + $0x24] sm:%s559] %v574
                $region104: #{fused_heads_forward.1} parent=84 // loop_footer
                  %s565 = sadd.s32 1, %s561
                $region105: #{fused_heads_forward.1} parent=84 // loop_footer_branch
                  %560 = sbr.rel target = $region101
                $region106: #{fused_heads_forward.1} parent=84 // loop_exit
                  _
              $region85: #{fused_heads_forward.1} parent=51 // pred_fallthru
                _
            $region52: #{fused_heads_forward.1} parent=47 // pred_fallthru
              _
            // Predicated region
            $region53: #{fused_heads_forward.1} parent=47 // pred_check
              %p298 = pneg %p294
            $region54: #{fused_heads_forward.1} parent=47 // pred_check_branch
              %300 = sbr.rel (%p298) target = $region56
            $region55: #{fused_heads_forward.1} parent=47 // pred_region
              %s301 = sshll.u32 1, %s290
              %s302 = ssub.s32 %s301, 1
              loop: start=0, step=1, limit=1
              $region57: #{fused_heads_forward.1} parent=55 // loop_pre_header
                _
              $region58: #{fused_heads_forward.1} parent=55 // loop_header
                %s304 = sphi 0, %s308
                %p305 = scmp.ge.s32.totalorder %s304, 1
                %s309 = sphi %s289, %s289
                %s310 = sphi %s279, %s279
              $region59: #{fused_heads_forward.1} parent=55 // loop_header_branch
                %307 = sbr.rel (%p305) target = $region63
              $region60: #{fused_heads_forward.1} parent=55 // loop_body
                %v311 = vld [vmem:[%s309] sm:%s302]
                %312 = vst [vmem:[%s310] sm:%s302] %v311
                %v313 = vld [vmem:[%s309 + $0x10] sm:%s302]
                %314 = vst [vmem:[%s310 + $0xc] sm:%s302] %v313
                %v315 = vld [vmem:[%s309 + $0x20] sm:%s302]
                %316 = vst [vmem:[%s310 + $0x18] sm:%s302] %v315
                %v317 = vld [vmem:[%s309 + $0x30] sm:%s302]
                %318 = vst [vmem:[%s310 + $0x24] sm:%s302] %v317
              $region61: #{fused_heads_forward.1} parent=55 // loop_footer
                %s308 = sadd.s32 1, %s304
              $region62: #{fused_heads_forward.1} parent=55 // loop_footer_branch
                %303 = sbr.rel target = $region58
              $region63: #{fused_heads_forward.1} parent=55 // loop_exit
                _
            $region56: #{fused_heads_forward.1} parent=47 // pred_fallthru
              _
          $region48: #{fused_heads_forward.1} parent=43 // pred_fallthru
            _
          %576 = vnop
        $region44: #{fused_heads_forward.1} parent=39 // pred_fallthru
          _
        // Predicated region
        $region107: #{fused_heads_forward.1} parent=39 // pred_check
          %p577 = pneg %p76
        $region108: #{fused_heads_forward.1} parent=39 // pred_check_branch
          %579 = sbr.rel (%p577) target = $region110
        $region109: #{fused_heads_forward.1} parent=39 // pred_region
          %p580 = scmp.lt.s32.totalorder %s21, 1
          %s581 = scalar_select %p580, %s21, 1
          %p582 = scmp.lt.s32.totalorder %s22, 0
          %s583 = scalar_select %p582, %s22, 0
          %s584 = smul.addr %s583, 4
          %s585 = smul.addr %s581, 4
          %s586 = sadd.s32 %s584, %s585
          %s587 = smul.addr %s586, 4
          %s588 = scalar_lea.vmem %s1, %s587
        $region110: #{fused_heads_forward.1} parent=39 // pred_fallthru
          _
      $region40: #{fused_heads_forward.1} parent=5 // pred_fallthru
        _
      %p589 = scmp.le.s32.totalorder 1, %s14
      %p590 = scmp.lt.s32.totalorder %s14, 3
      %p591 = pnand %p589, %p590
      %p592 = pneg %p591
      // Predicated region
      $region111: #{fused_heads_forward.1} parent=5 // pred_check
        _
      $region112: #{fused_heads_forward.1} parent=5 // pred_check_branch
        %594 = sbr.rel (%p591) target = $region114
      $region113: #{fused_heads_forward.1} parent=5 // pred_region
        %s595 = ssub.s32 %s14, 1
        %s596 = sand.u32 %s41, 1
        %s597 = sand.u32 %s41, 1
        %s598 = smul.addr %s597, 48
        %s599 = scalar_lea.vmem [#allocation2], %s598
        // Predicated region
        $region115: #{fused_heads_forward.1} parent=113 // pred_check
          %p600 = pneg %p54
        $region116: #{fused_heads_forward.1} parent=113 // pred_check_branch
          %602 = sbr.rel (%p600) target = $region118
        $region117: #{fused_heads_forward.1} parent=113 // pred_region
          _
        $region118: #{fused_heads_forward.1} parent=113 // pred_fallthru
          _
        %s603 = sand.u32 %s41, 1
        %s604 = sand.u32 %s41, 1
        %s605 = smul.addr %s604, 48
        %s606 = scalar_lea.vmem [#allocation2], %s605
        %p607 = pneg %p54
        %p608 = pneg %p51
        %p609 = scmp.lt.s32.totalorder %s23, 1
        %s610 = scalar_select %p609, %s23, 1
        %p611 = scmp.lt.s32.totalorder %s24, 0
        %s612 = scalar_select %p611, %s24, 0
        %s613 = smul.addr %s612, 4
        %s614 = smul.addr %s610, 4
        %s615 = sadd.s32 %s613, %s614
        %s616 = smul.addr %s615, 4
        %s617 = scalar_lea.vmem %s1, %s616
        %p618 = pneg %p82
        %p619 = pneg %p79
        %p620 = pneg %p103
        %p621 = pneg %p100
        %p622 = pneg %p124
        %p623 = pneg %p121
        %p624 = pneg %p145
        %p625 = pneg %p142
        %p626 = pneg %p166
        %p627 = pneg %p163
        %p628 = pneg %p187
        %p629 = pneg %p184
        %p630 = pneg %p208
        %p631 = pneg %p205
        %p632 = pneg %p236
        %p633 = pneg %p233
        %s634 = smul.u32 3, %s24
        %p635 = scmp.lt.s32.totalorder %s23, 1
        %s636 = scalar_select %p635, %s23, 1
        %p637 = scmp.lt.s32.totalorder %s634, 2
        %s638 = scalar_select %p637, %s634, 2
        %s639 = smul.addr %s636, 3
        %s640 = sadd.s32 %s638, %s639
        %s641 = smul.addr %s640, 8
        %s642 = scalar_lea.vmem %s8, %s641
        %s643 = smul.u32 3, %s24
        %s644 = ssub.s32 4, %s643
        %p645 = scmp.lt.s32.totalorder %s644, 3
        %s646 = scalar_select %p645, %s644, 3
        %s647 = smul.u32 16, %s646
        %p648 = scmp.lt.s32.totalorder %s23, 1
        %s649 = scalar_select %p648, %s23, 1
        %p650 = scmp.lt.s32.totalorder %s24, 0
        %s651 = scalar_select %p650, %s24, 0
        %s652 = smul.addr %s651, 4
        %s653 = smul.addr %s649, 4
        %s654 = sadd.s32 %s652, %s653
        %s655 = smul.addr %s654, 4
        %s656 = scalar_lea.vmem %s1, %s655
        %s657 = smul.u32 3, %s24
        %p658 = scmp.lt.s32.totalorder %s23, 1
        %s659 = scalar_select %p658, %s23, 1
        %p660 = scmp.lt.s32.totalorder %s657, 2
        %s661 = scalar_select %p660, %s657, 2
        %s662 = smul.addr %s659, 3
        %s663 = sadd.s32 %s661, %s662
        %s664 = smul.addr %s663, 8
        %s665 = scalar_lea.vmem %s8, %s664
        %s666 = smul.u32 3, %s24
        %v668 = vld [vmem:[%s599] sm:$0xff]
        %v669 = vld [vmem:[%s599 + $0x8] sm:$0xf]
        %v670 = vld [vmem:[%s599 + $0xc] sm:$0xff]
        %v671 = vld [vmem:[%s599 + $0x14] sm:$0xf]
        %v672 = vld [vmem:[%s599 + $0x18] sm:$0xff]
        %v673 = vld [vmem:[%s599 + $0x20] sm:$0xf]
        %v674 = vld [vmem:[%s599 + $0x24] sm:$0xff]
        %v675 = vld [vmem:[%s599 + $0x2c] sm:$0xf]
        %v676 = vld [vmem:[%s656] sm:$0xf]
        %v677 = vld [vmem:[%s656 + $0x4] sm:$0xf]
        %v678 = vld [vmem:[%s656 + $0x8] sm:$0xf]
        %v679 = vld [vmem:[%s656 + $0xc] sm:$0xf]
        %v688 = vunpack.c.l.b16 %v668
        %v689 = vunpack.c.h.b16 %v668
        %v690 = vunpack.c.l.b16 %v669
        %v691 = vunpack.c.l.b16 %v670
        %v692 = vunpack.c.h.b16 %v670
        %v693 = vunpack.c.l.b16 %v671
        %v694 = vunpack.c.l.b16 %v672
        %v695 = vunpack.c.h.b16 %v672
        %v696 = vunpack.c.l.b16 %v673
        %v697 = vunpack.c.l.b16 %v674
        %v698 = vunpack.c.h.b16 %v674
        %v699 = vunpack.c.l.b16 %v675
        %v700 = vpack.c.b16 %v691, %v688
        %v701 = vpack.c.b16 %v692, %v689
        %v702 = vpack.c.b16 %v693, %v690
        %v703 = vpack.c.b16 %v697, %v694
        %v704 = vpack.c.b16 %v698, %v695
        %v705 = vpack.c.b16 %v699, %v696
        %v716 = vunpack.c.l.b16 %v676
        %v717 = vunpack.c.l.b16 %v677
        %v718 = vunpack.c.l.b16 %v678
        %v719 = vunpack.c.l.b16 %v679
        %v720 = vpack.c.b16 %v717, %v716
        %v721 = vpack.c.b16 %v719, %v718
        %v722 = vld [vmem:[%s2] sm:$0xf]
        %v723 = vld [vmem:[%s2 + $0x4] sm:$0xf]
        %v724 = vld [vmem:[%s2 + $0x8] sm:$0xf]
        %v725 = vld [vmem:[%s2 + $0xc] sm:$0xf]
        %v726 = vld [vmem:[%s2 + $0x10] sm:$0xf]
        %v727 = vld [vmem:[%s2 + $0x14] sm:$0xf]
        %v728 = vld [vmem:[%s2 + $0x18] sm:$0xf]
        %v729 = vld [vmem:[%s2 + $0x1c] sm:$0xf]
        %v730 = vld [vmem:[%s2 + $0x20] sm:$0xf]
        %v731 = vld [vmem:[%s2 + $0x24] sm:$0xf]
        %v732 = vld [vmem:[%s2 + $0x28] sm:$0xf]
        %v733 = vld [vmem:[%s2 + $0x2c] sm:$0xf]
        %s734 = scalar_lea.vmem %s2, 48
        %v735 = vld [vmem:[%s734] sm:$0xf]
        %v736 = vld [vmem:[%s734 + $0x4] sm:$0xf]
        %v737 = vld [vmem:[%s734 + $0x8] sm:$0xf]
        %v738 = vld [vmem:[%s734 + $0xc] sm:$0xf]
        %v739 = vld [vmem:[%s734 + $0x10] sm:$0xf]
        %v740 = vld [vmem:[%s734 + $0x14] sm:$0xf]
        %v741 = vld [vmem:[%s734 + $0x18] sm:$0xf]
        %v742 = vld [vmem:[%s734 + $0x1c] sm:$0xf]
        %v743 = vld [vmem:[%s734 + $0x20] sm:$0xf]
        %v744 = vld [vmem:[%s734 + $0x24] sm:$0xf]
        %v745 = vld [vmem:[%s734 + $0x28] sm:$0xf]
        %v746 = vld [vmem:[%s734 + $0x2c] sm:$0xf]
        %v759 = vunpack.c.l.b16 %v735
        %v760 = vunpack.c.l.b16 %v736
        %v761 = vunpack.c.l.b16 %v737
        %v762 = vunpack.c.l.b16 %v738
        %v763 = vunpack.c.l.b16 %v739
        %v764 = vunpack.c.l.b16 %v740
        %v765 = vunpack.c.l.b16 %v741
        %v766 = vunpack.c.l.b16 %v742
        %v767 = vunpack.c.l.b16 %v743
        %v768 = vunpack.c.l.b16 %v744
        %v769 = vunpack.c.l.b16 %v745
        %v770 = vunpack.c.l.b16 %v746
        %v771 = vpack.c.b16 %v760, %v759
        %v772 = vpack.c.b16 %v762, %v761
        %v773 = vpack.c.b16 %v764, %v763
        %v774 = vpack.c.b16 %v766, %v765
        %v775 = vpack.c.b16 %v768, %v767
        %v776 = vpack.c.b16 %v770, %v769
        %777 = vrot.lane.b32.xlu0 %v700, 127
        %v778 = vpop.permute.xlu0 %777
        %779 = vrot.lane.b32.xlu0 %v701, 127
        %v780 = vpop.permute.xlu0 %779
        %781 = vrot.lane.b32.xlu0 %v702, 127
        %v782 = vpop.permute.xlu0 %781
        %783 = vrot.lane.b32.xlu0 %v720, 127
        %v784 = vpop.permute.xlu0 %783
        %785 = vrot.lane.b32.xlu0 %v703, 127
        %v786 = vpop.permute.xlu0 %785
        %787 = vrot.lane.b32.xlu0 %v704, 127
        %v788 = vpop.permute.xlu0 %787
        %789 = vrot.lane.b32.xlu0 %v705, 127
        %v790 = vpop.permute.xlu0 %789
        %791 = vrot.lane.b32.xlu0 %v721, 127
        %v792 = vpop.permute.xlu0 %791
        %vm793 = vcmask 1039360
        %v794 = vsel %vm793, %v778, %v780
        %v795 = vsel %vm793, %v780, %v782
        %v796 = vsel %vm793, %v782, %v784
        %v797 = vsel %vm793, %v786, %v788
        %v798 = vsel %vm793, %v788, %v790
        %v799 = vsel %vm793, %v790, %v792
        %vm806 = vcmask 261120
        %v808 = vsel %vm806, %v771, 0
        %v811 = vsel %vm806, %v772, 0
        %v814 = vsel %vm806, %v773, 0
        %v817 = vsel %vm806, %v774, 0
        %v820 = vsel %vm806, %v775, 0
        %v823 = vsel %vm806, %v776, 0
        %825 = vmatpush.bf16.msra.mxu0 0
        %826 = vmatpush.bf16.msra.mxu0 0
        %827 = vmatpush.bf16.msra.mxu0 0
        %828 = vmatpush.bf16.msra.mxu0 0
        %829 = vmatpush.bf16.msra.mxu0 0
        %830 = vmatpush.bf16.msra.mxu0 0
        %831 = vmatpush.bf16.msra.mxu0 %v797
        %832 = vmatpush.bf16.msra.mxu0 %v794
        %833 = vmatmul.bf16.gmra.mxu0 %v808
        %v834 = vpop.f32.mrf.mxu0
        %v835 = vadd.f32 0.0, %v834
        %v836 = vpop.f32.mrf.mxu0
        %v837 = vadd.f32 0.0, %v836
        %838 = vmatmul.bf16.gmra.mxu0 %v811
        %v839 = vpop.f32.mrf.mxu0
        %v840 = vadd.f32 0.0, %v839
        %v841 = vpop.f32.mrf.mxu0
        %v842 = vadd.f32 0.0, %v841
        %843 = vmatmul.bf16.gmra.mxu0 %v814
        %v844 = vpop.f32.mrf.mxu0
        %v845 = vadd.f32 0.0, %v844
        %v846 = vpop.f32.mrf.mxu0
        %v847 = vadd.f32 0.0, %v846
        %848 = vmatmul.bf16.gmra.mxu0 %v817
        %v849 = vpop.f32.mrf.mxu0
        %v850 = vadd.f32 0.0, %v849
        %v851 = vpop.f32.mrf.mxu0
        %v852 = vadd.f32 0.0, %v851
        %853 = vmatmul.bf16.gmra.mxu0 %v820
        %v854 = vpop.f32.mrf.mxu0
        %v855 = vadd.f32 0.0, %v854
        %v856 = vpop.f32.mrf.mxu0
        %v857 = vadd.f32 0.0, %v856
        %858 = vmatmul.bf16.gmra.mxu0 %v823
        %v859 = vpop.f32.mrf.mxu0
        %v860 = vadd.f32 0.0, %v859
        %v861 = vpop.f32.mrf.mxu0
        %v862 = vadd.f32 0.0, %v861
        %863 = vdwg.mxu0
        %864 = vmatpush.bf16.msra.mxu0 0
        %865 = vmatpush.bf16.msra.mxu0 0
        %866 = vmatpush.bf16.msra.mxu0 0
        %867 = vmatpush.bf16.msra.mxu0 0
        %868 = vmatpush.bf16.msra.mxu0 0
        %869 = vmatpush.bf16.msra.mxu0 0
        %870 = vmatpush.bf16.msra.mxu0 %v798
        %871 = vmatpush.bf16.msra.mxu0 %v795
        %872 = vmatmul.bf16.gmra.mxu0 %v808
        %v873 = vpop.f32.mrf.mxu0
        %v874 = vadd.f32 0.0, %v873
        %v875 = vpop.f32.mrf.mxu0
        %v876 = vadd.f32 0.0, %v875
        %877 = vmatmul.bf16.gmra.mxu0 %v811
        %v878 = vpop.f32.mrf.mxu0
        %v879 = vadd.f32 0.0, %v878
        %v880 = vpop.f32.mrf.mxu0
        %v881 = vadd.f32 0.0, %v880
        %882 = vmatmul.bf16.gmra.mxu0 %v814
        %v883 = vpop.f32.mrf.mxu0
        %v884 = vadd.f32 0.0, %v883
        %v885 = vpop.f32.mrf.mxu0
        %v886 = vadd.f32 0.0, %v885
        %887 = vmatmul.bf16.gmra.mxu0 %v817
        %v888 = vpop.f32.mrf.mxu0
        %v889 = vadd.f32 0.0, %v888
        %v890 = vpop.f32.mrf.mxu0
        %v891 = vadd.f32 0.0, %v890
        %892 = vmatmul.bf16.gmra.mxu0 %v820
        %v893 = vpop.f32.mrf.mxu0
        %v894 = vadd.f32 0.0, %v893
        %v895 = vpop.f32.mrf.mxu0
        %v896 = vadd.f32 0.0, %v895
        %897 = vmatmul.bf16.gmra.mxu0 %v823
        %v898 = vpop.f32.mrf.mxu0
        %v899 = vadd.f32 0.0, %v898
        %v900 = vpop.f32.mrf.mxu0
        %v901 = vadd.f32 0.0, %v900
        %902 = vdwg.mxu0
        %903 = vmatpush.bf16.msra.mxu0 0
        %904 = vmatpush.bf16.msra.mxu0 0
        %905 = vmatpush.bf16.msra.mxu0 0
        %906 = vmatpush.bf16.msra.mxu0 0
        %907 = vmatpush.bf16.msra.mxu0 0
        %908 = vmatpush.bf16.msra.mxu0 0
        %909 = vmatpush.bf16.msra.mxu0 %v799
        %910 = vmatpush.bf16.msra.mxu0 %v796
        %911 = vmatmul.bf16.gmra.mxu0 %v808
        %v912 = vpop.f32.mrf.mxu0
        %v913 = vadd.f32 0.0, %v912
        %v914 = vpop.f32.mrf.mxu0
        %v915 = vadd.f32 0.0, %v914
        %916 = vmatmul.bf16.gmra.mxu0 %v811
        %v917 = vpop.f32.mrf.mxu0
        %v918 = vadd.f32 0.0, %v917
        %v919 = vpop.f32.mrf.mxu0
        %v920 = vadd.f32 0.0, %v919
        %921 = vmatmul.bf16.gmra.mxu0 %v814
        %v922 = vpop.f32.mrf.mxu0
        %v923 = vadd.f32 0.0, %v922
        %v924 = vpop.f32.mrf.mxu0
        %v925 = vadd.f32 0.0, %v924
        %926 = vmatmul.bf16.gmra.mxu0 %v817
        %v927 = vpop.f32.mrf.mxu0
        %v928 = vadd.f32 0.0, %v927
        %v929 = vpop.f32.mrf.mxu0
        %v930 = vadd.f32 0.0, %v929
        %931 = vmatmul.bf16.gmra.mxu0 %v820
        %v932 = vpop.f32.mrf.mxu0
        %v933 = vadd.f32 0.0, %v932
        %v934 = vpop.f32.mrf.mxu0
        %v935 = vadd.f32 0.0, %v934
        %936 = vmatmul.bf16.gmra.mxu0 %v823
        %v937 = vpop.f32.mrf.mxu0
        %v938 = vadd.f32 0.0, %v937
        %v939 = vpop.f32.mrf.mxu0
        %v940 = vadd.f32 0.0, %v939
        %941 = vdwg.mxu0
        %v954 = vunpack.c.l.b16 %v722
        %v955 = vunpack.c.l.b16 %v723
        %v956 = vunpack.c.l.b16 %v724
        %v957 = vunpack.c.l.b16 %v725
        %v958 = vunpack.c.l.b16 %v726
        %v959 = vunpack.c.l.b16 %v727
        %v960 = vunpack.c.l.b16 %v728
        %v961 = vunpack.c.l.b16 %v729
        %v962 = vunpack.c.l.b16 %v730
        %v963 = vunpack.c.l.b16 %v731
        %v964 = vunpack.c.l.b16 %v732
        %v965 = vunpack.c.l.b16 %v733
        %v966 = vpack.c.b16 %v955, %v954
        %v967 = vpack.c.b16 %v957, %v956
        %v968 = vpack.c.b16 %v959, %v958
        %v969 = vpack.c.b16 %v961, %v960
        %v970 = vpack.c.b16 %v963, %v962
        %v971 = vpack.c.b16 %v965, %v964
        %v973 = vsel %vm806, %v966, 0
        %v976 = vsel %vm806, %v967, 0
        %v979 = vsel %vm806, %v968, 0
        %v982 = vsel %vm806, %v969, 0
        %v985 = vsel %vm806, %v970, 0
        %v988 = vsel %vm806, %v971, 0
        %990 = vmatpush.bf16.msra.mxu0 0
        %991 = vmatpush.bf16.msra.mxu0 0
        %992 = vmatpush.bf16.msra.mxu0 0
        %993 = vmatpush.bf16.msra.mxu0 0
        %994 = vmatpush.bf16.msra.mxu0 0
        %995 = vmatpush.bf16.msra.mxu0 0
        %996 = vmatpush.bf16.msra.mxu0 %v703
        %997 = vmatpush.bf16.msra.mxu0 %v700
        %998 = vmatmul.bf16.gmra.mxu0 %v973
        %v999 = vpop.f32.mrf.mxu0
        %v1000 = vadd.f32 %v835, %v999
        %v1001 = vpop.f32.mrf.mxu0
        %v1002 = vadd.f32 %v837, %v1001
        %1003 = vmatmul.bf16.gmra.mxu0 %v976
        %v1004 = vpop.f32.mrf.mxu0
        %v1005 = vadd.f32 %v840, %v1004
        %v1006 = vpop.f32.mrf.mxu0
        %v1007 = vadd.f32 %v842, %v1006
        %1008 = vmatmul.bf16.gmra.mxu0 %v979
        %v1009 = vpop.f32.mrf.mxu0
        %v1010 = vadd.f32 %v845, %v1009
        %v1011 = vpop.f32.mrf.mxu0
        %v1012 = vadd.f32 %v847, %v1011
        %1013 = vmatmul.bf16.gmra.mxu0 %v982
        %v1014 = vpop.f32.mrf.mxu0
        %v1015 = vadd.f32 %v850, %v1014
        %v1016 = vpop.f32.mrf.mxu0
        %v1017 = vadd.f32 %v852, %v1016
        %1018 = vmatmul.bf16.gmra.mxu0 %v985
        %v1019 = vpop.f32.mrf.mxu0
        %v1020 = vadd.f32 %v855, %v1019
        %v1021 = vpop.f32.mrf.mxu0
        %v1022 = vadd.f32 %v857, %v1021
        %1023 = vmatmul.bf16.gmra.mxu0 %v988
        %v1024 = vpop.f32.mrf.mxu0
        %v1025 = vadd.f32 %v860, %v1024
        %v1026 = vpop.f32.mrf.mxu0
        %v1027 = vadd.f32 %v862, %v1026
        %1028 = vdwg.mxu0
        %1029 = vmatpush.bf16.msra.mxu0 0
        %1030 = vmatpush.bf16.msra.mxu0 0
        %1031 = vmatpush.bf16.msra.mxu0 0
        %1032 = vmatpush.bf16.msra.mxu0 0
        %1033 = vmatpush.bf16.msra.mxu0 0
        %1034 = vmatpush.bf16.msra.mxu0 0
        %1035 = vmatpush.bf16.msra.mxu0 %v704
        %1036 = vmatpush.bf16.msra.mxu0 %v701
        %1037 = vmatmul.bf16.gmra.mxu0 %v973
        %v1038 = vpop.f32.mrf.mxu0
        %v1039 = vadd.f32 %v874, %v1038
        %v1040 = vpop.f32.mrf.mxu0
        %v1041 = vadd.f32 %v876, %v1040
        %1042 = vmatmul.bf16.gmra.mxu0 %v976
        %v1043 = vpop.f32.mrf.mxu0
        %v1044 = vadd.f32 %v879, %v1043
        %v1045 = vpop.f32.mrf.mxu0
        %v1046 = vadd.f32 %v881, %v1045
        %1047 = vmatmul.bf16.gmra.mxu0 %v979
        %v1048 = vpop.f32.mrf.mxu0
        %v1049 = vadd.f32 %v884, %v1048
        %v1050 = vpop.f32.mrf.mxu0
        %v1051 = vadd.f32 %v886, %v1050
        %1052 = vmatmul.bf16.gmra.mxu0 %v982
        %v1053 = vpop.f32.mrf.mxu0
        %v1054 = vadd.f32 %v889, %v1053
        %v1055 = vpop.f32.mrf.mxu0
        %v1056 = vadd.f32 %v891, %v1055
        %1057 = vmatmul.bf16.gmra.mxu0 %v985
        %v1058 = vpop.f32.mrf.mxu0
        %v1059 = vadd.f32 %v894, %v1058
        %v1060 = vpop.f32.mrf.mxu0
        %v1061 = vadd.f32 %v896, %v1060
        %1062 = vmatmul.bf16.gmra.mxu0 %v988
        %v1063 = vpop.f32.mrf.mxu0
        %v1064 = vadd.f32 %v899, %v1063
        %v1065 = vpop.f32.mrf.mxu0
        %v1066 = vadd.f32 %v901, %v1065
        %1067 = vdwg.mxu0
        %1068 = vmatpush.bf16.msra.mxu0 0
        %1069 = vmatpush.bf16.msra.mxu0 0
        %1070 = vmatpush.bf16.msra.mxu0 0
        %1071 = vmatpush.bf16.msra.mxu0 0
        %1072 = vmatpush.bf16.msra.mxu0 0
        %1073 = vmatpush.bf16.msra.mxu0 0
        %1074 = vmatpush.bf16.msra.mxu0 %v705
        %1075 = vmatpush.bf16.msra.mxu0 %v702
        %1076 = vmatmul.bf16.gmra.mxu0 %v973
        %v1077 = vpop.f32.mrf.mxu0
        %v1078 = vadd.f32 %v913, %v1077
        %v1079 = vpop.f32.mrf.mxu0
        %v1080 = vadd.f32 %v915, %v1079
        %1081 = vmatmul.bf16.gmra.mxu0 %v976
        %v1082 = vpop.f32.mrf.mxu0
        %v1083 = vadd.f32 %v918, %v1082
        %v1084 = vpop.f32.mrf.mxu0
        %v1085 = vadd.f32 %v920, %v1084
        %1086 = vmatmul.bf16.gmra.mxu0 %v979
        %v1087 = vpop.f32.mrf.mxu0
        %v1088 = vadd.f32 %v923, %v1087
        %v1089 = vpop.f32.mrf.mxu0
        %v1090 = vadd.f32 %v925, %v1089
        %1091 = vmatmul.bf16.gmra.mxu0 %v982
        %v1092 = vpop.f32.mrf.mxu0
        %v1093 = vadd.f32 %v928, %v1092
        %v1094 = vpop.f32.mrf.mxu0
        %v1095 = vadd.f32 %v930, %v1094
        %1096 = vmatmul.bf16.gmra.mxu0 %v985
        %v1097 = vpop.f32.mrf.mxu0
        %v1098 = vadd.f32 %v933, %v1097
        %v1099 = vpop.f32.mrf.mxu0
        %v1100 = vadd.f32 %v935, %v1099
        %1101 = vmatmul.bf16.gmra.mxu0 %v988
        %v1102 = vpop.f32.mrf.mxu0
        %v1103 = vadd.f32 %v938, %v1102
        %v1104 = vpop.f32.mrf.mxu0
        %v1105 = vadd.f32 %v940, %v1104
        %1106 = vdwg.mxu0
        %s1107 = scalar_lea.vmem %s2, 96
        %v1108 = vld [vmem:[%s1107] sm:$0xf]
        %v1109 = vld [vmem:[%s1107 + $0x4] sm:$0xf]
        %v1110 = vld [vmem:[%s1107 + $0x8] sm:$0xf]
        %v1111 = vld [vmem:[%s1107 + $0xc] sm:$0xf]
        %v1112 = vld [vmem:[%s1107 + $0x10] sm:$0xf]
        %v1113 = vld [vmem:[%s1107 + $0x14] sm:$0xf]
        %v1114 = vld [vmem:[%s1107 + $0x18] sm:$0xf]
        %v1115 = vld [vmem:[%s1107 + $0x1c] sm:$0xf]
        %v1116 = vld [vmem:[%s1107 + $0x20] sm:$0xf]
        %v1117 = vld [vmem:[%s1107 + $0x24] sm:$0xf]
        %v1118 = vld [vmem:[%s1107 + $0x28] sm:$0xf]
        %v1119 = vld [vmem:[%s1107 + $0x2c] sm:$0xf]
        %v1132 = vunpack.c.l.b16 %v1108
        %v1133 = vunpack.c.l.b16 %v1109
        %v1134 = vunpack.c.l.b16 %v1110
        %v1135 = vunpack.c.l.b16 %v1111
        %v1136 = vunpack.c.l.b16 %v1112
        %v1137 = vunpack.c.l.b16 %v1113
        %v1138 = vunpack.c.l.b16 %v1114
        %v1139 = vunpack.c.l.b16 %v1115
        %v1140 = vunpack.c.l.b16 %v1116
        %v1141 = vunpack.c.l.b16 %v1117
        %v1142 = vunpack.c.l.b16 %v1118
        %v1143 = vunpack.c.l.b16 %v1119
        %v1144 = vpack.c.b16 %v1133, %v1132
        %v1145 = vpack.c.b16 %v1135, %v1134
        %v1146 = vpack.c.b16 %v1137, %v1136
        %v1147 = vpack.c.b16 %v1139, %v1138
        %v1148 = vpack.c.b16 %v1141, %v1140
        %v1149 = vpack.c.b16 %v1143, %v1142
        %1150 = vrot.lane.b32.xlu0 %v700, 126
        %v1151 = vpop.permute.xlu0 %1150
        %1152 = vrot.lane.b32.xlu0 %v701, 126
        %v1153 = vpop.permute.xlu0 %1152
        %1154 = vrot.lane.b32.xlu0 %v702, 126
        %v1155 = vpop.permute.xlu0 %1154
        %1156 = vrot.lane.b32.xlu0 %v720, 126
        %v1157 = vpop.permute.xlu0 %1156
        %1158 = vrot.lane.b32.xlu0 %v703, 126
        %v1159 = vpop.permute.xlu0 %1158
        %1160 = vrot.lane.b32.xlu0 %v704, 126
        %v1161 = vpop.permute.xlu0 %1160
        %1162 = vrot.lane.b32.xlu0 %v705, 126
        %v1163 = vpop.permute.xlu0 %1162
        %1164 = vrot.lane.b32.xlu0 %v721, 126
        %v1165 = vpop.permute.xlu0 %1164
        %vm1166 = vcmask 1031168
        %v1167 = vsel %vm1166, %v1151, %v1153
        %v1168 = vsel %vm1166, %v1153, %v1155
        %v1169 = vsel %vm1166, %v1155, %v1157
        %v1170 = vsel %vm1166, %v1159, %v1161
        %v1171 = vsel %vm1166, %v1161, %v1163
        %v1172 = vsel %vm1166, %v1163, %v1165
        %v1180 = vsel %vm806, %v1144, 0
        %v1183 = vsel %vm806, %v1145, 0
        %v1186 = vsel %vm806, %v1146, 0
        %v1189 = vsel %vm806, %v1147, 0
        %v1192 = vsel %vm806, %v1148, 0
        %v1195 = vsel %vm806, %v1149, 0
        %1197 = vmatpush.bf16.msra.mxu0 0
        %1198 = vmatpush.bf16.msra.mxu0 0
        %1199 = vmatpush.bf16.msra.mxu0 0
        %1200 = vmatpush.bf16.msra.mxu0 0
        %1201 = vmatpush.bf16.msra.mxu0 0
        %1202 = vmatpush.bf16.msra.mxu0 0
        %1203 = vmatpush.bf16.msra.mxu0 %v1170
        %1204 = vmatpush.bf16.msra.mxu0 %v1167
        %1205 = vmatmul.bf16.gmra.mxu0 %v1180
        %v1206 = vpop.f32.mrf.mxu0
        %v1207 = vadd.f32 0.0, %v1206
        %v1208 = vpop.f32.mrf.mxu0
        %v1209 = vadd.f32 0.0, %v1208
        %1210 = vmatmul.bf16.gmra.mxu0 %v1183
        %v1211 = vpop.f32.mrf.mxu0
        %v1212 = vadd.f32 0.0, %v1211
        %v1213 = vpop.f32.mrf.mxu0
        %v1214 = vadd.f32 0.0, %v1213
        %1215 = vmatmul.bf16.gmra.mxu0 %v1186
        %v1216 = vpop.f32.mrf.mxu0
        %v1217 = vadd.f32 0.0, %v1216
        %v1218 = vpop.f32.mrf.mxu0
        %v1219 = vadd.f32 0.0, %v1218
        %1220 = vmatmul.bf16.gmra.mxu0 %v1189
        %v1221 = vpop.f32.mrf.mxu0
        %v1222 = vadd.f32 0.0, %v1221
        %v1223 = vpop.f32.mrf.mxu0
        %v1224 = vadd.f32 0.0, %v1223
        %1225 = vmatmul.bf16.gmra.mxu0 %v1192
        %v1226 = vpop.f32.mrf.mxu0
        %v1227 = vadd.f32 0.0, %v1226
        %v1228 = vpop.f32.mrf.mxu0
        %v1229 = vadd.f32 0.0, %v1228
        %1230 = vmatmul.bf16.gmra.mxu0 %v1195
        %v1231 = vpop.f32.mrf.mxu0
        %v1232 = vadd.f32 0.0, %v1231
        %v1233 = vpop.f32.mrf.mxu0
        %v1234 = vadd.f32 0.0, %v1233
        %1235 = vdwg.mxu0
        %1236 = vmatpush.bf16.msra.mxu0 0
        %1237 = vmatpush.bf16.msra.mxu0 0
        %1238 = vmatpush.bf16.msra.mxu0 0
        %1239 = vmatpush.bf16.msra.mxu0 0
        %1240 = vmatpush.bf16.msra.mxu0 0
        %1241 = vmatpush.bf16.msra.mxu0 0
        %1242 = vmatpush.bf16.msra.mxu0 %v1171
        %1243 = vmatpush.bf16.msra.mxu0 %v1168
        %1244 = vmatmul.bf16.gmra.mxu0 %v1180
        %v1245 = vpop.f32.mrf.mxu0
        %v1246 = vadd.f32 0.0, %v1245
        %v1247 = vpop.f32.mrf.mxu0
        %v1248 = vadd.f32 0.0, %v1247
        %1249 = vmatmul.bf16.gmra.mxu0 %v1183
        %v1250 = vpop.f32.mrf.mxu0
        %v1251 = vadd.f32 0.0, %v1250
        %v1252 = vpop.f32.mrf.mxu0
        %v1253 = vadd.f32 0.0, %v1252
        %1254 = vmatmul.bf16.gmra.mxu0 %v1186
        %v1255 = vpop.f32.mrf.mxu0
        %v1256 = vadd.f32 0.0, %v1255
        %v1257 = vpop.f32.mrf.mxu0
        %v1258 = vadd.f32 0.0, %v1257
        %1259 = vmatmul.bf16.gmra.mxu0 %v1189
        %v1260 = vpop.f32.mrf.mxu0
        %v1261 = vadd.f32 0.0, %v1260
        %v1262 = vpop.f32.mrf.mxu0
        %v1263 = vadd.f32 0.0, %v1262
        %1264 = vmatmul.bf16.gmra.mxu0 %v1192
        %v1265 = vpop.f32.mrf.mxu0
        %v1266 = vadd.f32 0.0, %v1265
        %v1267 = vpop.f32.mrf.mxu0
        %v1268 = vadd.f32 0.0, %v1267
        %1269 = vmatmul.bf16.gmra.mxu0 %v1195
        %v1270 = vpop.f32.mrf.mxu0
        %v1271 = vadd.f32 0.0, %v1270
        %v1272 = vpop.f32.mrf.mxu0
        %v1273 = vadd.f32 0.0, %v1272
        %1274 = vdwg.mxu0
        %1275 = vmatpush.bf16.msra.mxu0 0
        %1276 = vmatpush.bf16.msra.mxu0 0
        %1277 = vmatpush.bf16.msra.mxu0 0
        %1278 = vmatpush.bf16.msra.mxu0 0
        %1279 = vmatpush.bf16.msra.mxu0 0
        %1280 = vmatpush.bf16.msra.mxu0 0
        %1281 = vmatpush.bf16.msra.mxu0 %v1172
        %1282 = vmatpush.bf16.msra.mxu0 %v1169
        %1283 = vmatmul.bf16.gmra.mxu0 %v1180
        %v1284 = vpop.f32.mrf.mxu0
        %v1285 = vadd.f32 0.0, %v1284
        %v1286 = vpop.f32.mrf.mxu0
        %v1287 = vadd.f32 0.0, %v1286
        %1288 = vmatmul.bf16.gmra.mxu0 %v1183
        %v1289 = vpop.f32.mrf.mxu0
        %v1290 = vadd.f32 0.0, %v1289
        %v1291 = vpop.f32.mrf.mxu0
        %v1292 = vadd.f32 0.0, %v1291
        %1293 = vmatmul.bf16.gmra.mxu0 %v1186
        %v1294 = vpop.f32.mrf.mxu0
        %v1295 = vadd.f32 0.0, %v1294
        %v1296 = vpop.f32.mrf.mxu0
        %v1297 = vadd.f32 0.0, %v1296
        %1298 = vmatmul.bf16.gmra.mxu0 %v1189
        %v1299 = vpop.f32.mrf.mxu0
        %v1300 = vadd.f32 0.0, %v1299
        %v1301 = vpop.f32.mrf.mxu0
        %v1302 = vadd.f32 0.0, %v1301
        %1303 = vmatmul.bf16.gmra.mxu0 %v1192
        %v1304 = vpop.f32.mrf.mxu0
        %v1305 = vadd.f32 0.0, %v1304
        %v1306 = vpop.f32.mrf.mxu0
        %v1307 = vadd.f32 0.0, %v1306
        %1308 = vmatmul.bf16.gmra.mxu0 %v1195
        %v1309 = vpop.f32.mrf.mxu0
        %v1310 = vadd.f32 0.0, %v1309
        %v1311 = vpop.f32.mrf.mxu0
        %v1312 = vadd.f32 0.0, %v1311
        %1313 = vdwg.mxu0
        %v1314 = vadd.f32 %v1000, %v1207
        %v1315 = vadd.f32 %v1039, %v1246
        %v1316 = vadd.f32 %v1078, %v1285
        %v1317 = vadd.f32 %v1002, %v1209
        %v1318 = vadd.f32 %v1041, %v1248
        %v1319 = vadd.f32 %v1080, %v1287
        %v1320 = vadd.f32 %v1005, %v1212
        %v1321 = vadd.f32 %v1044, %v1251
        %v1322 = vadd.f32 %v1083, %v1290
        %v1323 = vadd.f32 %v1007, %v1214
        %v1324 = vadd.f32 %v1046, %v1253
        %v1325 = vadd.f32 %v1085, %v1292
        %v1326 = vadd.f32 %v1010, %v1217
        %v1327 = vadd.f32 %v1049, %v1256
        %v1328 = vadd.f32 %v1088, %v1295
        %v1329 = vadd.f32 %v1012, %v1219
        %v1330 = vadd.f32 %v1051, %v1258
        %v1331 = vadd.f32 %v1090, %v1297
        %v1332 = vadd.f32 %v1015, %v1222
        %v1333 = vadd.f32 %v1054, %v1261
        %v1334 = vadd.f32 %v1093, %v1300
        %v1335 = vadd.f32 %v1017, %v1224
        %v1336 = vadd.f32 %v1056, %v1263
        %v1337 = vadd.f32 %v1095, %v1302
        %v1338 = vadd.f32 %v1020, %v1227
        %v1339 = vadd.f32 %v1059, %v1266
        %v1340 = vadd.f32 %v1098, %v1305
        %v1341 = vadd.f32 %v1022, %v1229
        %v1342 = vadd.f32 %v1061, %v1268
        %v1343 = vadd.f32 %v1100, %v1307
        %v1344 = vadd.f32 %v1025, %v1232
        %v1345 = vadd.f32 %v1064, %v1271
        %v1346 = vadd.f32 %v1103, %v1310
        %v1347 = vadd.f32 %v1027, %v1234
        %v1348 = vadd.f32 %v1066, %v1273
        %v1349 = vadd.f32 %v1105, %v1312
        %s1350 = scalar_lea.vmem %s2, 144
        %v1351 = vld [vmem:[%s1350] sm:$0xf]
        %v1352 = vld [vmem:[%s1350 + $0x4] sm:$0xf]
        %v1353 = vld [vmem:[%s1350 + $0x8] sm:$0xf]
        %v1354 = vld [vmem:[%s1350 + $0xc] sm:$0xf]
        %v1355 = vld [vmem:[%s1350 + $0x10] sm:$0xf]
        %v1356 = vld [vmem:[%s1350 + $0x14] sm:$0xf]
        %v1357 = vld [vmem:[%s1350 + $0x18] sm:$0xf]
        %v1358 = vld [vmem:[%s1350 + $0x1c] sm:$0xf]
        %v1359 = vld [vmem:[%s1350 + $0x20] sm:$0xf]
        %v1360 = vld [vmem:[%s1350 + $0x24] sm:$0xf]
        %v1361 = vld [vmem:[%s1350 + $0x28] sm:$0xf]
        %v1362 = vld [vmem:[%s1350 + $0x2c] sm:$0xf]
        %v1375 = vunpack.c.l.b16 %v1351
        %v1376 = vunpack.c.l.b16 %v1352
        %v1377 = vunpack.c.l.b16 %v1353
        %v1378 = vunpack.c.l.b16 %v1354
        %v1379 = vunpack.c.l.b16 %v1355
        %v1380 = vunpack.c.l.b16 %v1356
        %v1381 = vunpack.c.l.b16 %v1357
        %v1382 = vunpack.c.l.b16 %v1358
        %v1383 = vunpack.c.l.b16 %v1359
        %v1384 = vunpack.c.l.b16 %v1360
        %v1385 = vunpack.c.l.b16 %v1361
        %v1386 = vunpack.c.l.b16 %v1362
        %v1387 = vpack.c.b16 %v1376, %v1375
        %v1388 = vpack.c.b16 %v1378, %v1377
        %v1389 = vpack.c.b16 %v1380, %v1379
        %v1390 = vpack.c.b16 %v1382, %v1381
        %v1391 = vpack.c.b16 %v1384, %v1383
        %v1392 = vpack.c.b16 %v1386, %v1385
        %1393 = vrot.lane.b32.xlu0 %v700, 104
        %v1394 = vpop.permute.xlu0 %1393
        %1395 = vrot.lane.b32.xlu0 %v701, 104
        %v1396 = vpop.permute.xlu0 %1395
        %1397 = vrot.lane.b32.xlu0 %v702, 104
        %v1398 = vpop.permute.xlu0 %1397
        %1399 = vrot.lane.b32.xlu0 %v720, 104
        %v1400 = vpop.permute.xlu0 %1399
        %1401 = vrot.lane.b32.xlu0 %v703, 104
        %v1402 = vpop.permute.xlu0 %1401
        %1403 = vrot.lane.b32.xlu0 %v704, 104
        %v1404 = vpop.permute.xlu0 %1403
        %1405 = vrot.lane.b32.xlu0 %v705, 104
        %v1406 = vpop.permute.xlu0 %1405
        %1407 = vrot.lane.b32.xlu0 %v721, 104
        %v1408 = vpop.permute.xlu0 %1407
        %vm1409 = vcmask 850944
        %v1410 = vsel %vm1409, %v1394, %v1396
        %v1411 = vsel %vm1409, %v1396, %v1398
        %v1412 = vsel %vm1409, %v1398, %v1400
        %v1413 = vsel %vm1409, %v1402, %v1404
        %v1414 = vsel %vm1409, %v1404, %v1406
        %v1415 = vsel %vm1409, %v1406, %v1408
        %v1423 = vsel %vm806, %v1387, 0
        %v1426 = vsel %vm806, %v1388, 0
        %v1429 = vsel %vm806, %v1389, 0
        %v1432 = vsel %vm806, %v1390, 0
        %v1435 = vsel %vm806, %v1391, 0
        %v1438 = vsel %vm806, %v1392, 0
        %1440 = vmatpush.bf16.msra.mxu0 0
        %1441 = vmatpush.bf16.msra.mxu0 0
        %1442 = vmatpush.bf16.msra.mxu0 0
        %1443 = vmatpush.bf16.msra.mxu0 0
        %1444 = vmatpush.bf16.msra.mxu0 0
        %1445 = vmatpush.bf16.msra.mxu0 0
        %1446 = vmatpush.bf16.msra.mxu0 %v1413
        %1447 = vmatpush.bf16.msra.mxu0 %v1410
        %1448 = vmatmul.bf16.gmra.mxu0 %v1423
        %v1449 = vpop.f32.mrf.mxu0
        %v1450 = vadd.f32 0.0, %v1449
        %v1451 = vpop.f32.mrf.mxu0
        %v1452 = vadd.f32 0.0, %v1451
        %1453 = vmatmul.bf16.gmra.mxu0 %v1426
        %v1454 = vpop.f32.mrf.mxu0
        %v1455 = vadd.f32 0.0, %v1454
        %v1456 = vpop.f32.mrf.mxu0
        %v1457 = vadd.f32 0.0, %v1456
        %1458 = vmatmul.bf16.gmra.mxu0 %v1429
        %v1459 = vpop.f32.mrf.mxu0
        %v1460 = vadd.f32 0.0, %v1459
        %v1461 = vpop.f32.mrf.mxu0
        %v1462 = vadd.f32 0.0, %v1461
        %1463 = vmatmul.bf16.gmra.mxu0 %v1432
        %v1464 = vpop.f32.mrf.mxu0
        %v1465 = vadd.f32 0.0, %v1464
        %v1466 = vpop.f32.mrf.mxu0
        %v1467 = vadd.f32 0.0, %v1466
        %1468 = vmatmul.bf16.gmra.mxu0 %v1435
        %v1469 = vpop.f32.mrf.mxu0
        %v1470 = vadd.f32 0.0, %v1469
        %v1471 = vpop.f32.mrf.mxu0
        %v1472 = vadd.f32 0.0, %v1471
        %1473 = vmatmul.bf16.gmra.mxu0 %v1438
        %v1474 = vpop.f32.mrf.mxu0
        %v1475 = vadd.f32 0.0, %v1474
        %v1476 = vpop.f32.mrf.mxu0
        %v1477 = vadd.f32 0.0, %v1476
        %1478 = vdwg.mxu0
        %1479 = vmatpush.bf16.msra.mxu0 0
        %1480 = vmatpush.bf16.msra.mxu0 0
        %1481 = vmatpush.bf16.msra.mxu0 0
        %1482 = vmatpush.bf16.msra.mxu0 0
        %1483 = vmatpush.bf16.msra.mxu0 0
        %1484 = vmatpush.bf16.msra.mxu0 0
        %1485 = vmatpush.bf16.msra.mxu0 %v1414
        %1486 = vmatpush.bf16.msra.mxu0 %v1411
        %1487 = vmatmul.bf16.gmra.mxu0 %v1423
        %v1488 = vpop.f32.mrf.mxu0
        %v1489 = vadd.f32 0.0, %v1488
        %v1490 = vpop.f32.mrf.mxu0
        %v1491 = vadd.f32 0.0, %v1490
        %1492 = vmatmul.bf16.gmra.mxu0 %v1426
        %v1493 = vpop.f32.mrf.mxu0
        %v1494 = vadd.f32 0.0, %v1493
        %v1495 = vpop.f32.mrf.mxu0
        %v1496 = vadd.f32 0.0, %v1495
        %1497 = vmatmul.bf16.gmra.mxu0 %v1429
        %v1498 = vpop.f32.mrf.mxu0
        %v1499 = vadd.f32 0.0, %v1498
        %v1500 = vpop.f32.mrf.mxu0
        %v1501 = vadd.f32 0.0, %v1500
        %1502 = vmatmul.bf16.gmra.mxu0 %v1432
        %v1503 = vpop.f32.mrf.mxu0
        %v1504 = vadd.f32 0.0, %v1503
        %v1505 = vpop.f32.mrf.mxu0
        %v1506 = vadd.f32 0.0, %v1505
        %1507 = vmatmul.bf16.gmra.mxu0 %v1435
        %v1508 = vpop.f32.mrf.mxu0
        %v1509 = vadd.f32 0.0, %v1508
        %v1510 = vpop.f32.mrf.mxu0
        %v1511 = vadd.f32 0.0, %v1510
        %1512 = vmatmul.bf16.gmra.mxu0 %v1438
        %v1513 = vpop.f32.mrf.mxu0
        %v1514 = vadd.f32 0.0, %v1513
        %v1515 = vpop.f32.mrf.mxu0
        %v1516 = vadd.f32 0.0, %v1515
        %1517 = vdwg.mxu0
        %1518 = vmatpush.bf16.msra.mxu0 0
        %1519 = vmatpush.bf16.msra.mxu0 0
        %1520 = vmatpush.bf16.msra.mxu0 0
        %1521 = vmatpush.bf16.msra.mxu0 0
        %1522 = vmatpush.bf16.msra.mxu0 0
        %1523 = vmatpush.bf16.msra.mxu0 0
        %1524 = vmatpush.bf16.msra.mxu0 %v1415
        %1525 = vmatpush.bf16.msra.mxu0 %v1412
        %1526 = vmatmul.bf16.gmra.mxu0 %v1423
        %v1527 = vpop.f32.mrf.mxu0
        %v1528 = vadd.f32 0.0, %v1527
        %v1529 = vpop.f32.mrf.mxu0
        %v1530 = vadd.f32 0.0, %v1529
        %1531 = vmatmul.bf16.gmra.mxu0 %v1426
        %v1532 = vpop.f32.mrf.mxu0
        %v1533 = vadd.f32 0.0, %v1532
        %v1534 = vpop.f32.mrf.mxu0
        %v1535 = vadd.f32 0.0, %v1534
        %1536 = vmatmul.bf16.gmra.mxu0 %v1429
        %v1537 = vpop.f32.mrf.mxu0
        %v1538 = vadd.f32 0.0, %v1537
        %v1539 = vpop.f32.mrf.mxu0
        %v1540 = vadd.f32 0.0, %v1539
        %1541 = vmatmul.bf16.gmra.mxu0 %v1432
        %v1542 = vpop.f32.mrf.mxu0
        %v1543 = vadd.f32 0.0, %v1542
        %v1544 = vpop.f32.mrf.mxu0
        %v1545 = vadd.f32 0.0, %v1544
        %1546 = vmatmul.bf16.gmra.mxu0 %v1435
        %v1547 = vpop.f32.mrf.mxu0
        %v1548 = vadd.f32 0.0, %v1547
        %v1549 = vpop.f32.mrf.mxu0
        %v1550 = vadd.f32 0.0, %v1549
        %1551 = vmatmul.bf16.gmra.mxu0 %v1438
        %v1552 = vpop.f32.mrf.mxu0
        %v1553 = vadd.f32 0.0, %v1552
        %v1554 = vpop.f32.mrf.mxu0
        %v1555 = vadd.f32 0.0, %v1554
        %1556 = vdwg.mxu0
        %v1557 = vadd.f32 %v1314, %v1450
        %v1558 = vadd.f32 %v1315, %v1489
        %v1559 = vadd.f32 %v1316, %v1528
        %v1560 = vadd.f32 %v1317, %v1452
        %v1561 = vadd.f32 %v1318, %v1491
        %v1562 = vadd.f32 %v1319, %v1530
        %v1563 = vadd.f32 %v1320, %v1455
        %v1564 = vadd.f32 %v1321, %v1494
        %v1565 = vadd.f32 %v1322, %v1533
        %v1566 = vadd.f32 %v1323, %v1457
        %v1567 = vadd.f32 %v1324, %v1496
        %v1568 = vadd.f32 %v1325, %v1535
        %v1569 = vadd.f32 %v1326, %v1460
        %v1570 = vadd.f32 %v1327, %v1499
        %v1571 = vadd.f32 %v1328, %v1538
        %v1572 = vadd.f32 %v1329, %v1462
        %v1573 = vadd.f32 %v1330, %v1501
        %v1574 = vadd.f32 %v1331, %v1540
        %v1575 = vadd.f32 %v1332, %v1465
        %v1576 = vadd.f32 %v1333, %v1504
        %v1577 = vadd.f32 %v1334, %v1543
        %v1578 = vadd.f32 %v1335, %v1467
        %v1579 = vadd.f32 %v1336, %v1506
        %v1580 = vadd.f32 %v1337, %v1545
        %v1581 = vadd.f32 %v1338, %v1470
        %v1582 = vadd.f32 %v1339, %v1509
        %v1583 = vadd.f32 %v1340, %v1548
        %v1584 = vadd.f32 %v1341, %v1472
        %v1585 = vadd.f32 %v1342, %v1511
        %v1586 = vadd.f32 %v1343, %v1550
        %v1587 = vadd.f32 %v1344, %v1475
        %v1588 = vadd.f32 %v1345, %v1514
        %v1589 = vadd.f32 %v1346, %v1553
        %v1590 = vadd.f32 %v1347, %v1477
        %v1591 = vadd.f32 %v1348, %v1516
        %v1592 = vadd.f32 %v1349, %v1555
        %s1593 = scalar_lea.vmem %s2, 192
        %v1594 = vld [vmem:[%s1593] sm:$0xf]
        %v1595 = vld [vmem:[%s1593 + $0x4] sm:$0xf]
        %v1596 = vld [vmem:[%s1593 + $0x8] sm:$0xf]
        %v1597 = vld [vmem:[%s1593 + $0xc] sm:$0xf]
        %v1598 = vld [vmem:[%s1593 + $0x10] sm:$0xf]
        %v1599 = vld [vmem:[%s1593 + $0x14] sm:$0xf]
        %v1600 = vld [vmem:[%s1593 + $0x18] sm:$0xf]
        %v1601 = vld [vmem:[%s1593 + $0x1c] sm:$0xf]
        %v1602 = vld [vmem:[%s1593 + $0x20] sm:$0xf]
        %v1603 = vld [vmem:[%s1593 + $0x24] sm:$0xf]
        %v1604 = vld [vmem:[%s1593 + $0x28] sm:$0xf]
        %v1605 = vld [vmem:[%s1593 + $0x2c] sm:$0xf]
        %v1618 = vunpack.c.l.b16 %v1594
        %v1619 = vunpack.c.l.b16 %v1595
        %v1620 = vunpack.c.l.b16 %v1596
        %v1621 = vunpack.c.l.b16 %v1597
        %v1622 = vunpack.c.l.b16 %v1598
        %v1623 = vunpack.c.l.b16 %v1599
        %v1624 = vunpack.c.l.b16 %v1600
        %v1625 = vunpack.c.l.b16 %v1601
        %v1626 = vunpack.c.l.b16 %v1602
        %v1627 = vunpack.c.l.b16 %v1603
        %v1628 = vunpack.c.l.b16 %v1604
        %v1629 = vunpack.c.l.b16 %v1605
        %v1630 = vpack.c.b16 %v1619, %v1618
        %v1631 = vpack.c.b16 %v1621, %v1620
        %v1632 = vpack.c.b16 %v1623, %v1622
        %v1633 = vpack.c.b16 %v1625, %v1624
        %v1634 = vpack.c.b16 %v1627, %v1626
        %v1635 = vpack.c.b16 %v1629, %v1628
        %1636 = vrot.lane.b32.xlu0 %v700, 103
        %v1637 = vpop.permute.xlu0 %1636
        %1638 = vrot.lane.b32.xlu0 %v701, 103
        %v1639 = vpop.permute.xlu0 %1638
        %1640 = vrot.lane.b32.xlu0 %v702, 103
        %v1641 = vpop.permute.xlu0 %1640
        %1642 = vrot.lane.b32.xlu0 %v720, 103
        %v1643 = vpop.permute.xlu0 %1642
        %1644 = vrot.lane.b32.xlu0 %v703, 103
        %v1645 = vpop.permute.xlu0 %1644
        %1646 = vrot.lane.b32.xlu0 %v704, 103
        %v1647 = vpop.permute.xlu0 %1646
        %1648 = vrot.lane.b32.xlu0 %v705, 103
        %v1649 = vpop.permute.xlu0 %1648
        %1650 = vrot.lane.b32.xlu0 %v721, 103
        %v1651 = vpop.permute.xlu0 %1650
        %vm1652 = vcmask 842752
        %v1653 = vsel %vm1652, %v1637, %v1639
        %v1654 = vsel %vm1652, %v1639, %v1641
        %v1655 = vsel %vm1652, %v1641, %v1643
        %v1656 = vsel %vm1652, %v1645, %v1647
        %v1657 = vsel %vm1652, %v1647, %v1649
        %v1658 = vsel %vm1652, %v1649, %v1651
        %v1666 = vsel %vm806, %v1630, 0
        %v1669 = vsel %vm806, %v1631, 0
        %v1672 = vsel %vm806, %v1632, 0
        %v1675 = vsel %vm806, %v1633, 0
        %v1678 = vsel %vm806, %v1634, 0
        %v1681 = vsel %vm806, %v1635, 0
        %1683 = vmatpush.bf16.msra.mxu0 0
        %1684 = vmatpush.bf16.msra.mxu0 0
        %1685 = vmatpush.bf16.msra.mxu0 0
        %1686 = vmatpush.bf16.msra.mxu0 0
        %1687 = vmatpush.bf16.msra.mxu0 0
        %1688 = vmatpush.bf16.msra.mxu0 0
        %1689 = vmatpush.bf16.msra.mxu0 %v1656
        %1690 = vmatpush.bf16.msra.mxu0 %v1653
        %1691 = vmatmul.bf16.gmra.mxu0 %v1666
        %v1692 = vpop.f32.mrf.mxu0
        %v1693 = vadd.f32 0.0, %v1692
        %v1694 = vpop.f32.mrf.mxu0
        %v1695 = vadd.f32 0.0, %v1694
        %1696 = vmatmul.bf16.gmra.mxu0 %v1669
        %v1697 = vpop.f32.mrf.mxu0
        %v1698 = vadd.f32 0.0, %v1697
        %v1699 = vpop.f32.mrf.mxu0
        %v1700 = vadd.f32 0.0, %v1699
        %1701 = vmatmul.bf16.gmra.mxu0 %v1672
        %v1702 = vpop.f32.mrf.mxu0
        %v1703 = vadd.f32 0.0, %v1702
        %v1704 = vpop.f32.mrf.mxu0
        %v1705 = vadd.f32 0.0, %v1704
        %1706 = vmatmul.bf16.gmra.mxu0 %v1675
        %v1707 = vpop.f32.mrf.mxu0
        %v1708 = vadd.f32 0.0, %v1707
        %v1709 = vpop.f32.mrf.mxu0
        %v1710 = vadd.f32 0.0, %v1709
        %1711 = vmatmul.bf16.gmra.mxu0 %v1678
        %v1712 = vpop.f32.mrf.mxu0
        %v1713 = vadd.f32 0.0, %v1712
        %v1714 = vpop.f32.mrf.mxu0
        %v1715 = vadd.f32 0.0, %v1714
        %1716 = vmatmul.bf16.gmra.mxu0 %v1681
        %v1717 = vpop.f32.mrf.mxu0
        %v1718 = vadd.f32 0.0, %v1717
        %v1719 = vpop.f32.mrf.mxu0
        %v1720 = vadd.f32 0.0, %v1719
        %1721 = vdwg.mxu0
        %1722 = vmatpush.bf16.msra.mxu0 0
        %1723 = vmatpush.bf16.msra.mxu0 0
        %1724 = vmatpush.bf16.msra.mxu0 0
        %1725 = vmatpush.bf16.msra.mxu0 0
        %1726 = vmatpush.bf16.msra.mxu0 0
        %1727 = vmatpush.bf16.msra.mxu0 0
        %1728 = vmatpush.bf16.msra.mxu0 %v1657
        %1729 = vmatpush.bf16.msra.mxu0 %v1654
        %1730 = vmatmul.bf16.gmra.mxu0 %v1666
        %v1731 = vpop.f32.mrf.mxu0
        %v1732 = vadd.f32 0.0, %v1731
        %v1733 = vpop.f32.mrf.mxu0
        %v1734 = vadd.f32 0.0, %v1733
        %1735 = vmatmul.bf16.gmra.mxu0 %v1669
        %v1736 = vpop.f32.mrf.mxu0
        %v1737 = vadd.f32 0.0, %v1736
        %v1738 = vpop.f32.mrf.mxu0
        %v1739 = vadd.f32 0.0, %v1738
        %1740 = vmatmul.bf16.gmra.mxu0 %v1672
        %v1741 = vpop.f32.mrf.mxu0
        %v1742 = vadd.f32 0.0, %v1741
        %v1743 = vpop.f32.mrf.mxu0
        %v1744 = vadd.f32 0.0, %v1743
        %1745 = vmatmul.bf16.gmra.mxu0 %v1675
        %v1746 = vpop.f32.mrf.mxu0
        %v1747 = vadd.f32 0.0, %v1746
        %v1748 = vpop.f32.mrf.mxu0
        %v1749 = vadd.f32 0.0, %v1748
        %1750 = vmatmul.bf16.gmra.mxu0 %v1678
        %v1751 = vpop.f32.mrf.mxu0
        %v1752 = vadd.f32 0.0, %v1751
        %v1753 = vpop.f32.mrf.mxu0
        %v1754 = vadd.f32 0.0, %v1753
        %1755 = vmatmul.bf16.gmra.mxu0 %v1681
        %v1756 = vpop.f32.mrf.mxu0
        %v1757 = vadd.f32 0.0, %v1756
        %v1758 = vpop.f32.mrf.mxu0
        %v1759 = vadd.f32 0.0, %v1758
        %1760 = vdwg.mxu0
        %1761 = vmatpush.bf16.msra.mxu0 0
        %1762 = vmatpush.bf16.msra.mxu0 0
        %1763 = vmatpush.bf16.msra.mxu0 0
        %1764 = vmatpush.bf16.msra.mxu0 0
        %1765 = vmatpush.bf16.msra.mxu0 0
        %1766 = vmatpush.bf16.msra.mxu0 0
        %1767 = vmatpush.bf16.msra.mxu0 %v1658
        %1768 = vmatpush.bf16.msra.mxu0 %v1655
        %1769 = vmatmul.bf16.gmra.mxu0 %v1666
        %v1770 = vpop.f32.mrf.mxu0
        %v1771 = vadd.f32 0.0, %v1770
        %v1772 = vpop.f32.mrf.mxu0
        %v1773 = vadd.f32 0.0, %v1772
        %1774 = vmatmul.bf16.gmra.mxu0 %v1669
        %v1775 = vpop.f32.mrf.mxu0
        %v1776 = vadd.f32 0.0, %v1775
        %v1777 = vpop.f32.mrf.mxu0
        %v1778 = vadd.f32 0.0, %v1777
        %1779 = vmatmul.bf16.gmra.mxu0 %v1672
        %v1780 = vpop.f32.mrf.mxu0
        %v1781 = vadd.f32 0.0, %v1780
        %v1782 = vpop.f32.mrf.mxu0
        %v1783 = vadd.f32 0.0, %v1782
        %1784 = vmatmul.bf16.gmra.mxu0 %v1675
        %v1785 = vpop.f32.mrf.mxu0
        %v1786 = vadd.f32 0.0, %v1785
        %v1787 = vpop.f32.mrf.mxu0
        %v1788 = vadd.f32 0.0, %v1787
        %1789 = vmatmul.bf16.gmra.mxu0 %v1678
        %v1790 = vpop.f32.mrf.mxu0
        %v1791 = vadd.f32 0.0, %v1790
        %v1792 = vpop.f32.mrf.mxu0
        %v1793 = vadd.f32 0.0, %v1792
        %1794 = vmatmul.bf16.gmra.mxu0 %v1681
        %v1795 = vpop.f32.mrf.mxu0
        %v1796 = vadd.f32 0.0, %v1795
        %v1797 = vpop.f32.mrf.mxu0
        %v1798 = vadd.f32 0.0, %v1797
        %1799 = vdwg.mxu0
        %v1800 = vadd.f32 %v1557, %v1693
        %v1801 = vadd.f32 %v1558, %v1732
        %v1802 = vadd.f32 %v1559, %v1771
        %v1803 = vadd.f32 %v1560, %v1695
        %v1804 = vadd.f32 %v1561, %v1734
        %v1805 = vadd.f32 %v1562, %v1773
        %v1806 = vadd.f32 %v1563, %v1698
        %v1807 = vadd.f32 %v1564, %v1737
        %v1808 = vadd.f32 %v1565, %v1776
        %v1809 = vadd.f32 %v1566, %v1700
        %v1810 = vadd.f32 %v1567, %v1739
        %v1811 = vadd.f32 %v1568, %v1778
        %v1812 = vadd.f32 %v1569, %v1703
        %v1813 = vadd.f32 %v1570, %v1742
        %v1814 = vadd.f32 %v1571, %v1781
        %v1815 = vadd.f32 %v1572, %v1705
        %v1816 = vadd.f32 %v1573, %v1744
        %v1817 = vadd.f32 %v1574, %v1783
        %v1818 = vadd.f32 %v1575, %v1708
        %v1819 = vadd.f32 %v1576, %v1747
        %v1820 = vadd.f32 %v1577, %v1786
        %v1821 = vadd.f32 %v1578, %v1710
        %v1822 = vadd.f32 %v1579, %v1749
        %v1823 = vadd.f32 %v1580, %v1788
        %v1824 = vadd.f32 %v1581, %v1713
        %v1825 = vadd.f32 %v1582, %v1752
        %v1826 = vadd.f32 %v1583, %v1791
        %v1827 = vadd.f32 %v1584, %v1715
        %v1828 = vadd.f32 %v1585, %v1754
        %v1829 = vadd.f32 %v1586, %v1793
        %v1830 = vadd.f32 %v1587, %v1718
        %v1831 = vadd.f32 %v1588, %v1757
        %v1832 = vadd.f32 %v1589, %v1796
        %v1833 = vadd.f32 %v1590, %v1720
        %v1834 = vadd.f32 %v1591, %v1759
        %v1835 = vadd.f32 %v1592, %v1798
        %s1836 = scalar_lea.vmem %s2, 240
        %v1837 = vld [vmem:[%s1836] sm:$0xf]
        %v1838 = vld [vmem:[%s1836 + $0x4] sm:$0xf]
        %v1839 = vld [vmem:[%s1836 + $0x8] sm:$0xf]
        %v1840 = vld [vmem:[%s1836 + $0xc] sm:$0xf]
        %v1841 = vld [vmem:[%s1836 + $0x10] sm:$0xf]
        %v1842 = vld [vmem:[%s1836 + $0x14] sm:$0xf]
        %v1843 = vld [vmem:[%s1836 + $0x18] sm:$0xf]
        %v1844 = vld [vmem:[%s1836 + $0x1c] sm:$0xf]
        %v1845 = vld [vmem:[%s1836 + $0x20] sm:$0xf]
        %v1846 = vld [vmem:[%s1836 + $0x24] sm:$0xf]
        %v1847 = vld [vmem:[%s1836 + $0x28] sm:$0xf]
        %v1848 = vld [vmem:[%s1836 + $0x2c] sm:$0xf]
        %v1861 = vunpack.c.l.b16 %v1837
        %v1862 = vunpack.c.l.b16 %v1838
        %v1863 = vunpack.c.l.b16 %v1839
        %v1864 = vunpack.c.l.b16 %v1840
        %v1865 = vunpack.c.l.b16 %v1841
        %v1866 = vunpack.c.l.b16 %v1842
        %v1867 = vunpack.c.l.b16 %v1843
        %v1868 = vunpack.c.l.b16 %v1844
        %v1869 = vunpack.c.l.b16 %v1845
        %v1870 = vunpack.c.l.b16 %v1846
        %v1871 = vunpack.c.l.b16 %v1847
        %v1872 = vunpack.c.l.b16 %v1848
        %v1873 = vpack.c.b16 %v1862, %v1861
        %v1874 = vpack.c.b16 %v1864, %v1863
        %v1875 = vpack.c.b16 %v1866, %v1865
        %v1876 = vpack.c.b16 %v1868, %v1867
        %v1877 = vpack.c.b16 %v1870, %v1869
        %v1878 = vpack.c.b16 %v1872, %v1871
        %1879 = vrot.lane.b32.xlu0 %v700, 102
        %v1880 = vpop.permute.xlu0 %1879
        %1881 = vrot.lane.b32.xlu0 %v701, 102
        %v1882 = vpop.permute.xlu0 %1881
        %1883 = vrot.lane.b32.xlu0 %v702, 102
        %v1884 = vpop.permute.xlu0 %1883
        %1885 = vrot.lane.b32.xlu0 %v720, 102
        %v1886 = vpop.permute.xlu0 %1885
        %1887 = vrot.lane.b32.xlu0 %v703, 102
        %v1888 = vpop.permute.xlu0 %1887
        %1889 = vrot.lane.b32.xlu0 %v704, 102
        %v1890 = vpop.permute.xlu0 %1889
        %1891 = vrot.lane.b32.xlu0 %v705, 102
        %v1892 = vpop.permute.xlu0 %1891
        %1893 = vrot.lane.b32.xlu0 %v721, 102
        %v1894 = vpop.permute.xlu0 %1893
        %vm1895 = vcmask 834560
        %v1896 = vsel %vm1895, %v1880, %v1882
        %v1897 = vsel %vm1895, %v1882, %v1884
        %v1898 = vsel %vm1895, %v1884, %v1886
        %v1899 = vsel %vm1895, %v1888, %v1890
        %v1900 = vsel %vm1895, %v1890, %v1892
        %v1901 = vsel %vm1895, %v1892, %v1894
        %v1909 = vsel %vm806, %v1873, 0
        %v1912 = vsel %vm806, %v1874, 0
        %v1915 = vsel %vm806, %v1875, 0
        %v1918 = vsel %vm806, %v1876, 0
        %v1921 = vsel %vm806, %v1877, 0
        %v1924 = vsel %vm806, %v1878, 0
        %1926 = vmatpush.bf16.msra.mxu0 0
        %1927 = vmatpush.bf16.msra.mxu0 0
        %1928 = vmatpush.bf16.msra.mxu0 0
        %1929 = vmatpush.bf16.msra.mxu0 0
        %1930 = vmatpush.bf16.msra.mxu0 0
        %1931 = vmatpush.bf16.msra.mxu0 0
        %1932 = vmatpush.bf16.msra.mxu0 %v1899
        %1933 = vmatpush.bf16.msra.mxu0 %v1896
        %1934 = vmatmul.bf16.gmra.mxu0 %v1909
        %v1935 = vpop.f32.mrf.mxu0
        %v1936 = vadd.f32 0.0, %v1935
        %v1937 = vpop.f32.mrf.mxu0
        %v1938 = vadd.f32 0.0, %v1937
        %1939 = vmatmul.bf16.gmra.mxu0 %v1912
        %v1940 = vpop.f32.mrf.mxu0
        %v1941 = vadd.f32 0.0, %v1940
        %v1942 = vpop.f32.mrf.mxu0
        %v1943 = vadd.f32 0.0, %v1942
        %1944 = vmatmul.bf16.gmra.mxu0 %v1915
        %v1945 = vpop.f32.mrf.mxu0
        %v1946 = vadd.f32 0.0, %v1945
        %v1947 = vpop.f32.mrf.mxu0
        %v1948 = vadd.f32 0.0, %v1947
        %1949 = vmatmul.bf16.gmra.mxu0 %v1918
        %v1950 = vpop.f32.mrf.mxu0
        %v1951 = vadd.f32 0.0, %v1950
        %v1952 = vpop.f32.mrf.mxu0
        %v1953 = vadd.f32 0.0, %v1952
        %1954 = vmatmul.bf16.gmra.mxu0 %v1921
        %v1955 = vpop.f32.mrf.mxu0
        %v1956 = vadd.f32 0.0, %v1955
        %v1957 = vpop.f32.mrf.mxu0
        %v1958 = vadd.f32 0.0, %v1957
        %1959 = vmatmul.bf16.gmra.mxu0 %v1924
        %v1960 = vpop.f32.mrf.mxu0
        %v1961 = vadd.f32 0.0, %v1960
        %v1962 = vpop.f32.mrf.mxu0
        %v1963 = vadd.f32 0.0, %v1962
        %1964 = vdwg.mxu0
        %1965 = vmatpush.bf16.msra.mxu0 0
        %1966 = vmatpush.bf16.msra.mxu0 0
        %1967 = vmatpush.bf16.msra.mxu0 0
        %1968 = vmatpush.bf16.msra.mxu0 0
        %1969 = vmatpush.bf16.msra.mxu0 0
        %1970 = vmatpush.bf16.msra.mxu0 0
        %1971 = vmatpush.bf16.msra.mxu0 %v1900
        %1972 = vmatpush.bf16.msra.mxu0 %v1897
        %1973 = vmatmul.bf16.gmra.mxu0 %v1909
        %v1974 = vpop.f32.mrf.mxu0
        %v1975 = vadd.f32 0.0, %v1974
        %v1976 = vpop.f32.mrf.mxu0
        %v1977 = vadd.f32 0.0, %v1976
        %1978 = vmatmul.bf16.gmra.mxu0 %v1912
        %v1979 = vpop.f32.mrf.mxu0
        %v1980 = vadd.f32 0.0, %v1979
        %v1981 = vpop.f32.mrf.mxu0
        %v1982 = vadd.f32 0.0, %v1981
        %1983 = vmatmul.bf16.gmra.mxu0 %v1915
        %v1984 = vpop.f32.mrf.mxu0
        %v1985 = vadd.f32 0.0, %v1984
        %v1986 = vpop.f32.mrf.mxu0
        %v1987 = vadd.f32 0.0, %v1986
        %1988 = vmatmul.bf16.gmra.mxu0 %v1918
        %v1989 = vpop.f32.mrf.mxu0
        %v1990 = vadd.f32 0.0, %v1989
        %v1991 = vpop.f32.mrf.mxu0
        %v1992 = vadd.f32 0.0, %v1991
        %1993 = vmatmul.bf16.gmra.mxu0 %v1921
        %v1994 = vpop.f32.mrf.mxu0
        %v1995 = vadd.f32 0.0, %v1994
        %v1996 = vpop.f32.mrf.mxu0
        %v1997 = vadd.f32 0.0, %v1996
        %1998 = vmatmul.bf16.gmra.mxu0 %v1924
        %v1999 = vpop.f32.mrf.mxu0
        %v2000 = vadd.f32 0.0, %v1999
        %v2001 = vpop.f32.mrf.mxu0
        %v2002 = vadd.f32 0.0, %v2001
        %2003 = vdwg.mxu0
        %2004 = vmatpush.bf16.msra.mxu0 0
        %2005 = vmatpush.bf16.msra.mxu0 0
        %2006 = vmatpush.bf16.msra.mxu0 0
        %2007 = vmatpush.bf16.msra.mxu0 0
        %2008 = vmatpush.bf16.msra.mxu0 0
        %2009 = vmatpush.bf16.msra.mxu0 0
        %2010 = vmatpush.bf16.msra.mxu0 %v1901
        %2011 = vmatpush.bf16.msra.mxu0 %v1898
        %2012 = vmatmul.bf16.gmra.mxu0 %v1909
        %v2013 = vpop.f32.mrf.mxu0
        %v2014 = vadd.f32 0.0, %v2013
        %v2015 = vpop.f32.mrf.mxu0
        %v2016 = vadd.f32 0.0, %v2015
        %2017 = vmatmul.bf16.gmra.mxu0 %v1912
        %v2018 = vpop.f32.mrf.mxu0
        %v2019 = vadd.f32 0.0, %v2018
        %v2020 = vpop.f32.mrf.mxu0
        %v2021 = vadd.f32 0.0, %v2020
        %2022 = vmatmul.bf16.gmra.mxu0 %v1915
        %v2023 = vpop.f32.mrf.mxu0
        %v2024 = vadd.f32 0.0, %v2023
        %v2025 = vpop.f32.mrf.mxu0
        %v2026 = vadd.f32 0.0, %v2025
        %2027 = vmatmul.bf16.gmra.mxu0 %v1918
        %v2028 = vpop.f32.mrf.mxu0
        %v2029 = vadd.f32 0.0, %v2028
        %v2030 = vpop.f32.mrf.mxu0
        %v2031 = vadd.f32 0.0, %v2030
        %2032 = vmatmul.bf16.gmra.mxu0 %v1921
        %v2033 = vpop.f32.mrf.mxu0
        %v2034 = vadd.f32 0.0, %v2033
        %v2035 = vpop.f32.mrf.mxu0
        %v2036 = vadd.f32 0.0, %v2035
        %2037 = vmatmul.bf16.gmra.mxu0 %v1924
        %v2038 = vpop.f32.mrf.mxu0
        %v2039 = vadd.f32 0.0, %v2038
        %v2040 = vpop.f32.mrf.mxu0
        %v2041 = vadd.f32 0.0, %v2040
        %2042 = vdwg.mxu0
        %v2043 = vadd.f32 %v1800, %v1936
        %v2044 = vadd.f32 %v1801, %v1975
        %v2045 = vadd.f32 %v1802, %v2014
        %v2046 = vadd.f32 %v1803, %v1938
        %v2047 = vadd.f32 %v1804, %v1977
        %v2048 = vadd.f32 %v1805, %v2016
        %v2049 = vadd.f32 %v1806, %v1941
        %v2050 = vadd.f32 %v1807, %v1980
        %v2051 = vadd.f32 %v1808, %v2019
        %v2052 = vadd.f32 %v1809, %v1943
        %v2053 = vadd.f32 %v1810, %v1982
        %v2054 = vadd.f32 %v1811, %v2021
        %v2055 = vadd.f32 %v1812, %v1946
        %v2056 = vadd.f32 %v1813, %v1985
        %v2057 = vadd.f32 %v1814, %v2024
        %v2058 = vadd.f32 %v1815, %v1948
        %v2059 = vadd.f32 %v1816, %v1987
        %v2060 = vadd.f32 %v1817, %v2026
        %v2061 = vadd.f32 %v1818, %v1951
        %v2062 = vadd.f32 %v1819, %v1990
        %v2063 = vadd.f32 %v1820, %v2029
        %v2064 = vadd.f32 %v1821, %v1953
        %v2065 = vadd.f32 %v1822, %v1992
        %v2066 = vadd.f32 %v1823, %v2031
        %v2067 = vadd.f32 %v1824, %v1956
        %v2068 = vadd.f32 %v1825, %v1995
        %v2069 = vadd.f32 %v1826, %v2034
        %v2070 = vadd.f32 %v1827, %v1958
        %v2071 = vadd.f32 %v1828, %v1997
        %v2072 = vadd.f32 %v1829, %v2036
        %v2073 = vadd.f32 %v1830, %v1961
        %v2074 = vadd.f32 %v1831, %v2000
        %v2075 = vadd.f32 %v1832, %v2039
        %v2076 = vadd.f32 %v1833, %v1963
        %v2077 = vadd.f32 %v1834, %v2002
        %v2078 = vadd.f32 %v1835, %v2041
        %s2079 = scalar_lea.vmem %s2, 288
        %v2080 = vld [vmem:[%s2079] sm:$0xf]
        %v2081 = vld [vmem:[%s2079 + $0x4] sm:$0xf]
        %v2082 = vld [vmem:[%s2079 + $0x8] sm:$0xf]
        %v2083 = vld [vmem:[%s2079 + $0xc] sm:$0xf]
        %v2084 = vld [vmem:[%s2079 + $0x10] sm:$0xf]
        %v2085 = vld [vmem:[%s2079 + $0x14] sm:$0xf]
        %v2086 = vld [vmem:[%s2079 + $0x18] sm:$0xf]
        %v2087 = vld [vmem:[%s2079 + $0x1c] sm:$0xf]
        %v2088 = vld [vmem:[%s2079 + $0x20] sm:$0xf]
        %v2089 = vld [vmem:[%s2079 + $0x24] sm:$0xf]
        %v2090 = vld [vmem:[%s2079 + $0x28] sm:$0xf]
        %v2091 = vld [vmem:[%s2079 + $0x2c] sm:$0xf]
        %v2104 = vunpack.c.l.b16 %v2080
        %v2105 = vunpack.c.l.b16 %v2081
        %v2106 = vunpack.c.l.b16 %v2082
        %v2107 = vunpack.c.l.b16 %v2083
        %v2108 = vunpack.c.l.b16 %v2084
        %v2109 = vunpack.c.l.b16 %v2085
        %v2110 = vunpack.c.l.b16 %v2086
        %v2111 = vunpack.c.l.b16 %v2087
        %v2112 = vunpack.c.l.b16 %v2088
        %v2113 = vunpack.c.l.b16 %v2089
        %v2114 = vunpack.c.l.b16 %v2090
        %v2115 = vunpack.c.l.b16 %v2091
        %v2116 = vpack.c.b16 %v2105, %v2104
        %v2117 = vpack.c.b16 %v2107, %v2106
        %v2118 = vpack.c.b16 %v2109, %v2108
        %v2119 = vpack.c.b16 %v2111, %v2110
        %v2120 = vpack.c.b16 %v2113, %v2112
        %v2121 = vpack.c.b16 %v2115, %v2114
        %2122 = vrot.lane.b32.xlu0 %v700, 80
        %v2123 = vpop.permute.xlu0 %2122
        %2124 = vrot.lane.b32.xlu0 %v701, 80
        %v2125 = vpop.permute.xlu0 %2124
        %2126 = vrot.lane.b32.xlu0 %v702, 80
        %v2127 = vpop.permute.xlu0 %2126
        %2128 = vrot.lane.b32.xlu0 %v720, 80
        %v2129 = vpop.permute.xlu0 %2128
        %2130 = vrot.lane.b32.xlu0 %v703, 80
        %v2131 = vpop.permute.xlu0 %2130
        %2132 = vrot.lane.b32.xlu0 %v704, 80
        %v2133 = vpop.permute.xlu0 %2132
        %2134 = vrot.lane.b32.xlu0 %v705, 80
        %v2135 = vpop.permute.xlu0 %2134
        %2136 = vrot.lane.b32.xlu0 %v721, 80
        %v2137 = vpop.permute.xlu0 %2136
        %vm2138 = vcmask 654336
        %v2139 = vsel %vm2138, %v2123, %v2125
        %v2140 = vsel %vm2138, %v2125, %v2127
        %v2141 = vsel %vm2138, %v2127, %v2129
        %v2142 = vsel %vm2138, %v2131, %v2133
        %v2143 = vsel %vm2138, %v2133, %v2135
        %v2144 = vsel %vm2138, %v2135, %v2137
        %v2152 = vsel %vm806, %v2116, 0
        %v2155 = vsel %vm806, %v2117, 0
        %v2158 = vsel %vm806, %v2118, 0
        %v2161 = vsel %vm806, %v2119, 0
        %v2164 = vsel %vm806, %v2120, 0
        %v2167 = vsel %vm806, %v2121, 0
        %2169 = vmatpush.bf16.msra.mxu0 0
        %2170 = vmatpush.bf16.msra.mxu0 0
        %2171 = vmatpush.bf16.msra.mxu0 0
        %2172 = vmatpush.bf16.msra.mxu0 0
        %2173 = vmatpush.bf16.msra.mxu0 0
        %2174 = vmatpush.bf16.msra.mxu0 0
        %2175 = vmatpush.bf16.msra.mxu0 %v2142
        %2176 = vmatpush.bf16.msra.mxu0 %v2139
        %2177 = vmatmul.bf16.gmra.mxu0 %v2152
        %v2178 = vpop.f32.mrf.mxu0
        %v2179 = vadd.f32 0.0, %v2178
        %v2180 = vpop.f32.mrf.mxu0
        %v2181 = vadd.f32 0.0, %v2180
        %2182 = vmatmul.bf16.gmra.mxu0 %v2155
        %v2183 = vpop.f32.mrf.mxu0
        %v2184 = vadd.f32 0.0, %v2183
        %v2185 = vpop.f32.mrf.mxu0
        %v2186 = vadd.f32 0.0, %v2185
        %2187 = vmatmul.bf16.gmra.mxu0 %v2158
        %v2188 = vpop.f32.mrf.mxu0
        %v2189 = vadd.f32 0.0, %v2188
        %v2190 = vpop.f32.mrf.mxu0
        %v2191 = vadd.f32 0.0, %v2190
        %2192 = vmatmul.bf16.gmra.mxu0 %v2161
        %v2193 = vpop.f32.mrf.mxu0
        %v2194 = vadd.f32 0.0, %v2193
        %v2195 = vpop.f32.mrf.mxu0
        %v2196 = vadd.f32 0.0, %v2195
        %2197 = vmatmul.bf16.gmra.mxu0 %v2164
        %v2198 = vpop.f32.mrf.mxu0
        %v2199 = vadd.f32 0.0, %v2198
        %v2200 = vpop.f32.mrf.mxu0
        %v2201 = vadd.f32 0.0, %v2200
        %2202 = vmatmul.bf16.gmra.mxu0 %v2167
        %v2203 = vpop.f32.mrf.mxu0
        %v2204 = vadd.f32 0.0, %v2203
        %v2205 = vpop.f32.mrf.mxu0
        %v2206 = vadd.f32 0.0, %v2205
        %2207 = vdwg.mxu0
        %2208 = vmatpush.bf16.msra.mxu0 0
        %2209 = vmatpush.bf16.msra.mxu0 0
        %2210 = vmatpush.bf16.msra.mxu0 0
        %2211 = vmatpush.bf16.msra.mxu0 0
        %2212 = vmatpush.bf16.msra.mxu0 0
        %2213 = vmatpush.bf16.msra.mxu0 0
        %2214 = vmatpush.bf16.msra.mxu0 %v2143
        %2215 = vmatpush.bf16.msra.mxu0 %v2140
        %2216 = vmatmul.bf16.gmra.mxu0 %v2152
        %v2217 = vpop.f32.mrf.mxu0
        %v2218 = vadd.f32 0.0, %v2217
        %v2219 = vpop.f32.mrf.mxu0
        %v2220 = vadd.f32 0.0, %v2219
        %2221 = vmatmul.bf16.gmra.mxu0 %v2155
        %v2222 = vpop.f32.mrf.mxu0
        %v2223 = vadd.f32 0.0, %v2222
        %v2224 = vpop.f32.mrf.mxu0
        %v2225 = vadd.f32 0.0, %v2224
        %2226 = vmatmul.bf16.gmra.mxu0 %v2158
        %v2227 = vpop.f32.mrf.mxu0
        %v2228 = vadd.f32 0.0, %v2227
        %v2229 = vpop.f32.mrf.mxu0
        %v2230 = vadd.f32 0.0, %v2229
        %2231 = vmatmul.bf16.gmra.mxu0 %v2161
        %v2232 = vpop.f32.mrf.mxu0
        %v2233 = vadd.f32 0.0, %v2232
        %v2234 = vpop.f32.mrf.mxu0
        %v2235 = vadd.f32 0.0, %v2234
        %2236 = vmatmul.bf16.gmra.mxu0 %v2164
        %v2237 = vpop.f32.mrf.mxu0
        %v2238 = vadd.f32 0.0, %v2237
        %v2239 = vpop.f32.mrf.mxu0
        %v2240 = vadd.f32 0.0, %v2239
        %2241 = vmatmul.bf16.gmra.mxu0 %v2167
        %v2242 = vpop.f32.mrf.mxu0
        %v2243 = vadd.f32 0.0, %v2242
        %v2244 = vpop.f32.mrf.mxu0
        %v2245 = vadd.f32 0.0, %v2244
        %2246 = vdwg.mxu0
        %2247 = vmatpush.bf16.msra.mxu0 0
        %2248 = vmatpush.bf16.msra.mxu0 0
        %2249 = vmatpush.bf16.msra.mxu0 0
        %2250 = vmatpush.bf16.msra.mxu0 0
        %2251 = vmatpush.bf16.msra.mxu0 0
        %2252 = vmatpush.bf16.msra.mxu0 0
        %2253 = vmatpush.bf16.msra.mxu0 %v2144
        %2254 = vmatpush.bf16.msra.mxu0 %v2141
        %2255 = vmatmul.bf16.gmra.mxu0 %v2152
        %v2256 = vpop.f32.mrf.mxu0
        %v2257 = vadd.f32 0.0, %v2256
        %v2258 = vpop.f32.mrf.mxu0
        %v2259 = vadd.f32 0.0, %v2258
        %2260 = vmatmul.bf16.gmra.mxu0 %v2155
        %v2261 = vpop.f32.mrf.mxu0
        %v2262 = vadd.f32 0.0, %v2261
        %v2263 = vpop.f32.mrf.mxu0
        %v2264 = vadd.f32 0.0, %v2263
        %2265 = vmatmul.bf16.gmra.mxu0 %v2158
        %v2266 = vpop.f32.mrf.mxu0
        %v2267 = vadd.f32 0.0, %v2266
        %v2268 = vpop.f32.mrf.mxu0
        %v2269 = vadd.f32 0.0, %v2268
        %2270 = vmatmul.bf16.gmra.mxu0 %v2161
        %v2271 = vpop.f32.mrf.mxu0
        %v2272 = vadd.f32 0.0, %v2271
        %v2273 = vpop.f32.mrf.mxu0
        %v2274 = vadd.f32 0.0, %v2273
        %2275 = vmatmul.bf16.gmra.mxu0 %v2164
        %v2276 = vpop.f32.mrf.mxu0
        %v2277 = vadd.f32 0.0, %v2276
        %v2278 = vpop.f32.mrf.mxu0
        %v2279 = vadd.f32 0.0, %v2278
        %2280 = vmatmul.bf16.gmra.mxu0 %v2167
        %v2281 = vpop.f32.mrf.mxu0
        %v2282 = vadd.f32 0.0, %v2281
        %v2283 = vpop.f32.mrf.mxu0
        %v2284 = vadd.f32 0.0, %v2283
        %2285 = vdwg.mxu0
        %v2286 = vadd.f32 %v2043, %v2179
        %v2287 = vadd.f32 %v2044, %v2218
        %v2288 = vadd.f32 %v2045, %v2257
        %v2289 = vadd.f32 %v2046, %v2181
        %v2290 = vadd.f32 %v2047, %v2220
        %v2291 = vadd.f32 %v2048, %v2259
        %v2292 = vadd.f32 %v2049, %v2184
        %v2293 = vadd.f32 %v2050, %v2223
        %v2294 = vadd.f32 %v2051, %v2262
        %v2295 = vadd.f32 %v2052, %v2186
        %v2296 = vadd.f32 %v2053, %v2225
        %v2297 = vadd.f32 %v2054, %v2264
        %v2298 = vadd.f32 %v2055, %v2189
        %v2299 = vadd.f32 %v2056, %v2228
        %v2300 = vadd.f32 %v2057, %v2267
        %v2301 = vadd.f32 %v2058, %v2191
        %v2302 = vadd.f32 %v2059, %v2230
        %v2303 = vadd.f32 %v2060, %v2269
        %v2304 = vadd.f32 %v2061, %v2194
        %v2305 = vadd.f32 %v2062, %v2233
        %v2306 = vadd.f32 %v2063, %v2272
        %v2307 = vadd.f32 %v2064, %v2196
        %v2308 = vadd.f32 %v2065, %v2235
        %v2309 = vadd.f32 %v2066, %v2274
        %v2310 = vadd.f32 %v2067, %v2199
        %v2311 = vadd.f32 %v2068, %v2238
        %v2312 = vadd.f32 %v2069, %v2277
        %v2313 = vadd.f32 %v2070, %v2201
        %v2314 = vadd.f32 %v2071, %v2240
        %v2315 = vadd.f32 %v2072, %v2279
        %v2316 = vadd.f32 %v2073, %v2204
        %v2317 = vadd.f32 %v2074, %v2243
        %v2318 = vadd.f32 %v2075, %v2282
        %v2319 = vadd.f32 %v2076, %v2206
        %v2320 = vadd.f32 %v2077, %v2245
        %v2321 = vadd.f32 %v2078, %v2284
        %s2322 = scalar_lea.vmem %s2, 336
        %v2323 = vld [vmem:[%s2322] sm:$0xf]
        %v2324 = vld [vmem:[%s2322 + $0x4] sm:$0xf]
        %v2325 = vld [vmem:[%s2322 + $0x8] sm:$0xf]
        %v2326 = vld [vmem:[%s2322 + $0xc] sm:$0xf]
        %v2327 = vld [vmem:[%s2322 + $0x10] sm:$0xf]
        %v2328 = vld [vmem:[%s2322 + $0x14] sm:$0xf]
        %v2329 = vld [vmem:[%s2322 + $0x18] sm:$0xf]
        %v2330 = vld [vmem:[%s2322 + $0x1c] sm:$0xf]
        %v2331 = vld [vmem:[%s2322 + $0x20] sm:$0xf]
        %v2332 = vld [vmem:[%s2322 + $0x24] sm:$0xf]
        %v2333 = vld [vmem:[%s2322 + $0x28] sm:$0xf]
        %v2334 = vld [vmem:[%s2322 + $0x2c] sm:$0xf]
        %v2347 = vunpack.c.l.b16 %v2323
        %v2348 = vunpack.c.l.b16 %v2324
        %v2349 = vunpack.c.l.b16 %v2325
        %v2350 = vunpack.c.l.b16 %v2326
        %v2351 = vunpack.c.l.b16 %v2327
        %v2352 = vunpack.c.l.b16 %v2328
        %v2353 = vunpack.c.l.b16 %v2329
        %v2354 = vunpack.c.l.b16 %v2330
        %v2355 = vunpack.c.l.b16 %v2331
        %v2356 = vunpack.c.l.b16 %v2332
        %v2357 = vunpack.c.l.b16 %v2333
        %v2358 = vunpack.c.l.b16 %v2334
        %v2359 = vpack.c.b16 %v2348, %v2347
        %v2360 = vpack.c.b16 %v2350, %v2349
        %v2361 = vpack.c.b16 %v2352, %v2351
        %v2362 = vpack.c.b16 %v2354, %v2353
        %v2363 = vpack.c.b16 %v2356, %v2355
        %v2364 = vpack.c.b16 %v2358, %v2357
        %2365 = vrot.lane.b32.xlu0 %v700, 79
        %v2366 = vpop.permute.xlu0 %2365
        %2367 = vrot.lane.b32.xlu0 %v701, 79
        %v2368 = vpop.permute.xlu0 %2367
        %2369 = vrot.lane.b32.xlu0 %v702, 79
        %v2370 = vpop.permute.xlu0 %2369
        %2371 = vrot.lane.b32.xlu0 %v720, 79
        %v2372 = vpop.permute.xlu0 %2371
        %2373 = vrot.lane.b32.xlu0 %v703, 79
        %v2374 = vpop.permute.xlu0 %2373
        %2375 = vrot.lane.b32.xlu0 %v704, 79
        %v2376 = vpop.permute.xlu0 %2375
        %2377 = vrot.lane.b32.xlu0 %v705, 79
        %v2378 = vpop.permute.xlu0 %2377
        %2379 = vrot.lane.b32.xlu0 %v721, 79
        %v2380 = vpop.permute.xlu0 %2379
        %vm2381 = vcmask 646144
        %v2382 = vsel %vm2381, %v2366, %v2368
        %v2383 = vsel %vm2381, %v2368, %v2370
        %v2384 = vsel %vm2381, %v2370, %v2372
        %v2385 = vsel %vm2381, %v2374, %v2376
        %v2386 = vsel %vm2381, %v2376, %v2378
        %v2387 = vsel %vm2381, %v2378, %v2380
        %v2395 = vsel %vm806, %v2359, 0
        %v2398 = vsel %vm806, %v2360, 0
        %v2401 = vsel %vm806, %v2361, 0
        %v2404 = vsel %vm806, %v2362, 0
        %v2407 = vsel %vm806, %v2363, 0
        %v2410 = vsel %vm806, %v2364, 0
        %2412 = vmatpush.bf16.msra.mxu0 0
        %2413 = vmatpush.bf16.msra.mxu0 0
        %2414 = vmatpush.bf16.msra.mxu0 0
        %2415 = vmatpush.bf16.msra.mxu0 0
        %2416 = vmatpush.bf16.msra.mxu0 0
        %2417 = vmatpush.bf16.msra.mxu0 0
        %2418 = vmatpush.bf16.msra.mxu0 %v2385
        %2419 = vmatpush.bf16.msra.mxu0 %v2382
        %2420 = vmatmul.bf16.gmra.mxu0 %v2395
        %v2421 = vpop.f32.mrf.mxu0
        %v2422 = vadd.f32 0.0, %v2421
        %v2423 = vpop.f32.mrf.mxu0
        %v2424 = vadd.f32 0.0, %v2423
        %2425 = vmatmul.bf16.gmra.mxu0 %v2398
        %v2426 = vpop.f32.mrf.mxu0
        %v2427 = vadd.f32 0.0, %v2426
        %v2428 = vpop.f32.mrf.mxu0
        %v2429 = vadd.f32 0.0, %v2428
        %2430 = vmatmul.bf16.gmra.mxu0 %v2401
        %v2431 = vpop.f32.mrf.mxu0
        %v2432 = vadd.f32 0.0, %v2431
        %v2433 = vpop.f32.mrf.mxu0
        %v2434 = vadd.f32 0.0, %v2433
        %2435 = vmatmul.bf16.gmra.mxu0 %v2404
        %v2436 = vpop.f32.mrf.mxu0
        %v2437 = vadd.f32 0.0, %v2436
        %v2438 = vpop.f32.mrf.mxu0
        %v2439 = vadd.f32 0.0, %v2438
        %2440 = vmatmul.bf16.gmra.mxu0 %v2407
        %v2441 = vpop.f32.mrf.mxu0
        %v2442 = vadd.f32 0.0, %v2441
        %v2443 = vpop.f32.mrf.mxu0
        %v2444 = vadd.f32 0.0, %v2443
        %2445 = vmatmul.bf16.gmra.mxu0 %v2410
        %v2446 = vpop.f32.mrf.mxu0
        %v2447 = vadd.f32 0.0, %v2446
        %v2448 = vpop.f32.mrf.mxu0
        %v2449 = vadd.f32 0.0, %v2448
        %2450 = vdwg.mxu0
        %2451 = vmatpush.bf16.msra.mxu0 0
        %2452 = vmatpush.bf16.msra.mxu0 0
        %2453 = vmatpush.bf16.msra.mxu0 0
        %2454 = vmatpush.bf16.msra.mxu0 0
        %2455 = vmatpush.bf16.msra.mxu0 0
        %2456 = vmatpush.bf16.msra.mxu0 0
        %2457 = vmatpush.bf16.msra.mxu0 %v2386
        %2458 = vmatpush.bf16.msra.mxu0 %v2383
        %2459 = vmatmul.bf16.gmra.mxu0 %v2395
        %v2460 = vpop.f32.mrf.mxu0
        %v2461 = vadd.f32 0.0, %v2460
        %v2462 = vpop.f32.mrf.mxu0
        %v2463 = vadd.f32 0.0, %v2462
        %2464 = vmatmul.bf16.gmra.mxu0 %v2398
        %v2465 = vpop.f32.mrf.mxu0
        %v2466 = vadd.f32 0.0, %v2465
        %v2467 = vpop.f32.mrf.mxu0
        %v2468 = vadd.f32 0.0, %v2467
        %2469 = vmatmul.bf16.gmra.mxu0 %v2401
        %v2470 = vpop.f32.mrf.mxu0
        %v2471 = vadd.f32 0.0, %v2470
        %v2472 = vpop.f32.mrf.mxu0
        %v2473 = vadd.f32 0.0, %v2472
        %2474 = vmatmul.bf16.gmra.mxu0 %v2404
        %v2475 = vpop.f32.mrf.mxu0
        %v2476 = vadd.f32 0.0, %v2475
        %v2477 = vpop.f32.mrf.mxu0
        %v2478 = vadd.f32 0.0, %v2477
        %2479 = vmatmul.bf16.gmra.mxu0 %v2407
        %v2480 = vpop.f32.mrf.mxu0
        %v2481 = vadd.f32 0.0, %v2480
        %v2482 = vpop.f32.mrf.mxu0
        %v2483 = vadd.f32 0.0, %v2482
        %2484 = vmatmul.bf16.gmra.mxu0 %v2410
        %v2485 = vpop.f32.mrf.mxu0
        %v2486 = vadd.f32 0.0, %v2485
        %v2487 = vpop.f32.mrf.mxu0
        %v2488 = vadd.f32 0.0, %v2487
        %2489 = vdwg.mxu0
        %2490 = vmatpush.bf16.msra.mxu0 0
        %2491 = vmatpush.bf16.msra.mxu0 0
        %2492 = vmatpush.bf16.msra.mxu0 0
        %2493 = vmatpush.bf16.msra.mxu0 0
        %2494 = vmatpush.bf16.msra.mxu0 0
        %2495 = vmatpush.bf16.msra.mxu0 0
        %2496 = vmatpush.bf16.msra.mxu0 %v2387
        %2497 = vmatpush.bf16.msra.mxu0 %v2384
        %2498 = vmatmul.bf16.gmra.mxu0 %v2395
        %v2499 = vpop.f32.mrf.mxu0
        %v2500 = vadd.f32 0.0, %v2499
        %v2501 = vpop.f32.mrf.mxu0
        %v2502 = vadd.f32 0.0, %v2501
        %2503 = vmatmul.bf16.gmra.mxu0 %v2398
        %v2504 = vpop.f32.mrf.mxu0
        %v2505 = vadd.f32 0.0, %v2504
        %v2506 = vpop.f32.mrf.mxu0
        %v2507 = vadd.f32 0.0, %v2506
        %2508 = vmatmul.bf16.gmra.mxu0 %v2401
        %v2509 = vpop.f32.mrf.mxu0
        %v2510 = vadd.f32 0.0, %v2509
        %v2511 = vpop.f32.mrf.mxu0
        %v2512 = vadd.f32 0.0, %v2511
        %2513 = vmatmul.bf16.gmra.mxu0 %v2404
        %v2514 = vpop.f32.mrf.mxu0
        %v2515 = vadd.f32 0.0, %v2514
        %v2516 = vpop.f32.mrf.mxu0
        %v2517 = vadd.f32 0.0, %v2516
        %2518 = vmatmul.bf16.gmra.mxu0 %v2407
        %v2519 = vpop.f32.mrf.mxu0
        %v2520 = vadd.f32 0.0, %v2519
        %v2521 = vpop.f32.mrf.mxu0
        %v2522 = vadd.f32 0.0, %v2521
        %2523 = vmatmul.bf16.gmra.mxu0 %v2410
        %v2524 = vpop.f32.mrf.mxu0
        %v2525 = vadd.f32 0.0, %v2524
        %v2526 = vpop.f32.mrf.mxu0
        %v2527 = vadd.f32 0.0, %v2526
        %2528 = vdwg.mxu0
        %v2529 = vadd.f32 %v2286, %v2422
        %v2530 = vadd.f32 %v2287, %v2461
        %v2531 = vadd.f32 %v2288, %v2500
        %v2532 = vadd.f32 %v2289, %v2424
        %v2533 = vadd.f32 %v2290, %v2463
        %v2534 = vadd.f32 %v2291, %v2502
        %v2535 = vadd.f32 %v2292, %v2427
        %v2536 = vadd.f32 %v2293, %v2466
        %v2537 = vadd.f32 %v2294, %v2505
        %v2538 = vadd.f32 %v2295, %v2429
        %v2539 = vadd.f32 %v2296, %v2468
        %v2540 = vadd.f32 %v2297, %v2507
        %v2541 = vadd.f32 %v2298, %v2432
        %v2542 = vadd.f32 %v2299, %v2471
        %v2543 = vadd.f32 %v2300, %v2510
        %v2544 = vadd.f32 %v2301, %v2434
        %v2545 = vadd.f32 %v2302, %v2473
        %v2546 = vadd.f32 %v2303, %v2512
        %v2547 = vadd.f32 %v2304, %v2437
        %v2548 = vadd.f32 %v2305, %v2476
        %v2549 = vadd.f32 %v2306, %v2515
        %v2550 = vadd.f32 %v2307, %v2439
        %v2551 = vadd.f32 %v2308, %v2478
        %v2552 = vadd.f32 %v2309, %v2517
        %v2553 = vadd.f32 %v2310, %v2442
        %v2554 = vadd.f32 %v2311, %v2481
        %v2555 = vadd.f32 %v2312, %v2520
        %v2556 = vadd.f32 %v2313, %v2444
        %v2557 = vadd.f32 %v2314, %v2483
        %v2558 = vadd.f32 %v2315, %v2522
        %v2559 = vadd.f32 %v2316, %v2447
        %v2560 = vadd.f32 %v2317, %v2486
        %v2561 = vadd.f32 %v2318, %v2525
        %v2562 = vadd.f32 %v2319, %v2449
        %v2563 = vadd.f32 %v2320, %v2488
        %v2564 = vadd.f32 %v2321, %v2527
        %s2565 = scalar_lea.vmem %s2, 384
        %v2566 = vld [vmem:[%s2565] sm:$0xf]
        %v2567 = vld [vmem:[%s2565 + $0x4] sm:$0xf]
        %v2568 = vld [vmem:[%s2565 + $0x8] sm:$0xf]
        %v2569 = vld [vmem:[%s2565 + $0xc] sm:$0xf]
        %v2570 = vld [vmem:[%s2565 + $0x10] sm:$0xf]
        %v2571 = vld [vmem:[%s2565 + $0x14] sm:$0xf]
        %v2572 = vld [vmem:[%s2565 + $0x18] sm:$0xf]
        %v2573 = vld [vmem:[%s2565 + $0x1c] sm:$0xf]
        %v2574 = vld [vmem:[%s2565 + $0x20] sm:$0xf]
        %v2575 = vld [vmem:[%s2565 + $0x24] sm:$0xf]
        %v2576 = vld [vmem:[%s2565 + $0x28] sm:$0xf]
        %v2577 = vld [vmem:[%s2565 + $0x2c] sm:$0xf]
        %v2590 = vunpack.c.l.b16 %v2566
        %v2591 = vunpack.c.l.b16 %v2567
        %v2592 = vunpack.c.l.b16 %v2568
        %v2593 = vunpack.c.l.b16 %v2569
        %v2594 = vunpack.c.l.b16 %v2570
        %v2595 = vunpack.c.l.b16 %v2571
        %v2596 = vunpack.c.l.b16 %v2572
        %v2597 = vunpack.c.l.b16 %v2573
        %v2598 = vunpack.c.l.b16 %v2574
        %v2599 = vunpack.c.l.b16 %v2575
        %v2600 = vunpack.c.l.b16 %v2576
        %v2601 = vunpack.c.l.b16 %v2577
        %v2602 = vpack.c.b16 %v2591, %v2590
        %v2603 = vpack.c.b16 %v2593, %v2592
        %v2604 = vpack.c.b16 %v2595, %v2594
        %v2605 = vpack.c.b16 %v2597, %v2596
        %v2606 = vpack.c.b16 %v2599, %v2598
        %v2607 = vpack.c.b16 %v2601, %v2600
        %2608 = vrot.lane.b32.xlu0 %v700, 78
        %v2609 = vpop.permute.xlu0 %2608
        %2610 = vrot.lane.b32.xlu0 %v701, 78
        %v2611 = vpop.permute.xlu0 %2610
        %2612 = vrot.lane.b32.xlu0 %v702, 78
        %v2613 = vpop.permute.xlu0 %2612
        %2614 = vrot.lane.b32.xlu0 %v720, 78
        %v2615 = vpop.permute.xlu0 %2614
        %2616 = vrot.lane.b32.xlu0 %v703, 78
        %v2617 = vpop.permute.xlu0 %2616
        %2618 = vrot.lane.b32.xlu0 %v704, 78
        %v2619 = vpop.permute.xlu0 %2618
        %2620 = vrot.lane.b32.xlu0 %v705, 78
        %v2621 = vpop.permute.xlu0 %2620
        %2622 = vrot.lane.b32.xlu0 %v721, 78
        %v2623 = vpop.permute.xlu0 %2622
        %vm2624 = vcmask 637952
        %v2625 = vsel %vm2624, %v2609, %v2611
        %v2626 = vsel %vm2624, %v2611, %v2613
        %v2627 = vsel %vm2624, %v2613, %v2615
        %v2628 = vsel %vm2624, %v2617, %v2619
        %v2629 = vsel %vm2624, %v2619, %v2621
        %v2630 = vsel %vm2624, %v2621, %v2623
        %v2638 = vsel %vm806, %v2602, 0
        %v2641 = vsel %vm806, %v2603, 0
        %v2644 = vsel %vm806, %v2604, 0
        %v2647 = vsel %vm806, %v2605, 0
        %v2650 = vsel %vm806, %v2606, 0
        %v2653 = vsel %vm806, %v2607, 0
        %2655 = vmatpush.bf16.msra.mxu0 0
        %2656 = vmatpush.bf16.msra.mxu0 0
        %2657 = vmatpush.bf16.msra.mxu0 0
        %2658 = vmatpush.bf16.msra.mxu0 0
        %2659 = vmatpush.bf16.msra.mxu0 0
        %2660 = vmatpush.bf16.msra.mxu0 0
        %2661 = vmatpush.bf16.msra.mxu0 %v2628
        %2662 = vmatpush.bf16.msra.mxu0 %v2625
        %2663 = vmatmul.bf16.gmra.mxu0 %v2638
        %v2664 = vpop.f32.mrf.mxu0
        %v2665 = vadd.f32 0.0, %v2664
        %v2666 = vpop.f32.mrf.mxu0
        %v2667 = vadd.f32 0.0, %v2666
        %2668 = vmatmul.bf16.gmra.mxu0 %v2641
        %v2669 = vpop.f32.mrf.mxu0
        %v2670 = vadd.f32 0.0, %v2669
        %v2671 = vpop.f32.mrf.mxu0
        %v2672 = vadd.f32 0.0, %v2671
        %2673 = vmatmul.bf16.gmra.mxu0 %v2644
        %v2674 = vpop.f32.mrf.mxu0
        %v2675 = vadd.f32 0.0, %v2674
        %v2676 = vpop.f32.mrf.mxu0
        %v2677 = vadd.f32 0.0, %v2676
        %2678 = vmatmul.bf16.gmra.mxu0 %v2647
        %v2679 = vpop.f32.mrf.mxu0
        %v2680 = vadd.f32 0.0, %v2679
        %v2681 = vpop.f32.mrf.mxu0
        %v2682 = vadd.f32 0.0, %v2681
        %2683 = vmatmul.bf16.gmra.mxu0 %v2650
        %v2684 = vpop.f32.mrf.mxu0
        %v2685 = vadd.f32 0.0, %v2684
        %v2686 = vpop.f32.mrf.mxu0
        %v2687 = vadd.f32 0.0, %v2686
        %2688 = vmatmul.bf16.gmra.mxu0 %v2653
        %v2689 = vpop.f32.mrf.mxu0
        %v2690 = vadd.f32 0.0, %v2689
        %v2691 = vpop.f32.mrf.mxu0
        %v2692 = vadd.f32 0.0, %v2691
        %2693 = vdwg.mxu0
        %2694 = vmatpush.bf16.msra.mxu0 0
        %2695 = vmatpush.bf16.msra.mxu0 0
        %2696 = vmatpush.bf16.msra.mxu0 0
        %2697 = vmatpush.bf16.msra.mxu0 0
        %2698 = vmatpush.bf16.msra.mxu0 0
        %2699 = vmatpush.bf16.msra.mxu0 0
        %2700 = vmatpush.bf16.msra.mxu0 %v2629
        %2701 = vmatpush.bf16.msra.mxu0 %v2626
        %2702 = vmatmul.bf16.gmra.mxu0 %v2638
        %v2703 = vpop.f32.mrf.mxu0
        %v2704 = vadd.f32 0.0, %v2703
        %v2705 = vpop.f32.mrf.mxu0
        %v2706 = vadd.f32 0.0, %v2705
        %2707 = vmatmul.bf16.gmra.mxu0 %v2641
        %v2708 = vpop.f32.mrf.mxu0
        %v2709 = vadd.f32 0.0, %v2708
        %v2710 = vpop.f32.mrf.mxu0
        %v2711 = vadd.f32 0.0, %v2710
        %2712 = vmatmul.bf16.gmra.mxu0 %v2644
        %v2713 = vpop.f32.mrf.mxu0
        %v2714 = vadd.f32 0.0, %v2713
        %v2715 = vpop.f32.mrf.mxu0
        %v2716 = vadd.f32 0.0, %v2715
        %2717 = vmatmul.bf16.gmra.mxu0 %v2647
        %v2718 = vpop.f32.mrf.mxu0
        %v2719 = vadd.f32 0.0, %v2718
        %v2720 = vpop.f32.mrf.mxu0
        %v2721 = vadd.f32 0.0, %v2720
        %2722 = vmatmul.bf16.gmra.mxu0 %v2650
        %v2723 = vpop.f32.mrf.mxu0
        %v2724 = vadd.f32 0.0, %v2723
        %v2725 = vpop.f32.mrf.mxu0
        %v2726 = vadd.f32 0.0, %v2725
        %2727 = vmatmul.bf16.gmra.mxu0 %v2653
        %v2728 = vpop.f32.mrf.mxu0
        %v2729 = vadd.f32 0.0, %v2728
        %v2730 = vpop.f32.mrf.mxu0
        %v2731 = vadd.f32 0.0, %v2730
        %2732 = vdwg.mxu0
        %2733 = vmatpush.bf16.msra.mxu0 0
        %2734 = vmatpush.bf16.msra.mxu0 0
        %2735 = vmatpush.bf16.msra.mxu0 0
        %2736 = vmatpush.bf16.msra.mxu0 0
        %2737 = vmatpush.bf16.msra.mxu0 0
        %2738 = vmatpush.bf16.msra.mxu0 0
        %2739 = vmatpush.bf16.msra.mxu0 %v2630
        %2740 = vmatpush.bf16.msra.mxu0 %v2627
        %2741 = vmatmul.bf16.gmra.mxu0 %v2638
        %v2742 = vpop.f32.mrf.mxu0
        %v2743 = vadd.f32 0.0, %v2742
        %v2744 = vpop.f32.mrf.mxu0
        %v2745 = vadd.f32 0.0, %v2744
        %2746 = vmatmul.bf16.gmra.mxu0 %v2641
        %v2747 = vpop.f32.mrf.mxu0
        %v2748 = vadd.f32 0.0, %v2747
        %v2749 = vpop.f32.mrf.mxu0
        %v2750 = vadd.f32 0.0, %v2749
        %2751 = vmatmul.bf16.gmra.mxu0 %v2644
        %v2752 = vpop.f32.mrf.mxu0
        %v2753 = vadd.f32 0.0, %v2752
        %v2754 = vpop.f32.mrf.mxu0
        %v2755 = vadd.f32 0.0, %v2754
        %2756 = vmatmul.bf16.gmra.mxu0 %v2647
        %v2757 = vpop.f32.mrf.mxu0
        %v2758 = vadd.f32 0.0, %v2757
        %v2759 = vpop.f32.mrf.mxu0
        %v2760 = vadd.f32 0.0, %v2759
        %2761 = vmatmul.bf16.gmra.mxu0 %v2650
        %v2762 = vpop.f32.mrf.mxu0
        %v2763 = vadd.f32 0.0, %v2762
        %v2764 = vpop.f32.mrf.mxu0
        %v2765 = vadd.f32 0.0, %v2764
        %2766 = vmatmul.bf16.gmra.mxu0 %v2653
        %v2767 = vpop.f32.mrf.mxu0
        %v2768 = vadd.f32 0.0, %v2767
        %v2769 = vpop.f32.mrf.mxu0
        %v2770 = vadd.f32 0.0, %v2769
        %2771 = vdwg.mxu0
        %v2772 = vadd.f32 %v2529, %v2665
        %v2773 = vadd.f32 %v2530, %v2704
        %v2774 = vadd.f32 %v2531, %v2743
        %v2775 = vadd.f32 %v2532, %v2667
        %v2776 = vadd.f32 %v2533, %v2706
        %v2777 = vadd.f32 %v2534, %v2745
        %v2778 = vadd.f32 %v2535, %v2670
        %v2779 = vadd.f32 %v2536, %v2709
        %v2780 = vadd.f32 %v2537, %v2748
        %v2781 = vadd.f32 %v2538, %v2672
        %v2782 = vadd.f32 %v2539, %v2711
        %v2783 = vadd.f32 %v2540, %v2750
        %v2784 = vadd.f32 %v2541, %v2675
        %v2785 = vadd.f32 %v2542, %v2714
        %v2786 = vadd.f32 %v2543, %v2753
        %v2787 = vadd.f32 %v2544, %v2677
        %v2788 = vadd.f32 %v2545, %v2716
        %v2789 = vadd.f32 %v2546, %v2755
        %v2790 = vadd.f32 %v2547, %v2680
        %v2791 = vadd.f32 %v2548, %v2719
        %v2792 = vadd.f32 %v2549, %v2758
        %v2793 = vadd.f32 %v2550, %v2682
        %v2794 = vadd.f32 %v2551, %v2721
        %v2795 = vadd.f32 %v2552, %v2760
        %v2796 = vadd.f32 %v2553, %v2685
        %v2797 = vadd.f32 %v2554, %v2724
        %v2798 = vadd.f32 %v2555, %v2763
        %v2799 = vadd.f32 %v2556, %v2687
        %v2800 = vadd.f32 %v2557, %v2726
        %v2801 = vadd.f32 %v2558, %v2765
        %v2802 = vadd.f32 %v2559, %v2690
        %v2803 = vadd.f32 %v2560, %v2729
        %v2804 = vadd.f32 %v2561, %v2768
        %v2805 = vadd.f32 %v2562, %v2692
        %v2806 = vadd.f32 %v2563, %v2731
        %v2807 = vadd.f32 %v2564, %v2770
        %v2808 = vld [vmem:[%s3] sm:$0xff]
        %v2809 = vld [vmem:[%s3 + $0x8] sm:$0xff]
        %v2810 = vld [vmem:[%s3 + $0x10] sm:$0xff]
        %v2811 = vld [vmem:[%s3 + $0x18] sm:$0xff]
        %v2812 = vld [vmem:[%s3 + $0x20] sm:$0xff]
        %v2813 = vld [vmem:[%s3 + $0x28] sm:$0xff]
        %v2814 = vld [vmem:[%s3 + $0x30] sm:$0xff]
        %v2815 = vld [vmem:[%s3 + $0x38] sm:$0xff]
        %v2816 = vld [vmem:[%s3 + $0x40] sm:$0xff]
        %v2817 = vld [vmem:[%s3 + $0x48] sm:$0xff]
        %v2818 = vld [vmem:[%s3 + $0x50] sm:$0xff]
        %v2819 = vld [vmem:[%s3 + $0x58] sm:$0xff]
        %2821 = vset.pattern.permute.xlu0 0
        %2822 = vperm.xlu0 %2821, %v2808
        %v2823 = vpop.permute.xlu0 %2822
        %2826 = vset.pattern.permute.xlu0 0
        %2827 = vperm.xlu0 %2826, %v2809
        %v2828 = vpop.permute.xlu0 %2827
        %2831 = vset.pattern.permute.xlu0 0
        %2832 = vperm.xlu0 %2831, %v2810
        %v2833 = vpop.permute.xlu0 %2832
        %2836 = vset.pattern.permute.xlu0 0
        %2837 = vperm.xlu0 %2836, %v2811
        %v2838 = vpop.permute.xlu0 %2837
        %2841 = vset.pattern.permute.xlu0 0
        %2842 = vperm.xlu0 %2841, %v2812
        %v2843 = vpop.permute.xlu0 %2842
        %2846 = vset.pattern.permute.xlu0 0
        %2847 = vperm.xlu0 %2846, %v2813
        %v2848 = vpop.permute.xlu0 %2847
        %2851 = vset.pattern.permute.xlu0 0
        %2852 = vperm.xlu0 %2851, %v2814
        %v2853 = vpop.permute.xlu0 %2852
        %2856 = vset.pattern.permute.xlu0 0
        %2857 = vperm.xlu0 %2856, %v2815
        %v2858 = vpop.permute.xlu0 %2857
        %2861 = vset.pattern.permute.xlu0 0
        %2862 = vperm.xlu0 %2861, %v2816
        %v2863 = vpop.permute.xlu0 %2862
        %2866 = vset.pattern.permute.xlu0 0
        %2867 = vperm.xlu0 %2866, %v2817
        %v2868 = vpop.permute.xlu0 %2867
        %2871 = vset.pattern.permute.xlu0 0
        %2872 = vperm.xlu0 %2871, %v2818
        %v2873 = vpop.permute.xlu0 %2872
        %2876 = vset.pattern.permute.xlu0 0
        %2877 = vperm.xlu0 %2876, %v2819
        %v2878 = vpop.permute.xlu0 %2877
        %v2880 = vadd.f32 %v2772, %v2823
        %v2881 = vadd.f32 %v2773, %v2823
        %v2882 = vadd.f32 %v2774, %v2823
        %v2883 = vadd.f32 %v2775, %v2828
        %v2884 = vadd.f32 %v2776, %v2828
        %v2885 = vadd.f32 %v2777, %v2828
        %v2886 = vadd.f32 %v2778, %v2833
        %v2887 = vadd.f32 %v2779, %v2833
        %v2888 = vadd.f32 %v2780, %v2833
        %v2889 = vadd.f32 %v2781, %v2838
        %v2890 = vadd.f32 %v2782, %v2838
        %v2891 = vadd.f32 %v2783, %v2838
        %v2892 = vadd.f32 %v2784, %v2843
        %v2893 = vadd.f32 %v2785, %v2843
        %v2894 = vadd.f32 %v2786, %v2843
        %v2895 = vadd.f32 %v2787, %v2848
        %v2896 = vadd.f32 %v2788, %v2848
        %v2897 = vadd.f32 %v2789, %v2848
        %v2898 = vadd.f32 %v2790, %v2853
        %v2899 = vadd.f32 %v2791, %v2853
        %v2900 = vadd.f32 %v2792, %v2853
        %v2901 = vadd.f32 %v2793, %v2858
        %v2902 = vadd.f32 %v2794, %v2858
        %v2903 = vadd.f32 %v2795, %v2858
        %v2904 = vadd.f32 %v2796, %v2863
        %v2905 = vadd.f32 %v2797, %v2863
        %v2906 = vadd.f32 %v2798, %v2863
        %v2907 = vadd.f32 %v2799, %v2868
        %v2908 = vadd.f32 %v2800, %v2868
        %v2909 = vadd.f32 %v2801, %v2868
        %v2910 = vadd.f32 %v2802, %v2873
        %v2911 = vadd.f32 %v2803, %v2873
        %v2912 = vadd.f32 %v2804, %v2873
        %v2913 = vadd.f32 %v2805, %v2878
        %v2914 = vadd.f32 %v2806, %v2878
        %v2915 = vadd.f32 %v2807, %v2878
        %v2916 = vmax.f32 %v2880, 0.0
        %v2917 = vmax.f32 %v2881, 0.0
        %v2918 = vmax.f32 %v2882, 0.0
        %v2919 = vmax.f32 %v2883, 0.0
        %v2920 = vmax.f32 %v2884, 0.0
        %v2921 = vmax.f32 %v2885, 0.0
        %v2922 = vmax.f32 %v2886, 0.0
        %v2923 = vmax.f32 %v2887, 0.0
        %v2924 = vmax.f32 %v2888, 0.0
        %v2925 = vmax.f32 %v2889, 0.0
        %v2926 = vmax.f32 %v2890, 0.0
        %v2927 = vmax.f32 %v2891, 0.0
        %v2928 = vmax.f32 %v2892, 0.0
        %v2929 = vmax.f32 %v2893, 0.0
        %v2930 = vmax.f32 %v2894, 0.0
        %v2931 = vmax.f32 %v2895, 0.0
        %v2932 = vmax.f32 %v2896, 0.0
        %v2933 = vmax.f32 %v2897, 0.0
        %v2934 = vmax.f32 %v2898, 0.0
        %v2935 = vmax.f32 %v2899, 0.0
        %v2936 = vmax.f32 %v2900, 0.0
        %v2937 = vmax.f32 %v2901, 0.0
        %v2938 = vmax.f32 %v2902, 0.0
        %v2939 = vmax.f32 %v2903, 0.0
        %v2940 = vmax.f32 %v2904, 0.0
        %v2941 = vmax.f32 %v2905, 0.0
        %v2942 = vmax.f32 %v2906, 0.0
        %v2943 = vmax.f32 %v2907, 0.0
        %v2944 = vmax.f32 %v2908, 0.0
        %v2945 = vmax.f32 %v2909, 0.0
        %v2946 = vmax.f32 %v2910, 0.0
        %v2947 = vmax.f32 %v2911, 0.0
        %v2948 = vmax.f32 %v2912, 0.0
        %v2949 = vmax.f32 %v2913, 0.0
        %v2950 = vmax.f32 %v2914, 0.0
        %v2951 = vmax.f32 %v2915, 0.0
        %v2952 = vpack.c.bf16 %v2917, %v2916
        %v2953 = vpack.c.bf16 %v2918, %v2918
        %v2954 = vpack.c.bf16 %v2920, %v2919
        %v2955 = vpack.c.bf16 %v2921, %v2921
        %v2956 = vpack.c.bf16 %v2923, %v2922
        %v2957 = vpack.c.bf16 %v2924, %v2924
        %v2958 = vpack.c.bf16 %v2926, %v2925
        %v2959 = vpack.c.bf16 %v2927, %v2927
        %v2960 = vpack.c.bf16 %v2929, %v2928
        %v2961 = vpack.c.bf16 %v2930, %v2930
        %v2962 = vpack.c.bf16 %v2932, %v2931
        %v2963 = vpack.c.bf16 %v2933, %v2933
        %v2964 = vpack.c.bf16 %v2935, %v2934
        %v2965 = vpack.c.bf16 %v2936, %v2936
        %v2966 = vpack.c.bf16 %v2938, %v2937
        %v2967 = vpack.c.bf16 %v2939, %v2939
        %v2968 = vpack.c.bf16 %v2941, %v2940
        %v2969 = vpack.c.bf16 %v2942, %v2942
        %v2970 = vpack.c.bf16 %v2944, %v2943
        %v2971 = vpack.c.bf16 %v2945, %v2945
        %v2972 = vpack.c.bf16 %v2947, %v2946
        %v2973 = vpack.c.bf16 %v2948, %v2948
        %v2974 = vpack.c.bf16 %v2950, %v2949
        %v2975 = vpack.c.bf16 %v2951, %v2951
        %v2976 = vld [vmem:[%s4] sm:$0xf]
        %v2977 = vld [vmem:[%s4 + $0x4] sm:$0xf]
        %v2978 = vld [vmem:[%s4 + $0x8] sm:$0xf]
        %v2979 = vld [vmem:[%s4 + $0xc] sm:$0xf]
        %v2980 = vld [vmem:[%s5] sm:$0xff]
        %v2981 = vld [vmem:[%s5 + $0x8] sm:$0xff]
        %v2982 = vld [vmem:[%s5 + $0x10] sm:$0xff]
        %v2983 = vld [vmem:[%s5 + $0x18] sm:$0xff]
        %2985 = vset.pattern.permute.xlu0 0
        %2986 = vperm.xlu0 %2985, %v2980
        %v2987 = vpop.permute.xlu0 %2986
        %2990 = vset.pattern.permute.xlu0 0
        %2991 = vperm.xlu0 %2990, %v2981
        %v2992 = vpop.permute.xlu0 %2991
        %2995 = vset.pattern.permute.xlu0 0
        %2996 = vperm.xlu0 %2995, %v2982
        %v2997 = vpop.permute.xlu0 %2996
        %3000 = vset.pattern.permute.xlu0 0
        %3001 = vperm.xlu0 %3000, %v2983
        %v3002 = vpop.permute.xlu0 %3001
        %v3008 = vunpack.c.l.b16 %v2976
        %v3009 = vunpack.c.l.b16 %v2977
        %v3010 = vunpack.c.l.b16 %v2978
        %v3011 = vunpack.c.l.b16 %v2979
        %v3012 = vpack.c.b16 %v3009, %v3008
        %v3013 = vpack.c.b16 %v3011, %v3010
        %v3022 = vunpack.c.l.b16 %v2968
        %v3023 = vunpack.c.h.b16 %v2968
        %v3024 = vunpack.c.l.b16 %v2969
        %v3025 = vunpack.c.l.b16 %v2970
        %v3026 = vunpack.c.h.b16 %v2970
        %v3027 = vunpack.c.l.b16 %v2971
        %v3028 = vunpack.c.l.b16 %v2972
        %v3029 = vunpack.c.h.b16 %v2972
        %v3030 = vunpack.c.l.b16 %v2973
        %v3031 = vunpack.c.l.b16 %v2974
        %v3032 = vunpack.c.h.b16 %v2974
        %v3033 = vunpack.c.l.b16 %v2975
        %v3034 = vpack.c.b16 %v3025, %v3022
        %v3035 = vpack.c.b16 %v3026, %v3023
        %v3036 = vpack.c.b16 %v3027, %v3024
        %v3037 = vpack.c.b16 %v3031, %v3028
        %v3038 = vpack.c.b16 %v3032, %v3029
        %v3039 = vpack.c.b16 %v3033, %v3030
        %v3047 = vsel %vm806, %v3012, 0
        %v3050 = vsel %vm806, %v3013, 0
        %3052 = vmatpush.bf16.msra.mxu0 0
        %3053 = vmatpush.bf16.msra.mxu0 0
        %3054 = vmatpush.bf16.msra.mxu0 0
        %3055 = vmatpush.bf16.msra.mxu0 0
        %3056 = vmatpush.bf16.msra.mxu0 0
        %3057 = vmatpush.bf16.msra.mxu0 0
        %3058 = vmatpush.bf16.msra.mxu0 %v3037
        %3059 = vmatpush.bf16.msra.mxu0 %v3034
        %3060 = vmatmul.bf16.gmra.mxu0 %v3047
        %v3061 = vpop.f32.mrf.mxu0
        %v3062 = vadd.f32 %v2987, %v3061
        %v3063 = vpop.f32.mrf.mxu0
        %v3064 = vadd.f32 %v2992, %v3063
        %3065 = vmatmul.bf16.gmra.mxu0 %v3050
        %v3066 = vpop.f32.mrf.mxu0
        %v3067 = vadd.f32 %v2997, %v3066
        %v3068 = vpop.f32.mrf.mxu0
        %v3069 = vadd.f32 %v3002, %v3068
        %3070 = vdwg.mxu0
        %3071 = vmatpush.bf16.msra.mxu0 0
        %3072 = vmatpush.bf16.msra.mxu0 0
        %3073 = vmatpush.bf16.msra.mxu0 0
        %3074 = vmatpush.bf16.msra.mxu0 0
        %3075 = vmatpush.bf16.msra.mxu0 0
        %3076 = vmatpush.bf16.msra.mxu0 0
        %3077 = vmatpush.bf16.msra.mxu0 %v3038
        %3078 = vmatpush.bf16.msra.mxu0 %v3035
        %3079 = vmatmul.bf16.gmra.mxu0 %v3047
        %v3080 = vpop.f32.mrf.mxu0
        %v3081 = vadd.f32 %v2987, %v3080
        %v3082 = vpop.f32.mrf.mxu0
        %v3083 = vadd.f32 %v2992, %v3082
        %3084 = vmatmul.bf16.gmra.mxu0 %v3050
        %v3085 = vpop.f32.mrf.mxu0
        %v3086 = vadd.f32 %v2997, %v3085
        %v3087 = vpop.f32.mrf.mxu0
        %v3088 = vadd.f32 %v3002, %v3087
        %3089 = vdwg.mxu0
        %3090 = vmatpush.bf16.msra.mxu0 0
        %3091 = vmatpush.bf16.msra.mxu0 0
        %3092 = vmatpush.bf16.msra.mxu0 0
        %3093 = vmatpush.bf16.msra.mxu0 0
        %3094 = vmatpush.bf16.msra.mxu0 0
        %3095 = vmatpush.bf16.msra.mxu0 0
        %3096 = vmatpush.bf16.msra.mxu0 %v3039
        %3097 = vmatpush.bf16.msra.mxu0 %v3036
        %3098 = vmatmul.bf16.gmra.mxu0 %v3047
        %v3099 = vpop.f32.mrf.mxu0
        %v3100 = vadd.f32 %v2987, %v3099
        %v3101 = vpop.f32.mrf.mxu0
        %v3102 = vadd.f32 %v2992, %v3101
        %3103 = vmatmul.bf16.gmra.mxu0 %v3050
        %v3104 = vpop.f32.mrf.mxu0
        %v3105 = vadd.f32 %v2997, %v3104
        %v3106 = vpop.f32.mrf.mxu0
        %v3107 = vadd.f32 %v3002, %v3106
        %3108 = vdwg.mxu0
        %v3109 = vmax.f32 %v3062, 0.0
        %v3110 = vmax.f32 %v3081, 0.0
        %v3111 = vmax.f32 %v3100, 0.0
        %v3112 = vmax.f32 %v3064, 0.0
        %v3113 = vmax.f32 %v3083, 0.0
        %v3114 = vmax.f32 %v3102, 0.0
        %v3115 = vmax.f32 %v3067, 0.0
        %v3116 = vmax.f32 %v3086, 0.0
        %v3117 = vmax.f32 %v3105, 0.0
        %v3118 = vmax.f32 %v3069, 0.0
        %v3119 = vmax.f32 %v3088, 0.0
        %v3120 = vmax.f32 %v3107, 0.0
        %v3121 = vpack.c.bf16 %v3110, %v3109
        %v3122 = vpack.c.bf16 %v3111, %v3111
        %v3123 = vpack.c.bf16 %v3113, %v3112
        %v3124 = vpack.c.bf16 %v3114, %v3114
        %v3125 = vpack.c.bf16 %v3116, %v3115
        %v3126 = vpack.c.bf16 %v3117, %v3117
        %v3127 = vpack.c.bf16 %v3119, %v3118
        %v3128 = vpack.c.bf16 %v3120, %v3120
        %v3137 = vunpack.c.l.b16 %v2952
        %v3138 = vunpack.c.h.b16 %v2952
        %v3139 = vunpack.c.l.b16 %v2953
        %v3140 = vunpack.c.l.b16 %v2954
        %v3141 = vunpack.c.h.b16 %v2954
        %v3142 = vunpack.c.l.b16 %v2955
        %v3143 = vunpack.c.l.b16 %v2956
        %v3144 = vunpack.c.h.b16 %v2956
        %v3145 = vunpack.c.l.b16 %v2957
        %v3146 = vunpack.c.l.b16 %v2958
        %v3147 = vunpack.c.h.b16 %v2958
        %v3148 = vunpack.c.l.b16 %v2959
        %v3149 = vpack.c.b16 %v3140, %v3137
        %v3150 = vpack.c.b16 %v3141, %v3138
        %v3151 = vpack.c.b16 %v3142, %v3139
        %v3152 = vpack.c.b16 %v3146, %v3143
        %v3153 = vpack.c.b16 %v3147, %v3144
        %v3154 = vpack.c.b16 %v3148, %v3145
        %v3169 = vunpack.c.l.b16 %v2960
        %v3170 = vunpack.c.h.b16 %v2960
        %v3171 = vunpack.c.l.b16 %v2961
        %v3172 = vunpack.c.l.b16 %v2962
        %v3173 = vunpack.c.h.b16 %v2962
        %v3174 = vunpack.c.l.b16 %v2963
        %v3175 = vunpack.c.l.b16 %v2964
        %v3176 = vunpack.c.h.b16 %v2964
        %v3177 = vunpack.c.l.b16 %v2965
        %v3178 = vunpack.c.l.b16 %v2966
        %v3179 = vunpack.c.h.b16 %v2966
        %v3180 = vunpack.c.l.b16 %v2967
        %v3181 = vpack.c.b16 %v3172, %v3169
        %v3182 = vpack.c.b16 %v3173, %v3170
        %v3183 = vpack.c.b16 %v3174, %v3171
        %v3184 = vpack.c.b16 %v3178, %v3175
        %v3185 = vpack.c.b16 %v3179, %v3176
        %v3186 = vpack.c.b16 %v3180, %v3177
        %v3201 = vunpack.c.l.b16 %v3121
        %v3202 = vunpack.c.h.b16 %v3121
        %v3203 = vunpack.c.l.b16 %v3122
        %v3204 = vunpack.c.l.b16 %v3123
        %v3205 = vunpack.c.h.b16 %v3123
        %v3206 = vunpack.c.l.b16 %v3124
        %v3207 = vunpack.c.l.b16 %v3125
        %v3208 = vunpack.c.h.b16 %v3125
        %v3209 = vunpack.c.l.b16 %v3126
        %v3210 = vunpack.c.l.b16 %v3127
        %v3211 = vunpack.c.h.b16 %v3127
        %v3212 = vunpack.c.l.b16 %v3128
        %v3213 = vpack.c.b16 %v3204, %v3201
        %v3214 = vpack.c.b16 %v3205, %v3202
        %v3215 = vpack.c.b16 %v3206, %v3203
        %v3216 = vpack.c.b16 %v3210, %v3207
        %v3217 = vpack.c.b16 %v3211, %v3208
        %v3218 = vpack.c.b16 %v3212, %v3209
        %v3225 = vld [vmem:[%s6] sm:$0xf]
        %v3226 = vld [vmem:[%s7] sm:$0xff]
        %3228 = vset.pattern.permute.xlu0 0
        %3229 = vperm.xlu0 %3228, %v3226
        %v3230 = vpop.permute.xlu0 %3229
        %vm3232 = vcmask 785408
        %v3234 = vsel %vm3232, %v3225, 0
        %3236 = vmatpush.bf16.msra.mxu0 0
        %3237 = vmatpush.bf16.msra.mxu0 0
        %3238 = vmatpush.bf16.msra.mxu0 %v3216
        %3239 = vmatpush.bf16.msra.mxu0 %v3213
        %3240 = vmatpush.bf16.msra.mxu0 %v3184
        %3241 = vmatpush.bf16.msra.mxu0 %v3181
        %3242 = vmatpush.bf16.msra.mxu0 %v3152
        %3243 = vmatpush.bf16.msra.mxu0 %v3149
        %3244 = vmatmul.bf16.gmra.mxu0 %v3234
        %v3245 = vpop.f32.mrf.mxu0
        %v3246 = vadd.f32 %v3230, %v3245
        %v3247 = vpop.f32.mrf.mxu0
        %3248 = vdwg.mxu0
        %3249 = vmatpush.bf16.msra.mxu0 0
        %3250 = vmatpush.bf16.msra.mxu0 0
        %3251 = vmatpush.bf16.msra.mxu0 %v3217
        %3252 = vmatpush.bf16.msra.mxu0 %v3214
        %3253 = vmatpush.bf16.msra.mxu0 %v3185
        %3254 = vmatpush.bf16.msra.mxu0 %v3182
        %3255 = vmatpush.bf16.msra.mxu0 %v3153
        %3256 = vmatpush.bf16.msra.mxu0 %v3150
        %3257 = vmatmul.bf16.gmra.mxu0 %v3234
        %v3258 = vpop.f32.mrf.mxu0
        %v3259 = vadd.f32 %v3230, %v3258
        %v3260 = vpop.f32.mrf.mxu0
        %3261 = vdwg.mxu0
        %3262 = vmatpush.bf16.msra.mxu0 0
        %3263 = vmatpush.bf16.msra.mxu0 0
        %3264 = vmatpush.bf16.msra.mxu0 %v3218
        %3265 = vmatpush.bf16.msra.mxu0 %v3215
        %3266 = vmatpush.bf16.msra.mxu0 %v3186
        %3267 = vmatpush.bf16.msra.mxu0 %v3183
        %3268 = vmatpush.bf16.msra.mxu0 %v3154
        %3269 = vmatpush.bf16.msra.mxu0 %v3151
        %3270 = vmatmul.bf16.gmra.mxu0 %v3234
        %v3271 = vpop.f32.mrf.mxu0
        %v3272 = vadd.f32 %v3230, %v3271
        %v3273 = vpop.f32.mrf.mxu0
        %3274 = vdwg.mxu0
        %3275 = vst [vmem:[%s665] sm:$0xff] %v3246
        %3276 = vst [vmem:[%s665 + $0x8] sm:$0xff] %v3259
        %3277 = vst [vmem:[%s665 + $0x10] sm:$0xff] %v3272
        %s3278 = smul.u32 3, %s24
        %p3279 = scmp.lt.s32.totalorder %s23, 1
        %s3280 = scalar_select %p3279, %s23, 1
        %p3281 = scmp.lt.s32.totalorder %s3278, 2
        %s3282 = scalar_select %p3281, %s3278, 2
        %s3283 = smul.addr %s3280, 3
        %s3284 = sadd.s32 %s3282, %s3283
        %s3285 = smul.addr %s3284, 8
        %s3286 = scalar_lea.vmem %s8, %s3285
        // Predicated region
        $region119: #{fused_heads_forward.1} parent=113 // pred_check
          %p3287 = pneg %p233
        $region120: #{fused_heads_forward.1} parent=113 // pred_check_branch
          %3289 = sbr.rel (%p3287) target = $region122
        $region121: #{fused_heads_forward.1} parent=113 // pred_region
          %s3290 = smul.u32 3, %s24
        $region122: #{fused_heads_forward.1} parent=113 // pred_fallthru
          _
      $region114: #{fused_heads_forward.1} parent=5 // pred_fallthru
        _
      %p3291 = scmp.le.s32.totalorder 2, %s14
      // Predicated region
      $region123: #{fused_heads_forward.1} parent=5 // pred_check
        %p3292 = pneg %p3291
      $region124: #{fused_heads_forward.1} parent=5 // pred_check_branch
        %3294 = sbr.rel (%p3292) target = $region126
      $region125: #{fused_heads_forward.1} parent=5 // pred_region
        %s3295 = ssub.s32 %s14, 2
        // Predicated region
        $region127: #{fused_heads_forward.1} parent=125 // pred_check
          %p3296 = pneg %p239
        $region128: #{fused_heads_forward.1} parent=125 // pred_check_branch
          %3298 = sbr.rel (%p3296) target = $region130
        $region129: #{fused_heads_forward.1} parent=125 // pred_region
          %s3299 = smul.u32 3, %s26
          %p3300 = scmp.lt.s32.totalorder %s25, 1
          %s3301 = scalar_select %p3300, %s25, 1
          %p3302 = scmp.lt.s32.totalorder %s3299, 2
          %s3303 = scalar_select %p3302, %s3299, 2
          %s3304 = smul.addr %s3301, 3
          %s3305 = sadd.s32 %s3303, %s3304
          %s3306 = smul.addr %s3305, 8
          %s3307 = scalar_lea.vmem %s8, %s3306
        $region130: #{fused_heads_forward.1} parent=125 // pred_fallthru
          _
      $region126: #{fused_heads_forward.1} parent=5 // pred_fallthru
        _
    $region6: #{fused_heads_forward.1} parent=1 // loop_footer
      %s18 = sadd.s32 1, %s14
    $region7: #{fused_heads_forward.1} parent=1 // loop_footer_branch
      %13 = sbr.rel target = $region3
    $region8: #{fused_heads_forward.1} parent=1 // loop_exit
      _

</llo_original>
